<compile_context>
chip_gen: v6e
topology: v6e:2x2x1
jax: 0.10.0
libtpu: 0.0.40
codegen_flags: <defaults>
</compile_context>

<pallas_src>
import jax
import jax.numpy as jnp
from jax import lax
from jax.experimental import pallas as pl
from jax.experimental.pallas import tpu as pltpu

NCLASSES = 43
VMEM_LIMIT = 32 * 1024 * 1024


def _round_up(x, m):
    return ((x + m - 1) // m) * m


# ----------------------------- Pallas kernel --------------------------------

def _banded_conv_pool_relu(x2d, we_ref, wo_ref, b_ref, nb):
    """Banded conv + bias + 2x2 max-pool + ReLU on rows ordered (h, image).

    x2d    : (H_in*nb, W_in*Cin) bf16, row index = h*nb + image
    we_ref : (KH, W_in*Cin, P*Cout) bf16   even output columns (ow = 2p)
    wo_ref : (KH, W_in*Cin, P*Cout) bf16   odd  output columns (ow = 2p+1)
    b_ref  : (1, P*Cout) f32               conv bias tiled over p
    returns: (H_out//2, nb, P*Cout) f32, rows = pooled h, cols = (pooled w, co)
    """
    kh = we_ref.shape[0]
    pc = we_ref.shape[2]
    h_in = x2d.shape[0] // nb
    h_out = h_in - kh + 1

    def acc(w_ref):
        a = None
        for i in range(kh):                       # trace-time unrolled (KH=5)
            y = jnp.dot(x2d, w_ref[i], preferred_element_type=jnp.float32)
            ys = y[i * nb:(i + h_out) * nb, :]    # tile-aligned row slice
            a = ys if a is None else a + ys
        return a

    z = jnp.maximum(acc(we_ref), acc(wo_ref)) + b_ref[...]   # pool over W
    z = z.reshape(h_out // 2, 2, nb, pc)                     # aligned split
    z = jnp.maximum(z[:, 0], z[:, 1])                        # pool over H
    return jnp.maximum(z, 0.0)                               # ReLU


def _net_kernel(x_ref, w1e_ref, w1o_ref, b1_ref, w2e_ref, w2o_ref, b2_ref,
                wf1_ref, bf1_ref, wf2_ref, bf2_ref, o_ref):
    h_in, nb, f0 = x_ref.shape                    # (32, B, 96)
    x2d = x_ref[...].reshape(h_in * nb, f0)

    # conv1 + bias + 2x2 max-pool + ReLU  -> (14, B, 14*10)
    a1 = _banded_conv_pool_relu(x2d, w1e_ref, w1o_ref, b1_ref, nb)
    a1_2d = a1.astype(jnp.bfloat16).reshape(a1.shape[0] * nb, a1.shape[2])

    # conv2 (+ eval-mode Dropout2d == identity) + pool + ReLU -> (5, B, 5*20)
    a2 = _banded_conv_pool_relu(a1_2d, w2e_ref, w2o_ref, b2_ref, nb)
    a2 = a2.astype(jnp.bfloat16)

    # fc1 over the pooled (5 x 5 x 20) activations: 5 GEMMs with M = B;
    # the weight was pre-permuted so no in-kernel transpose/flatten is needed.
    h = bf1_ref[...]                              # (1, 50) f32
    for r in range(wf1_ref.shape[0]):             # 5, trace-time unrolled
        h = h + jnp.dot(a2[r], wf1_ref[r], preferred_element_type=jnp.float32)
    h = jnp.maximum(h, 0.0)

    # fc2 + log_softmax
    z = jnp.dot(h.astype(jnp.bfloat16), wf2_ref[...],
                preferred_element_type=jnp.float32) + bf2_ref[...]
    zs = z - jnp.max(z, axis=-1, keepdims=True)
    o_ref[...] = zs - jnp.log(jnp.sum(jnp.exp(zs), axis=-1, keepdims=True))


# ------------------------ trace-time weight packing --------------------------

def _banded_conv_weights(w, w_in):
    """PyTorch conv weight (Cout, Cin, KH, KW) -> (even, odd) banded weights.

    M[i][win*Cin + ci, p*Cout + co] = w[co, ci, i, win - (2p + parity)]
    (zero outside kernel support), so that for inputs whose rows are (h, image)
    and whose features are (w, cin), `sum_i shift_i(X @ M[i])` is the conv
    output restricted to columns ow = 2p + parity.
    """
    cout, cin, kh, kw = w.shape
    w_out = w_in - kw + 1
    win = jnp.arange(w_in)[:, None]
    res = []
    for parity in (0, 1):
        p = jnp.arange((w_out - parity + 1) // 2)[None, :]
        k = win - (2 * p + parity)                        # (w_in, P)
        valid = (k >= 0) & (k < kw)
        kc = jnp.clip(k, 0, kw - 1)
        mats = []
        for i in range(kh):
            wi = jnp.transpose(w[:, :, i, :], (2, 0, 1))  # (KW, Cout, Cin)
            sel = jnp.where(valid[:, :, None, None], wi[kc], 0.0)
            mats.append(jnp.transpose(sel, (0, 3, 1, 2))
                        .reshape(w_in * cin, p.shape[1] * cout))
        res.append(jnp.stack(mats))
    return res[0], res[1]


# --------------------------------- Model -------------------------------------

def init_params(key):
    ks = jax.random.split(key, 8)

    def rnd(k, shape, scale):
        return scale * jax.random.normal(k, shape, dtype=jnp.float32)

    return {
        "w_conv1": rnd(ks[0], (10, 3, 5, 5), 0.10),   # nn.Conv2d(3, 10, 5)
        "b_conv1": rnd(ks[1], (10,), 0.10),
        "w_conv2": rnd(ks[2], (20, 10, 5, 5), 0.10),  # nn.Conv2d(10, 20, 5)
        "b_conv2": rnd(ks[3], (20,), 0.10),
        "w_fc1":   rnd(ks[4], (50, 500), 0.05),       # nn.Linear(500, 50)
        "b_fc1":   rnd(ks[5], (50,), 0.05),
        "w_fc2":   rnd(ks[6], (43, 50), 0.05),        # nn.Linear(50, 43)
        "b_fc2":   rnd(ks[7], (43,), 0.05),
    }


def net_forward(x_nchw, params):
    n, cin, hh, ww = x_nchw.shape
    assert (cin, hh, ww) == (3, 32, 32)

    nb = 32 if n >= 32 else _round_up(n, 8)       # images per grid step
    n_pad = _round_up(n, nb)
    bf16 = jnp.bfloat16

    # NCHW -> rows (h, image), features (w, cin); bf16 for the MXU.
    xt = jnp.transpose(x_nchw, (2, 0, 3, 1)).reshape(hh, n, ww * cin)
    if n_pad != n:
        xt = jnp.pad(xt, ((0, 0), (0, n_pad - n), (0, 0)))
    xt = xt.astype(bf16)

    w1e, w1o = _banded_conv_weights(params["w_conv1"], 32)   # (5, 96, 140)
    w2e, w2o = _banded_conv_weights(params["w_conv2"], 14)   # (5, 140, 100)
    b1t = jnp.tile(params["b_conv1"], 14).reshape(1, 140)
    b2t = jnp.tile(params["b_conv2"], 5).reshape(1, 100)
    # fc1 weight permuted so flatten order (C,H,W) of PyTorch's view(-1, 500)
    # matches the in-kernel (pooled-h, pooled-w, channel) layout.
    wf1 = jnp.transpose(params["w_fc1"].reshape(50, 20, 5, 5),
                        (2, 3, 1, 0)).reshape(5, 100, 50)
    bf1 = params["b_fc1"].reshape(1, 50)
    wf2 = params["w_fc2"].T                                   # (50, 43)
    bf2 = params["b_fc2"].reshape(1, NCLASSES)

    out = pl.pallas_call(
        _net_kernel,
        out_shape=jax.ShapeDtypeStruct((n_pad, NCLASSES), jnp.float32),
        grid=(n_pad // nb,),
        in_specs=[
            pl.BlockSpec((hh, nb, ww * cin), lambda i: (0, i, 0)),
            pl.BlockSpec(w1e.shape, lambda i: (0, 0, 0)),
            pl.BlockSpec(w1o.shape, lambda i: (0, 0, 0)),
            pl.BlockSpec(b1t.shape, lambda i: (0, 0)),
            pl.BlockSpec(w2e.shape, lambda i: (0, 0, 0)),
            pl.BlockSpec(w2o.shape, lambda i: (0, 0, 0)),
            pl.BlockSpec(b2t.shape, lambda i: (0, 0)),
            pl.BlockSpec(wf1.shape, lambda i: (0, 0, 0)),
            pl.BlockSpec(bf1.shape, lambda i: (0, 0)),
            pl.BlockSpec(wf2.shape, lambda i: (0, 0)),
            pl.BlockSpec(bf2.shape, lambda i: (0, 0)),
        ],
        out_specs=pl.BlockSpec((nb, NCLASSES), lambda i: (i, 0)),
        compiler_params=pltpu.CompilerParams(
            dimension_semantics=("parallel",),
            vmem_limit_bytes=VMEM_LIMIT),
    )(xt, w1e.astype(bf16), w1o.astype(bf16), b1t,
      w2e.astype(bf16), w2o.astype(bf16), b2t,
      wf1.astype(bf16), bf1, wf2.astype(bf16), bf2)
    return out[:n]


# ----------------------------- reference (f32) -------------------------------

def _maxpool2(y):
    n, c, h, w = y.shape
    return jnp.max(y.reshape(n, c, h // 2, 2, w // 2, 2), axis=(3, 5))


def net_reference(x, params):
    dn = ("NCHW", "OIHW", "NCHW")
    y = lax.conv_general_dilated(x, params["w_conv1"], (1, 1), "VALID",
                                 dimension_numbers=dn)
    y = jnp.maximum(_maxpool2(y + params["b_conv1"][None, :, None, None]), 0.0)
    y = lax.conv_general_dilated(y, params["w_conv2"], (1, 1), "VALID",
                                 dimension_numbers=dn)
    y = jnp.maximum(_maxpool2(y + params["b_conv2"][None, :, None, None]), 0.0)
    y = y.reshape(y.shape[0], -1)
    y = jnp.maximum(y @ params["w_fc1"].T + params["b_fc1"], 0.0)
    y = y @ params["w_fc2"].T + params["b_fc2"]
    return jax.nn.log_softmax(y, axis=-1)


# ---------------------------------- Main -------------------------------------

if __name__ == "__main__":
    key = jax.random.PRNGKey(0)
    kx, kp = jax.random.split(key)

    # forward implies 32x32 input: conv5 -> pool2 -> conv5 -> pool2 -> 20*5*5=500
    x = jax.random.normal(kx, (2, 3, 32, 32), dtype=jnp.float32)
    params = init_params(kp)

    out = jax.jit(net_forward)(x, params)
    out = jax.block_until_ready(out)

    assert out.shape == (2, NCLASSES), out.shape
    assert bool(jnp.all(jnp.isfinite(out)))
    # log_softmax rows must (log-)sum to ~0
    lse = jax.scipy.special.logsumexp(out, axis=-1)
    assert bool(jnp.max(jnp.abs(lse)) < 1e-3), lse
    # loose check vs f32 XLA reference (bf16 GEMM operands in the kernel)
    ref = net_reference(x, params)
    err = float(jnp.max(jnp.abs(out - ref)))
    assert err < 0.2, err

    print("KERNEL_OK")
</pallas_src>

<mosaic_0001>
module attributes {stable_mosaic.version = 11 : i64} {
  func.func @_net_kernel(%arg0: i32, %arg1: memref<32x8x96xbf16, #tpu.memory_space<vmem>>, %arg2: memref<5x96x140xbf16, #tpu.memory_space<vmem>>, %arg3: memref<5x96x140xbf16, #tpu.memory_space<vmem>>, %arg4: memref<1x140xf32, #tpu.memory_space<vmem>>, %arg5: memref<5x140x100xbf16, #tpu.memory_space<vmem>>, %arg6: memref<5x140x100xbf16, #tpu.memory_space<vmem>>, %arg7: memref<1x100xf32, #tpu.memory_space<vmem>>, %arg8: memref<5x100x50xbf16, #tpu.memory_space<vmem>>, %arg9: memref<1x50xf32, #tpu.memory_space<vmem>>, %arg10: memref<50x43xbf16, #tpu.memory_space<vmem>>, %arg11: memref<1x43xf32, #tpu.memory_space<vmem>>, %arg12: memref<8x43xf32, #tpu.memory_space<vmem>>) attributes {dimension_semantics = [#tpu.dimension_semantics<parallel>], iteration_bounds = array<i64: 1>, scalar_prefetch = 0 : i64, scratch_operands = 0 : i64, tpu.core_type = #tpu.core_type<tc>, window_params = [{transform_indices = @transform_0, window_bounds = array<i64: 32, 8, 96>}, {pipeline_mode = #tpu.pipeline_mode<synchronous>, transform_indices = @transform_1, window_bounds = array<i64: 5, 96, 140>}, {pipeline_mode = #tpu.pipeline_mode<synchronous>, transform_indices = @transform_2, window_bounds = array<i64: 5, 96, 140>}, {pipeline_mode = #tpu.pipeline_mode<synchronous>, transform_indices = @transform_3, window_bounds = array<i64: 1, 140>}, {pipeline_mode = #tpu.pipeline_mode<synchronous>, transform_indices = @transform_4, window_bounds = array<i64: 5, 140, 100>}, {pipeline_mode = #tpu.pipeline_mode<synchronous>, transform_indices = @transform_5, window_bounds = array<i64: 5, 140, 100>}, {pipeline_mode = #tpu.pipeline_mode<synchronous>, transform_indices = @transform_6, window_bounds = array<i64: 1, 100>}, {pipeline_mode = #tpu.pipeline_mode<synchronous>, transform_indices = @transform_7, window_bounds = array<i64: 5, 100, 50>}, {pipeline_mode = #tpu.pipeline_mode<synchronous>, transform_indices = @transform_8, window_bounds = array<i64: 1, 50>}, {pipeline_mode = #tpu.pipeline_mode<synchronous>, transform_indices = @transform_9, window_bounds = array<i64: 50, 43>}, {pipeline_mode = #tpu.pipeline_mode<synchronous>, transform_indices = @transform_10, window_bounds = array<i64: 1, 43>}, {transform_indices = @transform_11, window_bounds = array<i64: 8, 43>}]} {
    %c0 = arith.constant 0 : index
    %c0_0 = arith.constant 0 : index
    %c0_1 = arith.constant 0 : index
    %0 = vector.load %arg1[%c0, %c0_0, %c0_1] : memref<32x8x96xbf16, #tpu.memory_space<vmem>>, vector<32x8x96xbf16>
    %1 = vector.shape_cast %0 : vector<32x8x96xbf16> to vector<256x96xbf16>
    %c0_2 = arith.constant 0 : index
    %c0_3 = arith.constant 0 : index
    %c0_4 = arith.constant 0 : index
    %2 = vector.load %arg2[%c0_2, %c0_3, %c0_4] : memref<5x96x140xbf16, #tpu.memory_space<vmem>>, vector<1x96x140xbf16>
    %3 = vector.shape_cast %2 : vector<1x96x140xbf16> to vector<96x140xbf16>
    %cst = arith.constant dense<0.000000e+00> : vector<256x140xf32>
    %4 = tpu.matmul %1, %3, %cst {dimension_numbers = #tpu.dot_dimension_numbers<[1], [0], [0], [1], [0, 0, 1, 1], [], []>} : vector<256x96xbf16>, vector<96x140xbf16>, vector<256x140xf32> -> vector<256x140xf32>
    %5 = vector.extract_strided_slice %4 {offsets = [0, 0], sizes = [224, 140], strides = [1, 1]} : vector<256x140xf32> to vector<224x140xf32>
    %c1 = arith.constant 1 : index
    %c0_5 = arith.constant 0 : index
    %c0_6 = arith.constant 0 : index
    %6 = vector.load %arg2[%c1, %c0_5, %c0_6] : memref<5x96x140xbf16, #tpu.memory_space<vmem>>, vector<1x96x140xbf16>
    %7 = vector.shape_cast %6 : vector<1x96x140xbf16> to vector<96x140xbf16>
    %cst_7 = arith.constant dense<0.000000e+00> : vector<256x140xf32>
    %8 = tpu.matmul %1, %7, %cst_7 {dimension_numbers = #tpu.dot_dimension_numbers<[1], [0], [0], [1], [0, 0, 1, 1], [], []>} : vector<256x96xbf16>, vector<96x140xbf16>, vector<256x140xf32> -> vector<256x140xf32>
    %9 = vector.extract_strided_slice %8 {offsets = [8, 0], sizes = [224, 140], strides = [1, 1]} : vector<256x140xf32> to vector<224x140xf32>
    %10 = arith.addf %5, %9 : vector<224x140xf32>
    %c2 = arith.constant 2 : index
    %c0_8 = arith.constant 0 : index
    %c0_9 = arith.constant 0 : index
    %11 = vector.load %arg2[%c2, %c0_8, %c0_9] : memref<5x96x140xbf16, #tpu.memory_space<vmem>>, vector<1x96x140xbf16>
    %12 = vector.shape_cast %11 : vector<1x96x140xbf16> to vector<96x140xbf16>
    %cst_10 = arith.constant dense<0.000000e+00> : vector<256x140xf32>
    %13 = tpu.matmul %1, %12, %cst_10 {dimension_numbers = #tpu.dot_dimension_numbers<[1], [0], [0], [1], [0, 0, 1, 1], [], []>} : vector<256x96xbf16>, vector<96x140xbf16>, vector<256x140xf32> -> vector<256x140xf32>
    %14 = vector.extract_strided_slice %13 {offsets = [16, 0], sizes = [224, 140], strides = [1, 1]} : vector<256x140xf32> to vector<224x140xf32>
    %15 = arith.addf %10, %14 : vector<224x140xf32>
    %c3 = arith.constant 3 : index
    %c0_11 = arith.constant 0 : index
    %c0_12 = arith.constant 0 : index
    %16 = vector.load %arg2[%c3, %c0_11, %c0_12] : memref<5x96x140xbf16, #tpu.memory_space<vmem>>, vector<1x96x140xbf16>
    %17 = vector.shape_cast %16 : vector<1x96x140xbf16> to vector<96x140xbf16>
    %cst_13 = arith.constant dense<0.000000e+00> : vector<256x140xf32>
    %18 = tpu.matmul %1, %17, %cst_13 {dimension_numbers = #tpu.dot_dimension_numbers<[1], [0], [0], [1], [0, 0, 1, 1], [], []>} : vector<256x96xbf16>, vector<96x140xbf16>, vector<256x140xf32> -> vector<256x140xf32>
    %19 = vector.extract_strided_slice %18 {offsets = [24, 0], sizes = [224, 140], strides = [1, 1]} : vector<256x140xf32> to vector<224x140xf32>
    %20 = arith.addf %15, %19 : vector<224x140xf32>
    %c4 = arith.constant 4 : index
    %c0_14 = arith.constant 0 : index
    %c0_15 = arith.constant 0 : index
    %21 = vector.load %arg2[%c4, %c0_14, %c0_15] : memref<5x96x140xbf16, #tpu.memory_space<vmem>>, vector<1x96x140xbf16>
    %22 = vector.shape_cast %21 : vector<1x96x140xbf16> to vector<96x140xbf16>
    %cst_16 = arith.constant dense<0.000000e+00> : vector<256x140xf32>
    %23 = tpu.matmul %1, %22, %cst_16 {dimension_numbers = #tpu.dot_dimension_numbers<[1], [0], [0], [1], [0, 0, 1, 1], [], []>} : vector<256x96xbf16>, vector<96x140xbf16>, vector<256x140xf32> -> vector<256x140xf32>
    %24 = vector.extract_strided_slice %23 {offsets = [32, 0], sizes = [224, 140], strides = [1, 1]} : vector<256x140xf32> to vector<224x140xf32>
    %25 = arith.addf %20, %24 : vector<224x140xf32>
    %c0_17 = arith.constant 0 : index
    %c0_18 = arith.constant 0 : index
    %c0_19 = arith.constant 0 : index
    %26 = vector.load %arg3[%c0_17, %c0_18, %c0_19] : memref<5x96x140xbf16, #tpu.memory_space<vmem>>, vector<1x96x140xbf16>
    %27 = vector.shape_cast %26 : vector<1x96x140xbf16> to vector<96x140xbf16>
    %cst_20 = arith.constant dense<0.000000e+00> : vector<256x140xf32>
    %28 = tpu.matmul %1, %27, %cst_20 {dimension_numbers = #tpu.dot_dimension_numbers<[1], [0], [0], [1], [0, 0, 1, 1], [], []>} : vector<256x96xbf16>, vector<96x140xbf16>, vector<256x140xf32> -> vector<256x140xf32>
    %29 = vector.extract_strided_slice %28 {offsets = [0, 0], sizes = [224, 140], strides = [1, 1]} : vector<256x140xf32> to vector<224x140xf32>
    %c1_21 = arith.constant 1 : index
    %c0_22 = arith.constant 0 : index
    %c0_23 = arith.constant 0 : index
    %30 = vector.load %arg3[%c1_21, %c0_22, %c0_23] : memref<5x96x140xbf16, #tpu.memory_space<vmem>>, vector<1x96x140xbf16>
    %31 = vector.shape_cast %30 : vector<1x96x140xbf16> to vector<96x140xbf16>
    %cst_24 = arith.constant dense<0.000000e+00> : vector<256x140xf32>
    %32 = tpu.matmul %1, %31, %cst_24 {dimension_numbers = #tpu.dot_dimension_numbers<[1], [0], [0], [1], [0, 0, 1, 1], [], []>} : vector<256x96xbf16>, vector<96x140xbf16>, vector<256x140xf32> -> vector<256x140xf32>
    %33 = vector.extract_strided_slice %32 {offsets = [8, 0], sizes = [224, 140], strides = [1, 1]} : vector<256x140xf32> to vector<224x140xf32>
    %34 = arith.addf %29, %33 : vector<224x140xf32>
    %c2_25 = arith.constant 2 : index
    %c0_26 = arith.constant 0 : index
    %c0_27 = arith.constant 0 : index
    %35 = vector.load %arg3[%c2_25, %c0_26, %c0_27] : memref<5x96x140xbf16, #tpu.memory_space<vmem>>, vector<1x96x140xbf16>
    %36 = vector.shape_cast %35 : vector<1x96x140xbf16> to vector<96x140xbf16>
    %cst_28 = arith.constant dense<0.000000e+00> : vector<256x140xf32>
    %37 = tpu.matmul %1, %36, %cst_28 {dimension_numbers = #tpu.dot_dimension_numbers<[1], [0], [0], [1], [0, 0, 1, 1], [], []>} : vector<256x96xbf16>, vector<96x140xbf16>, vector<256x140xf32> -> vector<256x140xf32>
    %38 = vector.extract_strided_slice %37 {offsets = [16, 0], sizes = [224, 140], strides = [1, 1]} : vector<256x140xf32> to vector<224x140xf32>
    %39 = arith.addf %34, %38 : vector<224x140xf32>
    %c3_29 = arith.constant 3 : index
    %c0_30 = arith.constant 0 : index
    %c0_31 = arith.constant 0 : index
    %40 = vector.load %arg3[%c3_29, %c0_30, %c0_31] : memref<5x96x140xbf16, #tpu.memory_space<vmem>>, vector<1x96x140xbf16>
    %41 = vector.shape_cast %40 : vector<1x96x140xbf16> to vector<96x140xbf16>
    %cst_32 = arith.constant dense<0.000000e+00> : vector<256x140xf32>
    %42 = tpu.matmul %1, %41, %cst_32 {dimension_numbers = #tpu.dot_dimension_numbers<[1], [0], [0], [1], [0, 0, 1, 1], [], []>} : vector<256x96xbf16>, vector<96x140xbf16>, vector<256x140xf32> -> vector<256x140xf32>
    %43 = vector.extract_strided_slice %42 {offsets = [24, 0], sizes = [224, 140], strides = [1, 1]} : vector<256x140xf32> to vector<224x140xf32>
    %44 = arith.addf %39, %43 : vector<224x140xf32>
    %c4_33 = arith.constant 4 : index
    %c0_34 = arith.constant 0 : index
    %c0_35 = arith.constant 0 : index
    %45 = vector.load %arg3[%c4_33, %c0_34, %c0_35] : memref<5x96x140xbf16, #tpu.memory_space<vmem>>, vector<1x96x140xbf16>
    %46 = vector.shape_cast %45 : vector<1x96x140xbf16> to vector<96x140xbf16>
    %cst_36 = arith.constant dense<0.000000e+00> : vector<256x140xf32>
    %47 = tpu.matmul %1, %46, %cst_36 {dimension_numbers = #tpu.dot_dimension_numbers<[1], [0], [0], [1], [0, 0, 1, 1], [], []>} : vector<256x96xbf16>, vector<96x140xbf16>, vector<256x140xf32> -> vector<256x140xf32>
    %48 = vector.extract_strided_slice %47 {offsets = [32, 0], sizes = [224, 140], strides = [1, 1]} : vector<256x140xf32> to vector<224x140xf32>
    %49 = arith.addf %44, %48 : vector<224x140xf32>
    %50 = arith.maximumf %25, %49 : vector<224x140xf32>
    %c0_37 = arith.constant 0 : index
    %c0_38 = arith.constant 0 : index
    %51 = vector.load %arg4[%c0_37, %c0_38] : memref<1x140xf32, #tpu.memory_space<vmem>>, vector<1x140xf32>
    %52 = vector.broadcast %51 : vector<1x140xf32> to vector<224x140xf32>
    %53 = arith.addf %50, %52 : vector<224x140xf32>
    %54 = vector.shape_cast %53 : vector<224x140xf32> to vector<14x2x8x140xf32>
    %55 = vector.extract_strided_slice %54 {offsets = [0, 0, 0, 0], sizes = [14, 1, 8, 140], strides = [1, 1, 1, 1]} : vector<14x2x8x140xf32> to vector<14x1x8x140xf32>
    %56 = vector.shape_cast %55 : vector<14x1x8x140xf32> to vector<14x8x140xf32>
    %57 = vector.extract_strided_slice %54 {offsets = [0, 1, 0, 0], sizes = [14, 1, 8, 140], strides = [1, 1, 1, 1]} : vector<14x2x8x140xf32> to vector<14x1x8x140xf32>
    %58 = vector.shape_cast %57 : vector<14x1x8x140xf32> to vector<14x8x140xf32>
    %59 = arith.maximumf %56, %58 : vector<14x8x140xf32>
    %cst_39 = arith.constant 0.000000e+00 : f32
    %60 = vector.broadcast %cst_39 : f32 to vector<14x8x140xf32>
    %61 = arith.maximumf %59, %60 : vector<14x8x140xf32>
    %62 = arith.truncf %61 : vector<14x8x140xf32> to vector<14x8x140xbf16>
    %63 = vector.shape_cast %62 : vector<14x8x140xbf16> to vector<112x140xbf16>
    %c0_40 = arith.constant 0 : index
    %c0_41 = arith.constant 0 : index
    %c0_42 = arith.constant 0 : index
    %64 = vector.load %arg5[%c0_40, %c0_41, %c0_42] : memref<5x140x100xbf16, #tpu.memory_space<vmem>>, vector<1x140x100xbf16>
    %65 = vector.shape_cast %64 : vector<1x140x100xbf16> to vector<140x100xbf16>
    %cst_43 = arith.constant dense<0.000000e+00> : vector<112x100xf32>
    %66 = tpu.matmul %63, %65, %cst_43 {dimension_numbers = #tpu.dot_dimension_numbers<[1], [0], [0], [1], [0, 0, 1, 1], [], []>} : vector<112x140xbf16>, vector<140x100xbf16>, vector<112x100xf32> -> vector<112x100xf32>
    %67 = vector.extract_strided_slice %66 {offsets = [0, 0], sizes = [80, 100], strides = [1, 1]} : vector<112x100xf32> to vector<80x100xf32>
    %c1_44 = arith.constant 1 : index
    %c0_45 = arith.constant 0 : index
    %c0_46 = arith.constant 0 : index
    %68 = vector.load %arg5[%c1_44, %c0_45, %c0_46] : memref<5x140x100xbf16, #tpu.memory_space<vmem>>, vector<1x140x100xbf16>
    %69 = vector.shape_cast %68 : vector<1x140x100xbf16> to vector<140x100xbf16>
    %cst_47 = arith.constant dense<0.000000e+00> : vector<112x100xf32>
    %70 = tpu.matmul %63, %69, %cst_47 {dimension_numbers = #tpu.dot_dimension_numbers<[1], [0], [0], [1], [0, 0, 1, 1], [], []>} : vector<112x140xbf16>, vector<140x100xbf16>, vector<112x100xf32> -> vector<112x100xf32>
    %71 = vector.extract_strided_slice %70 {offsets = [8, 0], sizes = [80, 100], strides = [1, 1]} : vector<112x100xf32> to vector<80x100xf32>
    %72 = arith.addf %67, %71 : vector<80x100xf32>
    %c2_48 = arith.constant 2 : index
    %c0_49 = arith.constant 0 : index
    %c0_50 = arith.constant 0 : index
    %73 = vector.load %arg5[%c2_48, %c0_49, %c0_50] : memref<5x140x100xbf16, #tpu.memory_space<vmem>>, vector<1x140x100xbf16>
    %74 = vector.shape_cast %73 : vector<1x140x100xbf16> to vector<140x100xbf16>
    %cst_51 = arith.constant dense<0.000000e+00> : vector<112x100xf32>
    %75 = tpu.matmul %63, %74, %cst_51 {dimension_numbers = #tpu.dot_dimension_numbers<[1], [0], [0], [1], [0, 0, 1, 1], [], []>} : vector<112x140xbf16>, vector<140x100xbf16>, vector<112x100xf32> -> vector<112x100xf32>
    %76 = vector.extract_strided_slice %75 {offsets = [16, 0], sizes = [80, 100], strides = [1, 1]} : vector<112x100xf32> to vector<80x100xf32>
    %77 = arith.addf %72, %76 : vector<80x100xf32>
    %c3_52 = arith.constant 3 : index
    %c0_53 = arith.constant 0 : index
    %c0_54 = arith.constant 0 : index
    %78 = vector.load %arg5[%c3_52, %c0_53, %c0_54] : memref<5x140x100xbf16, #tpu.memory_space<vmem>>, vector<1x140x100xbf16>
    %79 = vector.shape_cast %78 : vector<1x140x100xbf16> to vector<140x100xbf16>
    %cst_55 = arith.constant dense<0.000000e+00> : vector<112x100xf32>
    %80 = tpu.matmul %63, %79, %cst_55 {dimension_numbers = #tpu.dot_dimension_numbers<[1], [0], [0], [1], [0, 0, 1, 1], [], []>} : vector<112x140xbf16>, vector<140x100xbf16>, vector<112x100xf32> -> vector<112x100xf32>
    %81 = vector.extract_strided_slice %80 {offsets = [24, 0], sizes = [80, 100], strides = [1, 1]} : vector<112x100xf32> to vector<80x100xf32>
    %82 = arith.addf %77, %81 : vector<80x100xf32>
    %c4_56 = arith.constant 4 : index
    %c0_57 = arith.constant 0 : index
    %c0_58 = arith.constant 0 : index
    %83 = vector.load %arg5[%c4_56, %c0_57, %c0_58] : memref<5x140x100xbf16, #tpu.memory_space<vmem>>, vector<1x140x100xbf16>
    %84 = vector.shape_cast %83 : vector<1x140x100xbf16> to vector<140x100xbf16>
    %cst_59 = arith.constant dense<0.000000e+00> : vector<112x100xf32>
    %85 = tpu.matmul %63, %84, %cst_59 {dimension_numbers = #tpu.dot_dimension_numbers<[1], [0], [0], [1], [0, 0, 1, 1], [], []>} : vector<112x140xbf16>, vector<140x100xbf16>, vector<112x100xf32> -> vector<112x100xf32>
    %86 = vector.extract_strided_slice %85 {offsets = [32, 0], sizes = [80, 100], strides = [1, 1]} : vector<112x100xf32> to vector<80x100xf32>
    %87 = arith.addf %82, %86 : vector<80x100xf32>
    %c0_60 = arith.constant 0 : index
    %c0_61 = arith.constant 0 : index
    %c0_62 = arith.constant 0 : index
    %88 = vector.load %arg6[%c0_60, %c0_61, %c0_62] : memref<5x140x100xbf16, #tpu.memory_space<vmem>>, vector<1x140x100xbf16>
    %89 = vector.shape_cast %88 : vector<1x140x100xbf16> to vector<140x100xbf16>
    %cst_63 = arith.constant dense<0.000000e+00> : vector<112x100xf32>
    %90 = tpu.matmul %63, %89, %cst_63 {dimension_numbers = #tpu.dot_dimension_numbers<[1], [0], [0], [1], [0, 0, 1, 1], [], []>} : vector<112x140xbf16>, vector<140x100xbf16>, vector<112x100xf32> -> vector<112x100xf32>
    %91 = vector.extract_strided_slice %90 {offsets = [0, 0], sizes = [80, 100], strides = [1, 1]} : vector<112x100xf32> to vector<80x100xf32>
    %c1_64 = arith.constant 1 : index
    %c0_65 = arith.constant 0 : index
    %c0_66 = arith.constant 0 : index
    %92 = vector.load %arg6[%c1_64, %c0_65, %c0_66] : memref<5x140x100xbf16, #tpu.memory_space<vmem>>, vector<1x140x100xbf16>
    %93 = vector.shape_cast %92 : vector<1x140x100xbf16> to vector<140x100xbf16>
    %cst_67 = arith.constant dense<0.000000e+00> : vector<112x100xf32>
    %94 = tpu.matmul %63, %93, %cst_67 {dimension_numbers = #tpu.dot_dimension_numbers<[1], [0], [0], [1], [0, 0, 1, 1], [], []>} : vector<112x140xbf16>, vector<140x100xbf16>, vector<112x100xf32> -> vector<112x100xf32>
    %95 = vector.extract_strided_slice %94 {offsets = [8, 0], sizes = [80, 100], strides = [1, 1]} : vector<112x100xf32> to vector<80x100xf32>
    %96 = arith.addf %91, %95 : vector<80x100xf32>
    %c2_68 = arith.constant 2 : index
    %c0_69 = arith.constant 0 : index
    %c0_70 = arith.constant 0 : index
    %97 = vector.load %arg6[%c2_68, %c0_69, %c0_70] : memref<5x140x100xbf16, #tpu.memory_space<vmem>>, vector<1x140x100xbf16>
    %98 = vector.shape_cast %97 : vector<1x140x100xbf16> to vector<140x100xbf16>
    %cst_71 = arith.constant dense<0.000000e+00> : vector<112x100xf32>
    %99 = tpu.matmul %63, %98, %cst_71 {dimension_numbers = #tpu.dot_dimension_numbers<[1], [0], [0], [1], [0, 0, 1, 1], [], []>} : vector<112x140xbf16>, vector<140x100xbf16>, vector<112x100xf32> -> vector<112x100xf32>
    %100 = vector.extract_strided_slice %99 {offsets = [16, 0], sizes = [80, 100], strides = [1, 1]} : vector<112x100xf32> to vector<80x100xf32>
    %101 = arith.addf %96, %100 : vector<80x100xf32>
    %c3_72 = arith.constant 3 : index
    %c0_73 = arith.constant 0 : index
    %c0_74 = arith.constant 0 : index
    %102 = vector.load %arg6[%c3_72, %c0_73, %c0_74] : memref<5x140x100xbf16, #tpu.memory_space<vmem>>, vector<1x140x100xbf16>
    %103 = vector.shape_cast %102 : vector<1x140x100xbf16> to vector<140x100xbf16>
    %cst_75 = arith.constant dense<0.000000e+00> : vector<112x100xf32>
    %104 = tpu.matmul %63, %103, %cst_75 {dimension_numbers = #tpu.dot_dimension_numbers<[1], [0], [0], [1], [0, 0, 1, 1], [], []>} : vector<112x140xbf16>, vector<140x100xbf16>, vector<112x100xf32> -> vector<112x100xf32>
    %105 = vector.extract_strided_slice %104 {offsets = [24, 0], sizes = [80, 100], strides = [1, 1]} : vector<112x100xf32> to vector<80x100xf32>
    %106 = arith.addf %101, %105 : vector<80x100xf32>
    %c4_76 = arith.constant 4 : index
    %c0_77 = arith.constant 0 : index
    %c0_78 = arith.constant 0 : index
    %107 = vector.load %arg6[%c4_76, %c0_77, %c0_78] : memref<5x140x100xbf16, #tpu.memory_space<vmem>>, vector<1x140x100xbf16>
    %108 = vector.shape_cast %107 : vector<1x140x100xbf16> to vector<140x100xbf16>
    %cst_79 = arith.constant dense<0.000000e+00> : vector<112x100xf32>
    %109 = tpu.matmul %63, %108, %cst_79 {dimension_numbers = #tpu.dot_dimension_numbers<[1], [0], [0], [1], [0, 0, 1, 1], [], []>} : vector<112x140xbf16>, vector<140x100xbf16>, vector<112x100xf32> -> vector<112x100xf32>
    %110 = vector.extract_strided_slice %109 {offsets = [32, 0], sizes = [80, 100], strides = [1, 1]} : vector<112x100xf32> to vector<80x100xf32>
    %111 = arith.addf %106, %110 : vector<80x100xf32>
    %112 = arith.maximumf %87, %111 : vector<80x100xf32>
    %c0_80 = arith.constant 0 : index
    %c0_81 = arith.constant 0 : index
    %113 = vector.load %arg7[%c0_80, %c0_81] : memref<1x100xf32, #tpu.memory_space<vmem>>, vector<1x100xf32>
    %114 = vector.broadcast %113 : vector<1x100xf32> to vector<80x100xf32>
    %115 = arith.addf %112, %114 : vector<80x100xf32>
    %116 = vector.shape_cast %115 : vector<80x100xf32> to vector<5x2x8x100xf32>
    %117 = vector.extract_strided_slice %116 {offsets = [0, 0, 0, 0], sizes = [5, 1, 8, 100], strides = [1, 1, 1, 1]} : vector<5x2x8x100xf32> to vector<5x1x8x100xf32>
    %118 = vector.shape_cast %117 : vector<5x1x8x100xf32> to vector<5x8x100xf32>
    %119 = vector.extract_strided_slice %116 {offsets = [0, 1, 0, 0], sizes = [5, 1, 8, 100], strides = [1, 1, 1, 1]} : vector<5x2x8x100xf32> to vector<5x1x8x100xf32>
    %120 = vector.shape_cast %119 : vector<5x1x8x100xf32> to vector<5x8x100xf32>
    %121 = arith.maximumf %118, %120 : vector<5x8x100xf32>
    %cst_82 = arith.constant 0.000000e+00 : f32
    %122 = vector.broadcast %cst_82 : f32 to vector<5x8x100xf32>
    %123 = arith.maximumf %121, %122 : vector<5x8x100xf32>
    %124 = arith.truncf %123 : vector<5x8x100xf32> to vector<5x8x100xbf16>
    %c0_83 = arith.constant 0 : index
    %c0_84 = arith.constant 0 : index
    %125 = vector.load %arg9[%c0_83, %c0_84] : memref<1x50xf32, #tpu.memory_space<vmem>>, vector<1x50xf32>
    %126 = vector.extract_strided_slice %124 {offsets = [0, 0, 0], sizes = [1, 8, 100], strides = [1, 1, 1]} : vector<5x8x100xbf16> to vector<1x8x100xbf16>
    %127 = vector.shape_cast %126 : vector<1x8x100xbf16> to vector<8x100xbf16>
    %c0_85 = arith.constant 0 : index
    %c0_86 = arith.constant 0 : index
    %c0_87 = arith.constant 0 : index
    %128 = vector.load %arg8[%c0_85, %c0_86, %c0_87] : memref<5x100x50xbf16, #tpu.memory_space<vmem>>, vector<1x100x50xbf16>
    %129 = vector.shape_cast %128 : vector<1x100x50xbf16> to vector<100x50xbf16>
    %cst_88 = arith.constant dense<0.000000e+00> : vector<8x50xf32>
    %130 = tpu.matmul %127, %129, %cst_88 {dimension_numbers = #tpu.dot_dimension_numbers<[1], [0], [0], [1], [0, 0, 1, 1], [], []>} : vector<8x100xbf16>, vector<100x50xbf16>, vector<8x50xf32> -> vector<8x50xf32>
    %131 = vector.broadcast %125 : vector<1x50xf32> to vector<8x50xf32>
    %132 = arith.addf %131, %130 : vector<8x50xf32>
    %133 = vector.extract_strided_slice %124 {offsets = [1, 0, 0], sizes = [1, 8, 100], strides = [1, 1, 1]} : vector<5x8x100xbf16> to vector<1x8x100xbf16>
    %134 = vector.shape_cast %133 : vector<1x8x100xbf16> to vector<8x100xbf16>
    %c1_89 = arith.constant 1 : index
    %c0_90 = arith.constant 0 : index
    %c0_91 = arith.constant 0 : index
    %135 = vector.load %arg8[%c1_89, %c0_90, %c0_91] : memref<5x100x50xbf16, #tpu.memory_space<vmem>>, vector<1x100x50xbf16>
    %136 = vector.shape_cast %135 : vector<1x100x50xbf16> to vector<100x50xbf16>
    %cst_92 = arith.constant dense<0.000000e+00> : vector<8x50xf32>
    %137 = tpu.matmul %134, %136, %cst_92 {dimension_numbers = #tpu.dot_dimension_numbers<[1], [0], [0], [1], [0, 0, 1, 1], [], []>} : vector<8x100xbf16>, vector<100x50xbf16>, vector<8x50xf32> -> vector<8x50xf32>
    %138 = arith.addf %132, %137 : vector<8x50xf32>
    %139 = vector.extract_strided_slice %124 {offsets = [2, 0, 0], sizes = [1, 8, 100], strides = [1, 1, 1]} : vector<5x8x100xbf16> to vector<1x8x100xbf16>
    %140 = vector.shape_cast %139 : vector<1x8x100xbf16> to vector<8x100xbf16>
    %c2_93 = arith.constant 2 : index
    %c0_94 = arith.constant 0 : index
    %c0_95 = arith.constant 0 : index
    %141 = vector.load %arg8[%c2_93, %c0_94, %c0_95] : memref<5x100x50xbf16, #tpu.memory_space<vmem>>, vector<1x100x50xbf16>
    %142 = vector.shape_cast %141 : vector<1x100x50xbf16> to vector<100x50xbf16>
    %cst_96 = arith.constant dense<0.000000e+00> : vector<8x50xf32>
    %143 = tpu.matmul %140, %142, %cst_96 {dimension_numbers = #tpu.dot_dimension_numbers<[1], [0], [0], [1], [0, 0, 1, 1], [], []>} : vector<8x100xbf16>, vector<100x50xbf16>, vector<8x50xf32> -> vector<8x50xf32>
    %144 = arith.addf %138, %143 : vector<8x50xf32>
    %145 = vector.extract_strided_slice %124 {offsets = [3, 0, 0], sizes = [1, 8, 100], strides = [1, 1, 1]} : vector<5x8x100xbf16> to vector<1x8x100xbf16>
    %146 = vector.shape_cast %145 : vector<1x8x100xbf16> to vector<8x100xbf16>
    %c3_97 = arith.constant 3 : index
    %c0_98 = arith.constant 0 : index
    %c0_99 = arith.constant 0 : index
    %147 = vector.load %arg8[%c3_97, %c0_98, %c0_99] : memref<5x100x50xbf16, #tpu.memory_space<vmem>>, vector<1x100x50xbf16>
    %148 = vector.shape_cast %147 : vector<1x100x50xbf16> to vector<100x50xbf16>
    %cst_100 = arith.constant dense<0.000000e+00> : vector<8x50xf32>
    %149 = tpu.matmul %146, %148, %cst_100 {dimension_numbers = #tpu.dot_dimension_numbers<[1], [0], [0], [1], [0, 0, 1, 1], [], []>} : vector<8x100xbf16>, vector<100x50xbf16>, vector<8x50xf32> -> vector<8x50xf32>
    %150 = arith.addf %144, %149 : vector<8x50xf32>
    %151 = vector.extract_strided_slice %124 {offsets = [4, 0, 0], sizes = [1, 8, 100], strides = [1, 1, 1]} : vector<5x8x100xbf16> to vector<1x8x100xbf16>
    %152 = vector.shape_cast %151 : vector<1x8x100xbf16> to vector<8x100xbf16>
    %c4_101 = arith.constant 4 : index
    %c0_102 = arith.constant 0 : index
    %c0_103 = arith.constant 0 : index
    %153 = vector.load %arg8[%c4_101, %c0_102, %c0_103] : memref<5x100x50xbf16, #tpu.memory_space<vmem>>, vector<1x100x50xbf16>
    %154 = vector.shape_cast %153 : vector<1x100x50xbf16> to vector<100x50xbf16>
    %cst_104 = arith.constant dense<0.000000e+00> : vector<8x50xf32>
    %155 = tpu.matmul %152, %154, %cst_104 {dimension_numbers = #tpu.dot_dimension_numbers<[1], [0], [0], [1], [0, 0, 1, 1], [], []>} : vector<8x100xbf16>, vector<100x50xbf16>, vector<8x50xf32> -> vector<8x50xf32>
    %156 = arith.addf %150, %155 : vector<8x50xf32>
    %cst_105 = arith.constant 0.000000e+00 : f32
    %157 = vector.broadcast %cst_105 : f32 to vector<8x50xf32>
    %158 = arith.maximumf %156, %157 : vector<8x50xf32>
    %159 = arith.truncf %158 : vector<8x50xf32> to vector<8x50xbf16>
    %c0_106 = arith.constant 0 : index
    %c0_107 = arith.constant 0 : index
    %160 = vector.load %arg10[%c0_106, %c0_107] : memref<50x43xbf16, #tpu.memory_space<vmem>>, vector<50x43xbf16>
    %cst_108 = arith.constant dense<0.000000e+00> : vector<8x43xf32>
    %161 = tpu.matmul %159, %160, %cst_108 {dimension_numbers = #tpu.dot_dimension_numbers<[1], [0], [0], [1], [0, 0, 1, 1], [], []>} : vector<8x50xbf16>, vector<50x43xbf16>, vector<8x43xf32> -> vector<8x43xf32>
    %c0_109 = arith.constant 0 : index
    %c0_110 = arith.constant 0 : index
    %162 = vector.load %arg11[%c0_109, %c0_110] : memref<1x43xf32, #tpu.memory_space<vmem>>, vector<1x43xf32>
    %163 = vector.broadcast %162 : vector<1x43xf32> to vector<8x43xf32>
    %164 = arith.addf %161, %163 : vector<8x43xf32>
    %cst_111 = arith.constant dense<0xFF800000> : vector<8xf32>
    %165 = vector.multi_reduction <maximumf>, %164, %cst_111 [1] : vector<8x43xf32> to vector<8xf32>
    %166 = vector.shape_cast %165 : vector<8xf32> to vector<8x1xf32>
    %167 = vector.broadcast %166 : vector<8x1xf32> to vector<8x43xf32>
    %168 = arith.subf %164, %167 : vector<8x43xf32>
    %169 = math.exp %168 : vector<8x43xf32>
    %cst_112 = arith.constant dense<0.000000e+00> : vector<8xf32>
    %170 = vector.multi_reduction <add>, %169, %cst_112 [1] : vector<8x43xf32> to vector<8xf32>
    %171 = vector.shape_cast %170 : vector<8xf32> to vector<8x1xf32>
    %172 = math.log %171 : vector<8x1xf32>
    %173 = vector.broadcast %172 : vector<8x1xf32> to vector<8x43xf32>
    %174 = arith.subf %168, %173 : vector<8x43xf32>
    %c0_113 = arith.constant 0 : index
    %c0_114 = arith.constant 0 : index
    %175 = vector.load %arg12[%c0_113, %c0_114] : memref<8x43xf32, #tpu.memory_space<vmem>>, vector<8x43xf32>
    tpu.vector_store %arg12[%c0_113, %c0_114], %174 {strides = array<i32>} : memref<8x43xf32, #tpu.memory_space<vmem>>, vector<8x43xf32>,
    return
  }
  func.func @transform_0(%arg0: i32) -> (i32, i32, i32) {
    %c0_i32 = arith.constant 0 : i32
    %c0_i32_0 = arith.constant 0 : i32
    %c0_i32_1 = arith.constant 0 : i32
    return %c0_i32, %arg0, %c0_i32_0 : i32, i32, i32
  }
  func.func @transform_1(%arg0: i32) -> (i32, i32, i32) {
    %c0_i32 = arith.constant 0 : i32
    %c0_i32_0 = arith.constant 0 : i32
    %c0_i32_1 = arith.constant 0 : i32
    %c0_i32_2 = arith.constant 0 : i32
    return %c0_i32, %c0_i32_0, %c0_i32_1 : i32, i32, i32
  }
  func.func @transform_2(%arg0: i32) -> (i32, i32, i32) {
    %c0_i32 = arith.constant 0 : i32
    %c0_i32_0 = arith.constant 0 : i32
    %c0_i32_1 = arith.constant 0 : i32
    %c0_i32_2 = arith.constant 0 : i32
    return %c0_i32, %c0_i32_0, %c0_i32_1 : i32, i32, i32
  }
  func.func @transform_3(%arg0: i32) -> (i32, i32) {
    %c0_i32 = arith.constant 0 : i32
    %c0_i32_0 = arith.constant 0 : i32
    %c0_i32_1 = arith.constant 0 : i32
    return %c0_i32, %c0_i32_0 : i32, i32
  }
  func.func @transform_4(%arg0: i32) -> (i32, i32, i32) {
    %c0_i32 = arith.constant 0 : i32
    %c0_i32_0 = arith.constant 0 : i32
    %c0_i32_1 = arith.constant 0 : i32
    %c0_i32_2 = arith.constant 0 : i32
    return %c0_i32, %c0_i32_0, %c0_i32_1 : i32, i32, i32
  }
  func.func @transform_5(%arg0: i32) -> (i32, i32, i32) {
    %c0_i32 = arith.constant 0 : i32
    %c0_i32_0 = arith.constant 0 : i32
    %c0_i32_1 = arith.constant 0 : i32
    %c0_i32_2 = arith.constant 0 : i32
    return %c0_i32, %c0_i32_0, %c0_i32_1 : i32, i32, i32
  }
  func.func @transform_6(%arg0: i32) -> (i32, i32) {
    %c0_i32 = arith.constant 0 : i32
    %c0_i32_0 = arith.constant 0 : i32
    %c0_i32_1 = arith.constant 0 : i32
    return %c0_i32, %c0_i32_0 : i32, i32
  }
  func.func @transform_7(%arg0: i32) -> (i32, i32, i32) {
    %c0_i32 = arith.constant 0 : i32
    %c0_i32_0 = arith.constant 0 : i32
    %c0_i32_1 = arith.constant 0 : i32
    %c0_i32_2 = arith.constant 0 : i32
    return %c0_i32, %c0_i32_0, %c0_i32_1 : i32, i32, i32
  }
  func.func @transform_8(%arg0: i32) -> (i32, i32) {
    %c0_i32 = arith.constant 0 : i32
    %c0_i32_0 = arith.constant 0 : i32
    %c0_i32_1 = arith.constant 0 : i32
    return %c0_i32, %c0_i32_0 : i32, i32
  }
  func.func @transform_9(%arg0: i32) -> (i32, i32) {
    %c0_i32 = arith.constant 0 : i32
    %c0_i32_0 = arith.constant 0 : i32
    %c0_i32_1 = arith.constant 0 : i32
    return %c0_i32, %c0_i32_0 : i32, i32
  }
  func.func @transform_10(%arg0: i32) -> (i32, i32) {
    %c0_i32 = arith.constant 0 : i32
    %c0_i32_0 = arith.constant 0 : i32
    %c0_i32_1 = arith.constant 0 : i32
    return %c0_i32, %c0_i32_0 : i32, i32
  }
  func.func @transform_11(%arg0: i32) -> (i32, i32) {
    %c0_i32 = arith.constant 0 : i32
    %c0_i32_0 = arith.constant 0 : i32
    return %arg0, %c0_i32 : i32, i32
  }
}

</mosaic_0001>

<llo_original>
// kernel: tile.13
$region0: #{tile.13}
  #allocation0 [shape = 's32[1]{0}', space=sflag, size = 0x4, scoped, tag = 'scoped memory for tile.13']
  %s0 = inlined_call_operand.vmem [shape: f32[10], index: 0, kind: input, shape index: {}]
  %s1 = inlined_call_operand.vmem [shape: f32[14,10], index: 1, kind: output, shape index: {}]
  // Predicated region
  $region2: #{tile.13} parent=0 // pred_check
    _
  $region3: #{tile.13} parent=0 // pred_check_branch
    %3 = sbr.rel (0) target = $region5
  $region4: #{tile.13} parent=0 // pred_region
    _
  $region5: #{tile.13} parent=0 // pred_fallthru
    _
  %v4 = vld [vmem:[%s0] ss:$0 sm:$0xff]
  %5 = vst [vmem:[%s1] sm:$0xff] %v4
  %s6 = scalar_lea.vmem %s1, 8
  %7 = vst [vmem:[%s6] sm:$0xff] %v4

// kernel: tile.14
$region0: #{tile.14}
  %s0 = inlined_call_operand.vmem [shape: f32[14,10], index: 0, kind: input, shape index: {}]
  %s1 = inlined_call_operand.vmem [shape: f32[1,140], index: 1, kind: output, shape index: {}]
  $region1: #{tile.14} parent=0
    #allocation0 [shape = 'u8[8192]{0}', space=vmem, size = 0x2000, scoped, tag = 'scoped mem for output reshape']
    %v2 = vld [vmem:[%s0] sm:$0x1]
    %vm3 = vcmask 80896
    %4 = vst.msk [vmem:[#allocation0] sm:$0x1] %vm3, %v2
    %s5 = scalar_lea.vmem %s0, 12
    %v6 = vld [vmem:[%s5] sm:$0x1]
    %s7 = scalar_lea.vmem %s0, 12
    %v8 = vld [vmem:[%s7] sm:$0x1]
    %vm9 = vcmask 64512
    %v10 = vsel %vm9, %v8, %v6
    %11 = vrot.lane.b32.xlu0 %v10, 120
    %v12 = vpop.permute.xlu0 %11
    %vm13 = vcmask 15360
    %s14 = scalar_lea.vmem [#allocation0], 8
    %15 = vst.msk [vmem:[%s14] sm:$0x1] %vm13, %v12
    %vm16 = vcmask 1048512
    %17 = vst.msk [vmem:[#allocation0] sm:$0x1] %vm16, %v12
    %s18 = scalar_lea.vmem %s0, 11
    %v19 = vld [vmem:[%s18] sm:$0x1]
    %20 = vrot.lane.b32.xlu0 %v19, 110
    %v21 = vpop.permute.xlu0 %20
    %vm22 = vcmask 982896
    %23 = vst.msk [vmem:[#allocation0] sm:$0x1] %vm22, %v21
    %s24 = scalar_lea.vmem %s0, 10
    %v25 = vld [vmem:[%s24] sm:$0x1]
    %26 = vrot.lane.b32.xlu0 %v25, 100
    %v27 = vpop.permute.xlu0 %26
    %vm28 = vcmask 900896
    %29 = vst.msk [vmem:[#allocation0] sm:$0x1] %vm28, %v27
    %s30 = scalar_lea.vmem %s0, 9
    %v31 = vld [vmem:[%s30] sm:$0x1]
    %32 = vrot.lane.b32.xlu0 %v31, 90
    %v33 = vpop.permute.xlu0 %32
    %vm34 = vcmask 818896
    %35 = vst.msk [vmem:[#allocation0] sm:$0x1] %vm34, %v33
    %s36 = scalar_lea.vmem %s0, 8
    %v37 = vld [vmem:[%s36] sm:$0x1]
    %38 = vrot.lane.b32.xlu0 %v37, 80
    %v39 = vpop.permute.xlu0 %38
    %vm40 = vcmask 736896
    %41 = vst.msk [vmem:[#allocation0] sm:$0x1] %vm40, %v39
    %s42 = scalar_lea.vmem %s0, 7
    %v43 = vld [vmem:[%s42] sm:$0x1]
    %44 = vrot.lane.b32.xlu0 %v43, 70
    %v45 = vpop.permute.xlu0 %44
    %vm46 = vcmask 654896
    %47 = vst.msk [vmem:[#allocation0] sm:$0x1] %vm46, %v45
    %s48 = scalar_lea.vmem %s0, 6
    %v49 = vld [vmem:[%s48] sm:$0x1]
    %50 = vrot.lane.b32.xlu0 %v49, 60
    %v51 = vpop.permute.xlu0 %50
    %vm52 = vcmask 572896
    %53 = vst.msk [vmem:[#allocation0] sm:$0x1] %vm52, %v51
    %s54 = scalar_lea.vmem %s0, 5
    %v55 = vld [vmem:[%s54] sm:$0x1]
    %56 = vrot.lane.b32.xlu0 %v55, 50
    %v57 = vpop.permute.xlu0 %56
    %vm58 = vcmask 490896
    %59 = vst.msk [vmem:[#allocation0] sm:$0x1] %vm58, %v57
    %s60 = scalar_lea.vmem %s0, 4
    %v61 = vld [vmem:[%s60] sm:$0x1]
    %62 = vrot.lane.b32.xlu0 %v61, 40
    %v63 = vpop.permute.xlu0 %62
    %vm64 = vcmask 408896
    %65 = vst.msk [vmem:[#allocation0] sm:$0x1] %vm64, %v63
    %s66 = scalar_lea.vmem %s0, 3
    %v67 = vld [vmem:[%s66] sm:$0x1]
    %68 = vrot.lane.b32.xlu0 %v67, 30
    %v69 = vpop.permute.xlu0 %68
    %vm70 = vcmask 326896
    %71 = vst.msk [vmem:[#allocation0] sm:$0x1] %vm70, %v69
    %s72 = scalar_lea.vmem %s0, 2
    %v73 = vld [vmem:[%s72] sm:$0x1]
    %74 = vrot.lane.b32.xlu0 %v73, 20
    %v75 = vpop.permute.xlu0 %74
    %vm76 = vcmask 244896
    %77 = vst.msk [vmem:[#allocation0] sm:$0x1] %vm76, %v75
    %s78 = scalar_lea.vmem %s0, 1
    %v79 = vld [vmem:[%s78] sm:$0x1]
    %80 = vrot.lane.b32.xlu0 %v79, 10
    %v81 = vpop.permute.xlu0 %80
    %vm82 = vcmask 162896
    %83 = vst.msk [vmem:[#allocation0] sm:$0x1] %vm82, %v81
    %s84 = scalar_lea.vmem %s0, 13
    %v85 = vld [vmem:[%s84] sm:$0x1]
    %86 = vrot.lane.b32.xlu0 %v85, 2
    %v87 = vpop.permute.xlu0 %86
    %vm88 = vcmask 97296
    %s89 = scalar_lea.vmem [#allocation0], 8
    %90 = vst.msk [vmem:[%s89] sm:$0x1] %vm88, %v87
    %s92 = sshll.u32 1, 1
    %s93 = ssub.s32 %s92, 1
    %v95 = vld [vmem:[#allocation0] sm:%s93]
    %s96 = sshll.u32 1, 1
    %s97 = ssub.s32 %s96, 1
    %98 = vst [vmem:[%s1] sm:%s97] %v95
    %s99 = scalar_lea.vmem [#allocation0], 8
    %v100 = vld [vmem:[%s99] sm:%s93]
    %s101 = sshll.u32 1, 1
    %s102 = ssub.s32 %s101, 1
    %s103 = scalar_lea.vmem %s1, 1
    %104 = vst [vmem:[%s103] sm:%s102] %v100

// kernel: tile.18
$region0: #{tile.18}
  #allocation0 [shape = 's32[1]{0}', space=sflag, size = 0x4, scoped, tag = 'scoped memory for tile.18']
  %s0 = inlined_call_operand.vmem [shape: f32[20], index: 0, kind: input, shape index: {}]
  %s1 = inlined_call_operand.vmem [shape: f32[5,20], index: 1, kind: output, shape index: {}]
  // Predicated region
  $region2: #{tile.18} parent=0 // pred_check
    _
  $region3: #{tile.18} parent=0 // pred_check_branch
    %3 = sbr.rel (0) target = $region5
  $region4: #{tile.18} parent=0 // pred_region
    _
  $region5: #{tile.18} parent=0 // pred_fallthru
    _
  %v4 = vld [vmem:[%s0] ss:$0 sm:$0xff]
  %5 = vst [vmem:[%s1] sm:$0xff] %v4

// kernel: tile.19
$region0: #{tile.19}
  %s0 = inlined_call_operand.vmem [shape: f32[5,20], index: 0, kind: input, shape index: {}]
  %s1 = inlined_call_operand.vmem [shape: f32[1,100], index: 1, kind: output, shape index: {}]
  $region1: #{tile.19} parent=0
    #allocation0 [shape = 'u8[4096]{0}', space=vmem, size = 0x1000, scoped, tag = 'scoped mem for output reshape']
    %v2 = vld [vmem:[%s0] sm:$0x1]
    %vm3 = vcmask 162816
    %4 = vst.msk [vmem:[#allocation0] sm:$0x1] %vm3, %v2
    %s5 = scalar_lea.vmem %s0, 4
    %v6 = vld [vmem:[%s5] sm:$0x1]
    %7 = vrot.lane.b32.xlu0 %v6, 80
    %v8 = vpop.permute.xlu0 %7
    %vm9 = vcmask 818816
    %10 = vst.msk [vmem:[#allocation0] sm:$0x1] %vm9, %v8
    %s11 = scalar_lea.vmem %s0, 3
    %v12 = vld [vmem:[%s11] sm:$0x1]
    %13 = vrot.lane.b32.xlu0 %v12, 60
    %v14 = vpop.permute.xlu0 %13
    %vm15 = vcmask 654816
    %16 = vst.msk [vmem:[#allocation0] sm:$0x1] %vm15, %v14
    %s17 = scalar_lea.vmem %s0, 2
    %v18 = vld [vmem:[%s17] sm:$0x1]
    %19 = vrot.lane.b32.xlu0 %v18, 40
    %v20 = vpop.permute.xlu0 %19
    %vm21 = vcmask 490816
    %22 = vst.msk [vmem:[#allocation0] sm:$0x1] %vm21, %v20
    %s23 = scalar_lea.vmem %s0, 1
    %v24 = vld [vmem:[%s23] sm:$0x1]
    %25 = vrot.lane.b32.xlu0 %v24, 20
    %v26 = vpop.permute.xlu0 %25
    %vm27 = vcmask 326816
    %28 = vst.msk [vmem:[#allocation0] sm:$0x1] %vm27, %v26
    %s30 = sshll.u32 1, 1
    %s31 = ssub.s32 %s30, 1
    %v33 = vld [vmem:[#allocation0] sm:%s31]
    %s34 = sshll.u32 1, 1
    %s35 = ssub.s32 %s34, 1
    %36 = vst [vmem:[%s1] sm:%s35] %v33

// kernel: net_forward.1
$region0: #{net_forward.1}
  #allocation0 [shape = 'u32[]', space=smem, size = 0x4, offset = 0x4, fixed_abs, tag = 'smem constant byte address 0x4 - core index']
  #allocation1 [shape = 'u32[144,128]{1,0:T(1,128)}', space=vmem, size = 0x12000, scoped, tag = 'internal scratch']
  %s0 = inlined_call_operand.vmem [shape: bf16[32,8,96], index: 0, kind: input, shape index: {}]
  %s1 = inlined_call_operand.vmem [shape: bf16[5,96,140], index: 1, kind: input, shape index: {}]
  %s2 = inlined_call_operand.vmem [shape: bf16[5,96,140], index: 2, kind: input, shape index: {}]
  %s3 = inlined_call_operand.vmem [shape: f32[1,140], index: 3, kind: input, shape index: {}]
  %s4 = inlined_call_operand.vmem [shape: bf16[5,140,100], index: 4, kind: input, shape index: {}]
  %s5 = inlined_call_operand.vmem [shape: bf16[5,140,100], index: 5, kind: input, shape index: {}]
  %s6 = inlined_call_operand.vmem [shape: f32[1,100], index: 6, kind: input, shape index: {}]
  %s7 = inlined_call_operand.vmem [shape: bf16[5,100,50], index: 7, kind: input, shape index: {}]
  %s8 = inlined_call_operand.vmem [shape: f32[1,50], index: 8, kind: input, shape index: {}]
  %s9 = inlined_call_operand.vmem [shape: bf16[50,43], index: 9, kind: input, shape index: {}]
  %s10 = inlined_call_operand.vmem [shape: f32[1,43], index: 10, kind: input, shape index: {}]
  %s11 = inlined_call_operand.vmem [shape: f32[8,43], index: 11, kind: output, shape index: {}]
  %s12 = sld [smem:[#allocation0]]
  $region54: #{net_forward.1} parent=0
    _
  %s14 = ssub.s32 1, %s12
  %s15 = scalar_select 0, %s14, %s12
  // Predicated region
  $region2: #{net_forward.1} parent=0 // pred_check
    _
  $region3: #{net_forward.1} parent=0 // pred_check_branch
    %17 = sbr.rel (0) target = $region5
  $region4: #{net_forward.1} parent=0 // pred_region
    _
  $region5: #{net_forward.1} parent=0 // pred_fallthru
    _
  // Predicated region
  $region6: #{net_forward.1} parent=0 // pred_check
    _
  $region7: #{net_forward.1} parent=0 // pred_check_branch
    %19 = sbr.rel (0) target = $region9
  $region8: #{net_forward.1} parent=0 // pred_region
    _
  $region9: #{net_forward.1} parent=0 // pred_fallthru
    _
  // Predicated region
  $region10: #{net_forward.1} parent=0 // pred_check
    _
  $region11: #{net_forward.1} parent=0 // pred_check_branch
    %21 = sbr.rel (0) target = $region13
  $region12: #{net_forward.1} parent=0 // pred_region
    _
  $region13: #{net_forward.1} parent=0 // pred_fallthru
    _
  // Predicated region
  $region14: #{net_forward.1} parent=0 // pred_check
    _
  $region15: #{net_forward.1} parent=0 // pred_check_branch
    %23 = sbr.rel (0) target = $region17
  $region16: #{net_forward.1} parent=0 // pred_region
    _
  $region17: #{net_forward.1} parent=0 // pred_fallthru
    _
  // Predicated region
  $region18: #{net_forward.1} parent=0 // pred_check
    _
  $region19: #{net_forward.1} parent=0 // pred_check_branch
    %25 = sbr.rel (0) target = $region21
  $region20: #{net_forward.1} parent=0 // pred_region
    _
  $region21: #{net_forward.1} parent=0 // pred_fallthru
    _
  // Predicated region
  $region22: #{net_forward.1} parent=0 // pred_check
    _
  $region23: #{net_forward.1} parent=0 // pred_check_branch
    %27 = sbr.rel (0) target = $region25
  $region24: #{net_forward.1} parent=0 // pred_region
    _
  $region25: #{net_forward.1} parent=0 // pred_fallthru
    _
  // Predicated region
  $region26: #{net_forward.1} parent=0 // pred_check
    _
  $region27: #{net_forward.1} parent=0 // pred_check_branch
    %29 = sbr.rel (0) target = $region29
  $region28: #{net_forward.1} parent=0 // pred_region
    _
  $region29: #{net_forward.1} parent=0 // pred_fallthru
    _
  // Predicated region
  $region30: #{net_forward.1} parent=0 // pred_check
    _
  $region31: #{net_forward.1} parent=0 // pred_check_branch
    %31 = sbr.rel (0) target = $region33
  $region32: #{net_forward.1} parent=0 // pred_region
    _
  $region33: #{net_forward.1} parent=0 // pred_fallthru
    _
  // Predicated region
  $region34: #{net_forward.1} parent=0 // pred_check
    _
  $region35: #{net_forward.1} parent=0 // pred_check_branch
    %33 = sbr.rel (0) target = $region37
  $region36: #{net_forward.1} parent=0 // pred_region
    _
  $region37: #{net_forward.1} parent=0 // pred_fallthru
    _
  // Predicated region
  $region38: #{net_forward.1} parent=0 // pred_check
    _
  $region39: #{net_forward.1} parent=0 // pred_check_branch
    %35 = sbr.rel (0) target = $region41
  $region40: #{net_forward.1} parent=0 // pred_region
    _
  $region41: #{net_forward.1} parent=0 // pred_fallthru
    _
  // Predicated region
  $region42: #{net_forward.1} parent=0 // pred_check
    _
  $region43: #{net_forward.1} parent=0 // pred_check_branch
    %37 = sbr.rel (0) target = $region45
  $region44: #{net_forward.1} parent=0 // pred_region
    _
  $region45: #{net_forward.1} parent=0 // pred_fallthru
    _
  %v39 = vld [vmem:[%s0] sm:$0xf]
  %v40 = vld [vmem:[%s0 + $0x4] sm:$0xf]
  %v41 = vld [vmem:[%s0 + $0x8] sm:$0xf]
  %v42 = vld [vmem:[%s0 + $0xc] sm:$0xf]
  %v43 = vld [vmem:[%s0 + $0x10] sm:$0xf]
  %v44 = vld [vmem:[%s0 + $0x14] sm:$0xf]
  %v45 = vld [vmem:[%s0 + $0x18] sm:$0xf]
  %v46 = vld [vmem:[%s0 + $0x1c] sm:$0xf]
  %v47 = vld [vmem:[%s0 + $0x20] sm:$0xf]
  %v48 = vld [vmem:[%s0 + $0x24] sm:$0xf]
  %v49 = vld [vmem:[%s0 + $0x28] sm:$0xf]
  %v50 = vld [vmem:[%s0 + $0x2c] sm:$0xf]
  %v51 = vld [vmem:[%s0 + $0x30] sm:$0xf]
  %v52 = vld [vmem:[%s0 + $0x34] sm:$0xf]
  %v53 = vld [vmem:[%s0 + $0x38] sm:$0xf]
  %v54 = vld [vmem:[%s0 + $0x3c] sm:$0xf]
  %v55 = vld [vmem:[%s0 + $0x40] sm:$0xf]
  %v56 = vld [vmem:[%s0 + $0x44] sm:$0xf]
  %v57 = vld [vmem:[%s0 + $0x48] sm:$0xf]
  %v58 = vld [vmem:[%s0 + $0x4c] sm:$0xf]
  %v59 = vld [vmem:[%s0 + $0x50] sm:$0xf]
  %v60 = vld [vmem:[%s0 + $0x54] sm:$0xf]
  %v61 = vld [vmem:[%s0 + $0x58] sm:$0xf]
  %v62 = vld [vmem:[%s0 + $0x5c] sm:$0xf]
  %v63 = vld [vmem:[%s0 + $0x60] sm:$0xf]
  %v64 = vld [vmem:[%s0 + $0x64] sm:$0xf]
  %v65 = vld [vmem:[%s0 + $0x68] sm:$0xf]
  %v66 = vld [vmem:[%s0 + $0x6c] sm:$0xf]
  %v67 = vld [vmem:[%s0 + $0x70] sm:$0xf]
  %v68 = vld [vmem:[%s0 + $0x74] sm:$0xf]
  %v69 = vld [vmem:[%s0 + $0x78] sm:$0xf]
  %v70 = vld [vmem:[%s0 + $0x7c] sm:$0xf]
  %v71 = vld [vmem:[%s1] sm:$0xff]
  %v72 = vld [vmem:[%s1 + $0x8] sm:$0xff]
  %v73 = vld [vmem:[%s1 + $0x10] sm:$0xff]
  %v74 = vld [vmem:[%s1 + $0x18] sm:$0xff]
  %v75 = vld [vmem:[%s1 + $0x20] sm:$0xff]
  %v76 = vld [vmem:[%s1 + $0x28] sm:$0xff]
  %v77 = vld [vmem:[%s1 + $0x30] sm:$0xff]
  %v78 = vld [vmem:[%s1 + $0x38] sm:$0xff]
  %v79 = vld [vmem:[%s1 + $0x40] sm:$0xff]
  %v80 = vld [vmem:[%s1 + $0x48] sm:$0xff]
  %v81 = vld [vmem:[%s1 + $0x50] sm:$0xff]
  %v82 = vld [vmem:[%s1 + $0x58] sm:$0xff]
  %v115 = vunpack.c.l.b16 %v39
  %v116 = vunpack.c.l.b16 %v40
  %v117 = vunpack.c.l.b16 %v41
  %v118 = vunpack.c.l.b16 %v42
  %v119 = vunpack.c.l.b16 %v43
  %v120 = vunpack.c.l.b16 %v44
  %v121 = vunpack.c.l.b16 %v45
  %v122 = vunpack.c.l.b16 %v46
  %v123 = vunpack.c.l.b16 %v47
  %v124 = vunpack.c.l.b16 %v48
  %v125 = vunpack.c.l.b16 %v49
  %v126 = vunpack.c.l.b16 %v50
  %v127 = vunpack.c.l.b16 %v51
  %v128 = vunpack.c.l.b16 %v52
  %v129 = vunpack.c.l.b16 %v53
  %v130 = vunpack.c.l.b16 %v54
  %v131 = vunpack.c.l.b16 %v55
  %v132 = vunpack.c.l.b16 %v56
  %v133 = vunpack.c.l.b16 %v57
  %v134 = vunpack.c.l.b16 %v58
  %v135 = vunpack.c.l.b16 %v59
  %v136 = vunpack.c.l.b16 %v60
  %v137 = vunpack.c.l.b16 %v61
  %v138 = vunpack.c.l.b16 %v62
  %v139 = vunpack.c.l.b16 %v63
  %v140 = vunpack.c.l.b16 %v64
  %v141 = vunpack.c.l.b16 %v65
  %v142 = vunpack.c.l.b16 %v66
  %v143 = vunpack.c.l.b16 %v67
  %v144 = vunpack.c.l.b16 %v68
  %v145 = vunpack.c.l.b16 %v69
  %v146 = vunpack.c.l.b16 %v70
  %v147 = vpack.c.b16 %v116, %v115
  %v148 = vpack.c.b16 %v118, %v117
  %v149 = vpack.c.b16 %v120, %v119
  %v150 = vpack.c.b16 %v122, %v121
  %v151 = vpack.c.b16 %v124, %v123
  %v152 = vpack.c.b16 %v126, %v125
  %v153 = vpack.c.b16 %v128, %v127
  %v154 = vpack.c.b16 %v130, %v129
  %v155 = vpack.c.b16 %v132, %v131
  %v156 = vpack.c.b16 %v134, %v133
  %v157 = vpack.c.b16 %v136, %v135
  %v158 = vpack.c.b16 %v138, %v137
  %v159 = vpack.c.b16 %v140, %v139
  %v160 = vpack.c.b16 %v142, %v141
  %v161 = vpack.c.b16 %v144, %v143
  %v162 = vpack.c.b16 %v146, %v145
  %v175 = vunpack.c.l.b16 %v71
  %v176 = vunpack.c.h.b16 %v71
  %v177 = vunpack.c.l.b16 %v72
  %v178 = vunpack.c.h.b16 %v72
  %v179 = vunpack.c.l.b16 %v73
  %v180 = vunpack.c.h.b16 %v73
  %v181 = vunpack.c.l.b16 %v74
  %v182 = vunpack.c.h.b16 %v74
  %v183 = vunpack.c.l.b16 %v75
  %v184 = vunpack.c.h.b16 %v75
  %v185 = vunpack.c.l.b16 %v76
  %v186 = vunpack.c.h.b16 %v76
  %v187 = vunpack.c.l.b16 %v77
  %v188 = vunpack.c.h.b16 %v77
  %v189 = vunpack.c.l.b16 %v78
  %v190 = vunpack.c.h.b16 %v78
  %v191 = vunpack.c.l.b16 %v79
  %v192 = vunpack.c.h.b16 %v79
  %v193 = vunpack.c.l.b16 %v80
  %v194 = vunpack.c.h.b16 %v80
  %v195 = vunpack.c.l.b16 %v81
  %v196 = vunpack.c.h.b16 %v81
  %v197 = vunpack.c.l.b16 %v82
  %v198 = vunpack.c.h.b16 %v82
  %v199 = vpack.c.b16 %v177, %v175
  %v200 = vpack.c.b16 %v178, %v176
  %v201 = vpack.c.b16 %v181, %v179
  %v202 = vpack.c.b16 %v182, %v180
  %v203 = vpack.c.b16 %v185, %v183
  %v204 = vpack.c.b16 %v186, %v184
  %v205 = vpack.c.b16 %v189, %v187
  %v206 = vpack.c.b16 %v190, %v188
  %v207 = vpack.c.b16 %v193, %v191
  %v208 = vpack.c.b16 %v194, %v192
  %v209 = vpack.c.b16 %v197, %v195
  %v210 = vpack.c.b16 %v198, %v196
  %vm223 = vcmask 785408
  %v225 = vsel %vm223, %v147, 0
  %v228 = vsel %vm223, %v148, 0
  %v231 = vsel %vm223, %v149, 0
  %v234 = vsel %vm223, %v150, 0
  %v237 = vsel %vm223, %v151, 0
  %v240 = vsel %vm223, %v152, 0
  %v243 = vsel %vm223, %v153, 0
  %v246 = vsel %vm223, %v154, 0
  %v249 = vsel %vm223, %v155, 0
  %v252 = vsel %vm223, %v156, 0
  %v255 = vsel %vm223, %v157, 0
  %v258 = vsel %vm223, %v158, 0
  %v261 = vsel %vm223, %v159, 0
  %v264 = vsel %vm223, %v160, 0
  %v267 = vsel %vm223, %v161, 0
  %v270 = vsel %vm223, %v162, 0
  %272 = vmatprep.subr.bf16.mxu0 0
  %273 = vmatpush1.bf16.msra.mxu0 0
  %274 = vmatprep.subr.bf16.mxu0 0
  %275 = vmatpush1.bf16.msra.mxu0 0
  %276 = vmatprep.subr.bf16.mxu0 %v210
  %277 = vmatpush1.bf16.msra.mxu0 %v209
  %278 = vmatprep.subr.bf16.mxu0 %v208
  %279 = vmatpush1.bf16.msra.mxu0 %v207
  %280 = vmatprep.subr.bf16.mxu0 %v206
  %281 = vmatpush1.bf16.msra.mxu0 %v205
  %282 = vmatprep.subr.bf16.mxu0 %v204
  %283 = vmatpush1.bf16.msra.mxu0 %v203
  %284 = vmatprep.subr.bf16.mxu0 %v202
  %285 = vmatpush1.bf16.msra.mxu0 %v201
  %286 = vmatprep.subr.bf16.mxu0 %v200
  %287 = vmatpush1.bf16.msra.mxu0 %v199
  %288 = vmatprep.subr.bf16.mxu0 0
  %289 = vmatpush2.bf16.msra.mxu0 0
  %290 = vmatprep.subr.bf16.mxu0 0
  %291 = vmatpush2.bf16.msra.mxu0 0
  %292 = vmatprep.subr.bf16.mxu0 0
  %293 = vmatpush2.bf16.msra.mxu0 0
  %294 = vmatprep.subr.bf16.mxu0 0
  %295 = vmatpush2.bf16.msra.mxu0 0
  %296 = vmatprep.subr.bf16.mxu0 0
  %297 = vmatpush2.bf16.msra.mxu0 0
  %298 = vmatprep.subr.bf16.mxu0 0
  %299 = vmatpush2.bf16.msra.mxu0 0
  %300 = vmatprep.subr.bf16.mxu0 0
  %301 = vmatpush2.bf16.msra.mxu0 0
  %302 = vmatprep.subr.bf16.mxu0 0
  %303 = vmatpush2.bf16.msra.mxu0 0
  %304 = vmatprep.mubr.bf16.mxu0 0
  %305 = vmatmul.mubr.bf16.gmra.mxu0 %v225
  %v306 = vpop.f32.mrf.mxu0
  %v307 = vadd.f32 0.0, %v306
  %v308 = vpop.f32.mrf.mxu0
  %v309 = vadd.f32 0.0, %v308
  %v310 = vpop.f32.mrf.mxu0
  %v311 = vadd.f32 0.0, %v310
  %v312 = vpop.f32.mrf.mxu0
  %v313 = vadd.f32 0.0, %v312
  %314 = vmatprep.mubr.bf16.mxu0 0
  %315 = vmatmul.mubr.bf16.gmra.mxu0 %v228
  %v316 = vpop.f32.mrf.mxu0
  %v317 = vadd.f32 0.0, %v316
  %v318 = vpop.f32.mrf.mxu0
  %v319 = vadd.f32 0.0, %v318
  %v320 = vpop.f32.mrf.mxu0
  %v321 = vadd.f32 0.0, %v320
  %v322 = vpop.f32.mrf.mxu0
  %v323 = vadd.f32 0.0, %v322
  %324 = vmatprep.mubr.bf16.mxu0 0
  %325 = vmatmul.mubr.bf16.gmra.mxu0 %v231
  %v326 = vpop.f32.mrf.mxu0
  %v327 = vadd.f32 0.0, %v326
  %v328 = vpop.f32.mrf.mxu0
  %v329 = vadd.f32 0.0, %v328
  %v330 = vpop.f32.mrf.mxu0
  %v331 = vadd.f32 0.0, %v330
  %v332 = vpop.f32.mrf.mxu0
  %v333 = vadd.f32 0.0, %v332
  %334 = vmatprep.mubr.bf16.mxu0 0
  %335 = vmatmul.mubr.bf16.gmra.mxu0 %v234
  %v336 = vpop.f32.mrf.mxu0
  %v337 = vadd.f32 0.0, %v336
  %v338 = vpop.f32.mrf.mxu0
  %v339 = vadd.f32 0.0, %v338
  %v340 = vpop.f32.mrf.mxu0
  %v341 = vadd.f32 0.0, %v340
  %v342 = vpop.f32.mrf.mxu0
  %v343 = vadd.f32 0.0, %v342
  %344 = vmatprep.mubr.bf16.mxu0 0
  %345 = vmatmul.mubr.bf16.gmra.mxu0 %v237
  %v346 = vpop.f32.mrf.mxu0
  %v347 = vadd.f32 0.0, %v346
  %v348 = vpop.f32.mrf.mxu0
  %v349 = vadd.f32 0.0, %v348
  %v350 = vpop.f32.mrf.mxu0
  %v351 = vadd.f32 0.0, %v350
  %v352 = vpop.f32.mrf.mxu0
  %v353 = vadd.f32 0.0, %v352
  %354 = vmatprep.mubr.bf16.mxu0 0
  %355 = vmatmul.mubr.bf16.gmra.mxu0 %v240
  %v356 = vpop.f32.mrf.mxu0
  %v357 = vadd.f32 0.0, %v356
  %v358 = vpop.f32.mrf.mxu0
  %v359 = vadd.f32 0.0, %v358
  %v360 = vpop.f32.mrf.mxu0
  %v361 = vadd.f32 0.0, %v360
  %v362 = vpop.f32.mrf.mxu0
  %v363 = vadd.f32 0.0, %v362
  %364 = vmatprep.mubr.bf16.mxu0 0
  %365 = vmatmul.mubr.bf16.gmra.mxu0 %v243
  %v366 = vpop.f32.mrf.mxu0
  %v367 = vadd.f32 0.0, %v366
  %v368 = vpop.f32.mrf.mxu0
  %v369 = vadd.f32 0.0, %v368
  %v370 = vpop.f32.mrf.mxu0
  %v371 = vadd.f32 0.0, %v370
  %v372 = vpop.f32.mrf.mxu0
  %v373 = vadd.f32 0.0, %v372
  %374 = vmatprep.mubr.bf16.mxu0 0
  %375 = vmatmul.mubr.bf16.gmra.mxu0 %v246
  %v376 = vpop.f32.mrf.mxu0
  %v377 = vadd.f32 0.0, %v376
  %v378 = vpop.f32.mrf.mxu0
  %v379 = vadd.f32 0.0, %v378
  %v380 = vpop.f32.mrf.mxu0
  %v381 = vadd.f32 0.0, %v380
  %v382 = vpop.f32.mrf.mxu0
  %v383 = vadd.f32 0.0, %v382
  %384 = vmatprep.mubr.bf16.mxu0 0
  %385 = vmatmul.mubr.bf16.gmra.mxu0 %v249
  %v386 = vpop.f32.mrf.mxu0
  %v387 = vadd.f32 0.0, %v386
  %v388 = vpop.f32.mrf.mxu0
  %v389 = vadd.f32 0.0, %v388
  %v390 = vpop.f32.mrf.mxu0
  %v391 = vadd.f32 0.0, %v390
  %v392 = vpop.f32.mrf.mxu0
  %v393 = vadd.f32 0.0, %v392
  %394 = vmatprep.mubr.bf16.mxu0 0
  %395 = vmatmul.mubr.bf16.gmra.mxu0 %v252
  %v396 = vpop.f32.mrf.mxu0
  %v397 = vadd.f32 0.0, %v396
  %v398 = vpop.f32.mrf.mxu0
  %v399 = vadd.f32 0.0, %v398
  %v400 = vpop.f32.mrf.mxu0
  %v401 = vadd.f32 0.0, %v400
  %v402 = vpop.f32.mrf.mxu0
  %v403 = vadd.f32 0.0, %v402
  %404 = vmatprep.mubr.bf16.mxu0 0
  %405 = vmatmul.mubr.bf16.gmra.mxu0 %v255
  %v406 = vpop.f32.mrf.mxu0
  %v407 = vadd.f32 0.0, %v406
  %v408 = vpop.f32.mrf.mxu0
  %v409 = vadd.f32 0.0, %v408
  %v410 = vpop.f32.mrf.mxu0
  %v411 = vadd.f32 0.0, %v410
  %v412 = vpop.f32.mrf.mxu0
  %v413 = vadd.f32 0.0, %v412
  %414 = vmatprep.mubr.bf16.mxu0 0
  %415 = vmatmul.mubr.bf16.gmra.mxu0 %v258
  %v416 = vpop.f32.mrf.mxu0
  %v417 = vadd.f32 0.0, %v416
  %v418 = vpop.f32.mrf.mxu0
  %v419 = vadd.f32 0.0, %v418
  %v420 = vpop.f32.mrf.mxu0
  %v421 = vadd.f32 0.0, %v420
  %v422 = vpop.f32.mrf.mxu0
  %v423 = vadd.f32 0.0, %v422
  %424 = vmatprep.mubr.bf16.mxu0 0
  %425 = vmatmul.mubr.bf16.gmra.mxu0 %v261
  %v426 = vpop.f32.mrf.mxu0
  %v427 = vadd.f32 0.0, %v426
  %v428 = vpop.f32.mrf.mxu0
  %v429 = vadd.f32 0.0, %v428
  %v430 = vpop.f32.mrf.mxu0
  %v431 = vadd.f32 0.0, %v430
  %v432 = vpop.f32.mrf.mxu0
  %v433 = vadd.f32 0.0, %v432
  %434 = vmatprep.mubr.bf16.mxu0 0
  %435 = vmatmul.mubr.bf16.gmra.mxu0 %v264
  %v436 = vpop.f32.mrf.mxu0
  %v437 = vadd.f32 0.0, %v436
  %v438 = vpop.f32.mrf.mxu0
  %v439 = vadd.f32 0.0, %v438
  %v440 = vpop.f32.mrf.mxu0
  %v441 = vadd.f32 0.0, %v440
  %v442 = vpop.f32.mrf.mxu0
  %v443 = vadd.f32 0.0, %v442
  %444 = vmatprep.mubr.bf16.mxu0 0
  %445 = vmatmul.mubr.bf16.gmra.mxu0 %v267
  %v446 = vpop.f32.mrf.mxu0
  %v447 = vpop.f32.mrf.mxu0
  %v448 = vpop.f32.mrf.mxu0
  %v449 = vpop.f32.mrf.mxu0
  %450 = vmatprep.mubr.bf16.mxu0 0
  %451 = vmatmul.mubr.bf16.gmra.mxu0 %v270
  %v452 = vpop.f32.mrf.mxu0
  %v453 = vpop.f32.mrf.mxu0
  %v454 = vpop.f32.mrf.mxu0
  %v455 = vpop.f32.mrf.mxu0
  %456 = vdwg.mxu0
  %s457 = scalar_lea.vmem %s1, 96
  %v458 = vld [vmem:[%s457] sm:$0xff]
  %v459 = vld [vmem:[%s457 + $0x8] sm:$0xff]
  %v460 = vld [vmem:[%s457 + $0x10] sm:$0xff]
  %v461 = vld [vmem:[%s457 + $0x18] sm:$0xff]
  %v462 = vld [vmem:[%s457 + $0x20] sm:$0xff]
  %v463 = vld [vmem:[%s457 + $0x28] sm:$0xff]
  %v464 = vld [vmem:[%s457 + $0x30] sm:$0xff]
  %v465 = vld [vmem:[%s457 + $0x38] sm:$0xff]
  %v466 = vld [vmem:[%s457 + $0x40] sm:$0xff]
  %v467 = vld [vmem:[%s457 + $0x48] sm:$0xff]
  %v468 = vld [vmem:[%s457 + $0x50] sm:$0xff]
  %v469 = vld [vmem:[%s457 + $0x58] sm:$0xff]
  %v482 = vunpack.c.l.b16 %v458
  %v483 = vunpack.c.h.b16 %v458
  %v484 = vunpack.c.l.b16 %v459
  %v485 = vunpack.c.h.b16 %v459
  %v486 = vunpack.c.l.b16 %v460
  %v487 = vunpack.c.h.b16 %v460
  %v488 = vunpack.c.l.b16 %v461
  %v489 = vunpack.c.h.b16 %v461
  %v490 = vunpack.c.l.b16 %v462
  %v491 = vunpack.c.h.b16 %v462
  %v492 = vunpack.c.l.b16 %v463
  %v493 = vunpack.c.h.b16 %v463
  %v494 = vunpack.c.l.b16 %v464
  %v495 = vunpack.c.h.b16 %v464
  %v496 = vunpack.c.l.b16 %v465
  %v497 = vunpack.c.h.b16 %v465
  %v498 = vunpack.c.l.b16 %v466
  %v499 = vunpack.c.h.b16 %v466
  %v500 = vunpack.c.l.b16 %v467
  %v501 = vunpack.c.h.b16 %v467
  %v502 = vunpack.c.l.b16 %v468
  %v503 = vunpack.c.h.b16 %v468
  %v504 = vunpack.c.l.b16 %v469
  %v505 = vunpack.c.h.b16 %v469
  %v506 = vpack.c.b16 %v484, %v482
  %v507 = vpack.c.b16 %v485, %v483
  %v508 = vpack.c.b16 %v488, %v486
  %v509 = vpack.c.b16 %v489, %v487
  %v510 = vpack.c.b16 %v492, %v490
  %v511 = vpack.c.b16 %v493, %v491
  %v512 = vpack.c.b16 %v496, %v494
  %v513 = vpack.c.b16 %v497, %v495
  %v514 = vpack.c.b16 %v500, %v498
  %v515 = vpack.c.b16 %v501, %v499
  %v516 = vpack.c.b16 %v504, %v502
  %v517 = vpack.c.b16 %v505, %v503
  %530 = vmatprep.subr.bf16.mxu0 0
  %531 = vmatpush1.bf16.msra.mxu0 0
  %532 = vmatprep.subr.bf16.mxu0 0
  %533 = vmatpush1.bf16.msra.mxu0 0
  %534 = vmatprep.subr.bf16.mxu0 %v517
  %535 = vmatpush1.bf16.msra.mxu0 %v516
  %536 = vmatprep.subr.bf16.mxu0 %v515
  %537 = vmatpush1.bf16.msra.mxu0 %v514
  %538 = vmatprep.subr.bf16.mxu0 %v513
  %539 = vmatpush1.bf16.msra.mxu0 %v512
  %540 = vmatprep.subr.bf16.mxu0 %v511
  %541 = vmatpush1.bf16.msra.mxu0 %v510
  %542 = vmatprep.subr.bf16.mxu0 %v509
  %543 = vmatpush1.bf16.msra.mxu0 %v508
  %544 = vmatprep.subr.bf16.mxu0 %v507
  %545 = vmatpush1.bf16.msra.mxu0 %v506
  %546 = vmatprep.subr.bf16.mxu0 0
  %547 = vmatpush2.bf16.msra.mxu0 0
  %548 = vmatprep.subr.bf16.mxu0 0
  %549 = vmatpush2.bf16.msra.mxu0 0
  %550 = vmatprep.subr.bf16.mxu0 0
  %551 = vmatpush2.bf16.msra.mxu0 0
  %552 = vmatprep.subr.bf16.mxu0 0
  %553 = vmatpush2.bf16.msra.mxu0 0
  %554 = vmatprep.subr.bf16.mxu0 0
  %555 = vmatpush2.bf16.msra.mxu0 0
  %556 = vmatprep.subr.bf16.mxu0 0
  %557 = vmatpush2.bf16.msra.mxu0 0
  %558 = vmatprep.subr.bf16.mxu0 0
  %559 = vmatpush2.bf16.msra.mxu0 0
  %560 = vmatprep.subr.bf16.mxu0 0
  %561 = vmatpush2.bf16.msra.mxu0 0
  %562 = vmatprep.mubr.bf16.mxu0 0
  %563 = vmatmul.mubr.bf16.gmra.mxu0 %v225
  %v564 = vpop.f32.mrf.mxu0
  %v565 = vpop.f32.mrf.mxu0
  %v566 = vpop.f32.mrf.mxu0
  %v567 = vadd.f32 0.0, %v566
  %v568 = vpop.f32.mrf.mxu0
  %v569 = vadd.f32 0.0, %v568
  %570 = vmatprep.mubr.bf16.mxu0 0
  %571 = vmatmul.mubr.bf16.gmra.mxu0 %v228
  %v572 = vpop.f32.mrf.mxu0
  %v573 = vadd.f32 0.0, %v572
  %v574 = vpop.f32.mrf.mxu0
  %v575 = vadd.f32 0.0, %v574
  %v576 = vpop.f32.mrf.mxu0
  %v577 = vadd.f32 0.0, %v576
  %v578 = vpop.f32.mrf.mxu0
  %v579 = vadd.f32 0.0, %v578
  %580 = vmatprep.mubr.bf16.mxu0 0
  %581 = vmatmul.mubr.bf16.gmra.mxu0 %v231
  %v582 = vpop.f32.mrf.mxu0
  %v583 = vadd.f32 0.0, %v582
  %v584 = vpop.f32.mrf.mxu0
  %v585 = vadd.f32 0.0, %v584
  %v586 = vpop.f32.mrf.mxu0
  %v587 = vadd.f32 0.0, %v586
  %v588 = vpop.f32.mrf.mxu0
  %v589 = vadd.f32 0.0, %v588
  %590 = vmatprep.mubr.bf16.mxu0 0
  %591 = vmatmul.mubr.bf16.gmra.mxu0 %v234
  %v592 = vpop.f32.mrf.mxu0
  %v593 = vadd.f32 0.0, %v592
  %v594 = vpop.f32.mrf.mxu0
  %v595 = vadd.f32 0.0, %v594
  %v596 = vpop.f32.mrf.mxu0
  %v597 = vadd.f32 0.0, %v596
  %v598 = vpop.f32.mrf.mxu0
  %v599 = vadd.f32 0.0, %v598
  %600 = vmatprep.mubr.bf16.mxu0 0
  %601 = vmatmul.mubr.bf16.gmra.mxu0 %v237
  %v602 = vpop.f32.mrf.mxu0
  %v603 = vadd.f32 0.0, %v602
  %v604 = vpop.f32.mrf.mxu0
  %v605 = vadd.f32 0.0, %v604
  %v606 = vpop.f32.mrf.mxu0
  %v607 = vadd.f32 0.0, %v606
  %v608 = vpop.f32.mrf.mxu0
  %v609 = vadd.f32 0.0, %v608
  %610 = vmatprep.mubr.bf16.mxu0 0
  %611 = vmatmul.mubr.bf16.gmra.mxu0 %v240
  %v612 = vpop.f32.mrf.mxu0
  %v613 = vadd.f32 0.0, %v612
  %v614 = vpop.f32.mrf.mxu0
  %v615 = vadd.f32 0.0, %v614
  %v616 = vpop.f32.mrf.mxu0
  %v617 = vadd.f32 0.0, %v616
  %v618 = vpop.f32.mrf.mxu0
  %v619 = vadd.f32 0.0, %v618
  %620 = vmatprep.mubr.bf16.mxu0 0
  %621 = vmatmul.mubr.bf16.gmra.mxu0 %v243
  %v622 = vpop.f32.mrf.mxu0
  %v623 = vadd.f32 0.0, %v622
  %v624 = vpop.f32.mrf.mxu0
  %v625 = vadd.f32 0.0, %v624
  %v626 = vpop.f32.mrf.mxu0
  %v627 = vadd.f32 0.0, %v626
  %v628 = vpop.f32.mrf.mxu0
  %v629 = vadd.f32 0.0, %v628
  %630 = vmatprep.mubr.bf16.mxu0 0
  %631 = vmatmul.mubr.bf16.gmra.mxu0 %v246
  %v632 = vpop.f32.mrf.mxu0
  %v633 = vadd.f32 0.0, %v632
  %v634 = vpop.f32.mrf.mxu0
  %v635 = vadd.f32 0.0, %v634
  %v636 = vpop.f32.mrf.mxu0
  %v637 = vadd.f32 0.0, %v636
  %v638 = vpop.f32.mrf.mxu0
  %v639 = vadd.f32 0.0, %v638
  %640 = vmatprep.mubr.bf16.mxu0 0
  %641 = vmatmul.mubr.bf16.gmra.mxu0 %v249
  %v642 = vpop.f32.mrf.mxu0
  %v643 = vadd.f32 0.0, %v642
  %v644 = vpop.f32.mrf.mxu0
  %v645 = vadd.f32 0.0, %v644
  %v646 = vpop.f32.mrf.mxu0
  %v647 = vadd.f32 0.0, %v646
  %v648 = vpop.f32.mrf.mxu0
  %v649 = vadd.f32 0.0, %v648
  %650 = vmatprep.mubr.bf16.mxu0 0
  %651 = vmatmul.mubr.bf16.gmra.mxu0 %v252
  %v652 = vpop.f32.mrf.mxu0
  %v653 = vadd.f32 0.0, %v652
  %v654 = vpop.f32.mrf.mxu0
  %v655 = vadd.f32 0.0, %v654
  %v656 = vpop.f32.mrf.mxu0
  %v657 = vadd.f32 0.0, %v656
  %v658 = vpop.f32.mrf.mxu0
  %v659 = vadd.f32 0.0, %v658
  %660 = vmatprep.mubr.bf16.mxu0 0
  %661 = vmatmul.mubr.bf16.gmra.mxu0 %v255
  %v662 = vpop.f32.mrf.mxu0
  %v663 = vadd.f32 0.0, %v662
  %v664 = vpop.f32.mrf.mxu0
  %v665 = vadd.f32 0.0, %v664
  %v666 = vpop.f32.mrf.mxu0
  %v667 = vadd.f32 0.0, %v666
  %v668 = vpop.f32.mrf.mxu0
  %v669 = vadd.f32 0.0, %v668
  %670 = vmatprep.mubr.bf16.mxu0 0
  %671 = vmatmul.mubr.bf16.gmra.mxu0 %v258
  %v672 = vpop.f32.mrf.mxu0
  %v673 = vadd.f32 0.0, %v672
  %v674 = vpop.f32.mrf.mxu0
  %v675 = vadd.f32 0.0, %v674
  %v676 = vpop.f32.mrf.mxu0
  %v677 = vadd.f32 0.0, %v676
  %v678 = vpop.f32.mrf.mxu0
  %v679 = vadd.f32 0.0, %v678
  %680 = vmatprep.mubr.bf16.mxu0 0
  %681 = vmatmul.mubr.bf16.gmra.mxu0 %v261
  %v682 = vpop.f32.mrf.mxu0
  %v683 = vadd.f32 0.0, %v682
  %v684 = vpop.f32.mrf.mxu0
  %v685 = vadd.f32 0.0, %v684
  %v686 = vpop.f32.mrf.mxu0
  %v687 = vadd.f32 0.0, %v686
  %v688 = vpop.f32.mrf.mxu0
  %v689 = vadd.f32 0.0, %v688
  %690 = vmatprep.mubr.bf16.mxu0 0
  %691 = vmatmul.mubr.bf16.gmra.mxu0 %v264
  %v692 = vpop.f32.mrf.mxu0
  %v693 = vadd.f32 0.0, %v692
  %v694 = vpop.f32.mrf.mxu0
  %v695 = vadd.f32 0.0, %v694
  %v696 = vpop.f32.mrf.mxu0
  %v697 = vadd.f32 0.0, %v696
  %v698 = vpop.f32.mrf.mxu0
  %v699 = vadd.f32 0.0, %v698
  %700 = vmatprep.mubr.bf16.mxu0 0
  %701 = vmatmul.mubr.bf16.gmra.mxu0 %v267
  %v702 = vpop.f32.mrf.mxu0
  %v703 = vadd.f32 0.0, %v702
  %v704 = vpop.f32.mrf.mxu0
  %v705 = vadd.f32 0.0, %v704
  %v706 = vpop.f32.mrf.mxu0
  %v707 = vpop.f32.mrf.mxu0
  %708 = vmatprep.mubr.bf16.mxu0 0
  %709 = vmatmul.mubr.bf16.gmra.mxu0 %v270
  %v710 = vpop.f32.mrf.mxu0
  %v711 = vpop.f32.mrf.mxu0
  %v712 = vpop.f32.mrf.mxu0
  %v713 = vpop.f32.mrf.mxu0
  %714 = vdwg.mxu0
  %v715 = vadd.f32 %v307, %v567
  %v716 = vadd.f32 %v309, %v569
  %v717 = vadd.f32 %v311, %v573
  %v718 = vadd.f32 %v313, %v575
  %v719 = vadd.f32 %v317, %v577
  %v720 = vadd.f32 %v319, %v579
  %v721 = vadd.f32 %v321, %v583
  %v722 = vadd.f32 %v323, %v585
  %v723 = vadd.f32 %v327, %v587
  %v724 = vadd.f32 %v329, %v589
  %v725 = vadd.f32 %v331, %v593
  %v726 = vadd.f32 %v333, %v595
  %v727 = vadd.f32 %v337, %v597
  %v728 = vadd.f32 %v339, %v599
  %v729 = vadd.f32 %v341, %v603
  %v730 = vadd.f32 %v343, %v605
  %v731 = vadd.f32 %v347, %v607
  %v732 = vadd.f32 %v349, %v609
  %v733 = vadd.f32 %v351, %v613
  %v734 = vadd.f32 %v353, %v615
  %v735 = vadd.f32 %v357, %v617
  %v736 = vadd.f32 %v359, %v619
  %v737 = vadd.f32 %v361, %v623
  %v738 = vadd.f32 %v363, %v625
  %v739 = vadd.f32 %v367, %v627
  %v740 = vadd.f32 %v369, %v629
  %v741 = vadd.f32 %v371, %v633
  %v742 = vadd.f32 %v373, %v635
  %v743 = vadd.f32 %v377, %v637
  %v744 = vadd.f32 %v379, %v639
  %v745 = vadd.f32 %v381, %v643
  %v746 = vadd.f32 %v383, %v645
  %v747 = vadd.f32 %v387, %v647
  %v748 = vadd.f32 %v389, %v649
  %v749 = vadd.f32 %v391, %v653
  %v750 = vadd.f32 %v393, %v655
  %v751 = vadd.f32 %v397, %v657
  %v752 = vadd.f32 %v399, %v659
  %v753 = vadd.f32 %v401, %v663
  %v754 = vadd.f32 %v403, %v665
  %v755 = vadd.f32 %v407, %v667
  %v756 = vadd.f32 %v409, %v669
  %v757 = vadd.f32 %v411, %v673
  %v758 = vadd.f32 %v413, %v675
  %v759 = vadd.f32 %v417, %v677
  %v760 = vadd.f32 %v419, %v679
  %v761 = vadd.f32 %v421, %v683
  %v762 = vadd.f32 %v423, %v685
  %v763 = vadd.f32 %v427, %v687
  %v764 = vadd.f32 %v429, %v689
  %v765 = vadd.f32 %v431, %v693
  %v766 = vadd.f32 %v433, %v695
  %v767 = vadd.f32 %v437, %v697
  %v768 = vadd.f32 %v439, %v699
  %v769 = vadd.f32 %v441, %v703
  %v770 = vadd.f32 %v443, %v705
  %s771 = scalar_lea.vmem %s1, 192
  %v772 = vld [vmem:[%s771] sm:$0xff]
  %v773 = vld [vmem:[%s771 + $0x8] sm:$0xff]
  %v774 = vld [vmem:[%s771 + $0x10] sm:$0xff]
  %v775 = vld [vmem:[%s771 + $0x18] sm:$0xff]
  %v776 = vld [vmem:[%s771 + $0x20] sm:$0xff]
  %v777 = vld [vmem:[%s771 + $0x28] sm:$0xff]
  %v778 = vld [vmem:[%s771 + $0x30] sm:$0xff]
  %v779 = vld [vmem:[%s771 + $0x38] sm:$0xff]
  %v780 = vld [vmem:[%s771 + $0x40] sm:$0xff]
  %v781 = vld [vmem:[%s771 + $0x48] sm:$0xff]
  %v782 = vld [vmem:[%s771 + $0x50] sm:$0xff]
  %v783 = vld [vmem:[%s771 + $0x58] sm:$0xff]
  %v796 = vunpack.c.l.b16 %v772
  %v797 = vunpack.c.h.b16 %v772
  %v798 = vunpack.c.l.b16 %v773
  %v799 = vunpack.c.h.b16 %v773
  %v800 = vunpack.c.l.b16 %v774
  %v801 = vunpack.c.h.b16 %v774
  %v802 = vunpack.c.l.b16 %v775
  %v803 = vunpack.c.h.b16 %v775
  %v804 = vunpack.c.l.b16 %v776
  %v805 = vunpack.c.h.b16 %v776
  %v806 = vunpack.c.l.b16 %v777
  %v807 = vunpack.c.h.b16 %v777
  %v808 = vunpack.c.l.b16 %v778
  %v809 = vunpack.c.h.b16 %v778
  %v810 = vunpack.c.l.b16 %v779
  %v811 = vunpack.c.h.b16 %v779
  %v812 = vunpack.c.l.b16 %v780
  %v813 = vunpack.c.h.b16 %v780
  %v814 = vunpack.c.l.b16 %v781
  %v815 = vunpack.c.h.b16 %v781
  %v816 = vunpack.c.l.b16 %v782
  %v817 = vunpack.c.h.b16 %v782
  %v818 = vunpack.c.l.b16 %v783
  %v819 = vunpack.c.h.b16 %v783
  %v820 = vpack.c.b16 %v798, %v796
  %v821 = vpack.c.b16 %v799, %v797
  %v822 = vpack.c.b16 %v802, %v800
  %v823 = vpack.c.b16 %v803, %v801
  %v824 = vpack.c.b16 %v806, %v804
  %v825 = vpack.c.b16 %v807, %v805
  %v826 = vpack.c.b16 %v810, %v808
  %v827 = vpack.c.b16 %v811, %v809
  %v828 = vpack.c.b16 %v814, %v812
  %v829 = vpack.c.b16 %v815, %v813
  %v830 = vpack.c.b16 %v818, %v816
  %v831 = vpack.c.b16 %v819, %v817
  %844 = vmatprep.subr.bf16.mxu0 0
  %845 = vmatpush1.bf16.msra.mxu0 0
  %846 = vmatprep.subr.bf16.mxu0 0
  %847 = vmatpush1.bf16.msra.mxu0 0
  %848 = vmatprep.subr.bf16.mxu0 %v831
  %849 = vmatpush1.bf16.msra.mxu0 %v830
  %850 = vmatprep.subr.bf16.mxu0 %v829
  %851 = vmatpush1.bf16.msra.mxu0 %v828
  %852 = vmatprep.subr.bf16.mxu0 %v827
  %853 = vmatpush1.bf16.msra.mxu0 %v826
  %854 = vmatprep.subr.bf16.mxu0 %v825
  %855 = vmatpush1.bf16.msra.mxu0 %v824
  %856 = vmatprep.subr.bf16.mxu0 %v823
  %857 = vmatpush1.bf16.msra.mxu0 %v822
  %858 = vmatprep.subr.bf16.mxu0 %v821
  %859 = vmatpush1.bf16.msra.mxu0 %v820
  %860 = vmatprep.subr.bf16.mxu0 0
  %861 = vmatpush2.bf16.msra.mxu0 0
  %862 = vmatprep.subr.bf16.mxu0 0
  %863 = vmatpush2.bf16.msra.mxu0 0
  %864 = vmatprep.subr.bf16.mxu0 0
  %865 = vmatpush2.bf16.msra.mxu0 0
  %866 = vmatprep.subr.bf16.mxu0 0
  %867 = vmatpush2.bf16.msra.mxu0 0
  %868 = vmatprep.subr.bf16.mxu0 0
  %869 = vmatpush2.bf16.msra.mxu0 0
  %870 = vmatprep.subr.bf16.mxu0 0
  %871 = vmatpush2.bf16.msra.mxu0 0
  %872 = vmatprep.subr.bf16.mxu0 0
  %873 = vmatpush2.bf16.msra.mxu0 0
  %874 = vmatprep.subr.bf16.mxu0 0
  %875 = vmatpush2.bf16.msra.mxu0 0
  %876 = vmatprep.mubr.bf16.mxu0 0
  %877 = vmatmul.mubr.bf16.gmra.mxu0 %v225
  %v878 = vpop.f32.mrf.mxu0
  %v879 = vpop.f32.mrf.mxu0
  %v880 = vpop.f32.mrf.mxu0
  %v881 = vpop.f32.mrf.mxu0
  %882 = vmatprep.mubr.bf16.mxu0 0
  %883 = vmatmul.mubr.bf16.gmra.mxu0 %v228
  %v884 = vpop.f32.mrf.mxu0
  %v885 = vadd.f32 0.0, %v884
  %v886 = vpop.f32.mrf.mxu0
  %v887 = vadd.f32 0.0, %v886
  %v888 = vpop.f32.mrf.mxu0
  %v889 = vadd.f32 0.0, %v888
  %v890 = vpop.f32.mrf.mxu0
  %v891 = vadd.f32 0.0, %v890
  %892 = vmatprep.mubr.bf16.mxu0 0
  %893 = vmatmul.mubr.bf16.gmra.mxu0 %v231
  %v894 = vpop.f32.mrf.mxu0
  %v895 = vadd.f32 0.0, %v894
  %v896 = vpop.f32.mrf.mxu0
  %v897 = vadd.f32 0.0, %v896
  %v898 = vpop.f32.mrf.mxu0
  %v899 = vadd.f32 0.0, %v898
  %v900 = vpop.f32.mrf.mxu0
  %v901 = vadd.f32 0.0, %v900
  %902 = vmatprep.mubr.bf16.mxu0 0
  %903 = vmatmul.mubr.bf16.gmra.mxu0 %v234
  %v904 = vpop.f32.mrf.mxu0
  %v905 = vadd.f32 0.0, %v904
  %v906 = vpop.f32.mrf.mxu0
  %v907 = vadd.f32 0.0, %v906
  %v908 = vpop.f32.mrf.mxu0
  %v909 = vadd.f32 0.0, %v908
  %v910 = vpop.f32.mrf.mxu0
  %v911 = vadd.f32 0.0, %v910
  %912 = vmatprep.mubr.bf16.mxu0 0
  %913 = vmatmul.mubr.bf16.gmra.mxu0 %v237
  %v914 = vpop.f32.mrf.mxu0
  %v915 = vadd.f32 0.0, %v914
  %v916 = vpop.f32.mrf.mxu0
  %v917 = vadd.f32 0.0, %v916
  %v918 = vpop.f32.mrf.mxu0
  %v919 = vadd.f32 0.0, %v918
  %v920 = vpop.f32.mrf.mxu0
  %v921 = vadd.f32 0.0, %v920
  %922 = vmatprep.mubr.bf16.mxu0 0
  %923 = vmatmul.mubr.bf16.gmra.mxu0 %v240
  %v924 = vpop.f32.mrf.mxu0
  %v925 = vadd.f32 0.0, %v924
  %v926 = vpop.f32.mrf.mxu0
  %v927 = vadd.f32 0.0, %v926
  %v928 = vpop.f32.mrf.mxu0
  %v929 = vadd.f32 0.0, %v928
  %v930 = vpop.f32.mrf.mxu0
  %v931 = vadd.f32 0.0, %v930
  %932 = vmatprep.mubr.bf16.mxu0 0
  %933 = vmatmul.mubr.bf16.gmra.mxu0 %v243
  %v934 = vpop.f32.mrf.mxu0
  %v935 = vadd.f32 0.0, %v934
  %v936 = vpop.f32.mrf.mxu0
  %v937 = vadd.f32 0.0, %v936
  %v938 = vpop.f32.mrf.mxu0
  %v939 = vadd.f32 0.0, %v938
  %v940 = vpop.f32.mrf.mxu0
  %v941 = vadd.f32 0.0, %v940
  %942 = vmatprep.mubr.bf16.mxu0 0
  %943 = vmatmul.mubr.bf16.gmra.mxu0 %v246
  %v944 = vpop.f32.mrf.mxu0
  %v945 = vadd.f32 0.0, %v944
  %v946 = vpop.f32.mrf.mxu0
  %v947 = vadd.f32 0.0, %v946
  %v948 = vpop.f32.mrf.mxu0
  %v949 = vadd.f32 0.0, %v948
  %v950 = vpop.f32.mrf.mxu0
  %v951 = vadd.f32 0.0, %v950
  %952 = vmatprep.mubr.bf16.mxu0 0
  %953 = vmatmul.mubr.bf16.gmra.mxu0 %v249
  %v954 = vpop.f32.mrf.mxu0
  %v955 = vadd.f32 0.0, %v954
  %v956 = vpop.f32.mrf.mxu0
  %v957 = vadd.f32 0.0, %v956
  %v958 = vpop.f32.mrf.mxu0
  %v959 = vadd.f32 0.0, %v958
  %v960 = vpop.f32.mrf.mxu0
  %v961 = vadd.f32 0.0, %v960
  %962 = vmatprep.mubr.bf16.mxu0 0
  %963 = vmatmul.mubr.bf16.gmra.mxu0 %v252
  %v964 = vpop.f32.mrf.mxu0
  %v965 = vadd.f32 0.0, %v964
  %v966 = vpop.f32.mrf.mxu0
  %v967 = vadd.f32 0.0, %v966
  %v968 = vpop.f32.mrf.mxu0
  %v969 = vadd.f32 0.0, %v968
  %v970 = vpop.f32.mrf.mxu0
  %v971 = vadd.f32 0.0, %v970
  %972 = vmatprep.mubr.bf16.mxu0 0
  %973 = vmatmul.mubr.bf16.gmra.mxu0 %v255
  %v974 = vpop.f32.mrf.mxu0
  %v975 = vadd.f32 0.0, %v974
  %v976 = vpop.f32.mrf.mxu0
  %v977 = vadd.f32 0.0, %v976
  %v978 = vpop.f32.mrf.mxu0
  %v979 = vadd.f32 0.0, %v978
  %v980 = vpop.f32.mrf.mxu0
  %v981 = vadd.f32 0.0, %v980
  %982 = vmatprep.mubr.bf16.mxu0 0
  %983 = vmatmul.mubr.bf16.gmra.mxu0 %v258
  %v984 = vpop.f32.mrf.mxu0
  %v985 = vadd.f32 0.0, %v984
  %v986 = vpop.f32.mrf.mxu0
  %v987 = vadd.f32 0.0, %v986
  %v988 = vpop.f32.mrf.mxu0
  %v989 = vadd.f32 0.0, %v988
  %v990 = vpop.f32.mrf.mxu0
  %v991 = vadd.f32 0.0, %v990
  %992 = vmatprep.mubr.bf16.mxu0 0
  %993 = vmatmul.mubr.bf16.gmra.mxu0 %v261
  %v994 = vpop.f32.mrf.mxu0
  %v995 = vadd.f32 0.0, %v994
  %v996 = vpop.f32.mrf.mxu0
  %v997 = vadd.f32 0.0, %v996
  %v998 = vpop.f32.mrf.mxu0
  %v999 = vadd.f32 0.0, %v998
  %v1000 = vpop.f32.mrf.mxu0
  %v1001 = vadd.f32 0.0, %v1000
  %1002 = vmatprep.mubr.bf16.mxu0 0
  %1003 = vmatmul.mubr.bf16.gmra.mxu0 %v264
  %v1004 = vpop.f32.mrf.mxu0
  %v1005 = vadd.f32 0.0, %v1004
  %v1006 = vpop.f32.mrf.mxu0
  %v1007 = vadd.f32 0.0, %v1006
  %v1008 = vpop.f32.mrf.mxu0
  %v1009 = vadd.f32 0.0, %v1008
  %v1010 = vpop.f32.mrf.mxu0
  %v1011 = vadd.f32 0.0, %v1010
  %1012 = vmatprep.mubr.bf16.mxu0 0
  %1013 = vmatmul.mubr.bf16.gmra.mxu0 %v267
  %v1014 = vpop.f32.mrf.mxu0
  %v1015 = vadd.f32 0.0, %v1014
  %v1016 = vpop.f32.mrf.mxu0
  %v1017 = vadd.f32 0.0, %v1016
  %v1018 = vpop.f32.mrf.mxu0
  %v1019 = vadd.f32 0.0, %v1018
  %v1020 = vpop.f32.mrf.mxu0
  %v1021 = vadd.f32 0.0, %v1020
  %1022 = vmatprep.mubr.bf16.mxu0 0
  %1023 = vmatmul.mubr.bf16.gmra.mxu0 %v270
  %v1024 = vpop.f32.mrf.mxu0
  %v1025 = vpop.f32.mrf.mxu0
  %v1026 = vpop.f32.mrf.mxu0
  %v1027 = vpop.f32.mrf.mxu0
  %1028 = vdwg.mxu0
  %v1029 = vadd.f32 %v715, %v885
  %v1030 = vadd.f32 %v716, %v887
  %v1031 = vadd.f32 %v717, %v889
  %v1032 = vadd.f32 %v718, %v891
  %v1033 = vadd.f32 %v719, %v895
  %v1034 = vadd.f32 %v720, %v897
  %v1035 = vadd.f32 %v721, %v899
  %v1036 = vadd.f32 %v722, %v901
  %v1037 = vadd.f32 %v723, %v905
  %v1038 = vadd.f32 %v724, %v907
  %v1039 = vadd.f32 %v725, %v909
  %v1040 = vadd.f32 %v726, %v911
  %v1041 = vadd.f32 %v727, %v915
  %v1042 = vadd.f32 %v728, %v917
  %v1043 = vadd.f32 %v729, %v919
  %v1044 = vadd.f32 %v730, %v921
  %v1045 = vadd.f32 %v731, %v925
  %v1046 = vadd.f32 %v732, %v927
  %v1047 = vadd.f32 %v733, %v929
  %v1048 = vadd.f32 %v734, %v931
  %v1049 = vadd.f32 %v735, %v935
  %v1050 = vadd.f32 %v736, %v937
  %v1051 = vadd.f32 %v737, %v939
  %v1052 = vadd.f32 %v738, %v941
  %v1053 = vadd.f32 %v739, %v945
  %v1054 = vadd.f32 %v740, %v947
  %v1055 = vadd.f32 %v741, %v949
  %v1056 = vadd.f32 %v742, %v951
  %v1057 = vadd.f32 %v743, %v955
  %v1058 = vadd.f32 %v744, %v957
  %v1059 = vadd.f32 %v745, %v959
  %v1060 = vadd.f32 %v746, %v961
  %v1061 = vadd.f32 %v747, %v965
  %v1062 = vadd.f32 %v748, %v967
  %v1063 = vadd.f32 %v749, %v969
  %v1064 = vadd.f32 %v750, %v971
  %v1065 = vadd.f32 %v751, %v975
  %v1066 = vadd.f32 %v752, %v977
  %v1067 = vadd.f32 %v753, %v979
  %v1068 = vadd.f32 %v754, %v981
  %v1069 = vadd.f32 %v755, %v985
  %v1070 = vadd.f32 %v756, %v987
  %v1071 = vadd.f32 %v757, %v989
  %v1072 = vadd.f32 %v758, %v991
  %v1073 = vadd.f32 %v759, %v995
  %v1074 = vadd.f32 %v760, %v997
  %v1075 = vadd.f32 %v761, %v999
  %v1076 = vadd.f32 %v762, %v1001
  %v1077 = vadd.f32 %v763, %v1005
  %v1078 = vadd.f32 %v764, %v1007
  %v1079 = vadd.f32 %v765, %v1009
  %v1080 = vadd.f32 %v766, %v1011
  %v1081 = vadd.f32 %v767, %v1015
  %v1082 = vadd.f32 %v768, %v1017
  %v1083 = vadd.f32 %v769, %v1019
  %v1084 = vadd.f32 %v770, %v1021
  %s1085 = scalar_lea.vmem %s1, 288
  %v1086 = vld [vmem:[%s1085] sm:$0xff]
  %v1087 = vld [vmem:[%s1085 + $0x8] sm:$0xff]
  %v1088 = vld [vmem:[%s1085 + $0x10] sm:$0xff]
  %v1089 = vld [vmem:[%s1085 + $0x18] sm:$0xff]
  %v1090 = vld [vmem:[%s1085 + $0x20] sm:$0xff]
  %v1091 = vld [vmem:[%s1085 + $0x28] sm:$0xff]
  %v1092 = vld [vmem:[%s1085 + $0x30] sm:$0xff]
  %v1093 = vld [vmem:[%s1085 + $0x38] sm:$0xff]
  %v1094 = vld [vmem:[%s1085 + $0x40] sm:$0xff]
  %v1095 = vld [vmem:[%s1085 + $0x48] sm:$0xff]
  %v1096 = vld [vmem:[%s1085 + $0x50] sm:$0xff]
  %v1097 = vld [vmem:[%s1085 + $0x58] sm:$0xff]
  %v1110 = vunpack.c.l.b16 %v1086
  %v1111 = vunpack.c.h.b16 %v1086
  %v1112 = vunpack.c.l.b16 %v1087
  %v1113 = vunpack.c.h.b16 %v1087
  %v1114 = vunpack.c.l.b16 %v1088
  %v1115 = vunpack.c.h.b16 %v1088
  %v1116 = vunpack.c.l.b16 %v1089
  %v1117 = vunpack.c.h.b16 %v1089
  %v1118 = vunpack.c.l.b16 %v1090
  %v1119 = vunpack.c.h.b16 %v1090
  %v1120 = vunpack.c.l.b16 %v1091
  %v1121 = vunpack.c.h.b16 %v1091
  %v1122 = vunpack.c.l.b16 %v1092
  %v1123 = vunpack.c.h.b16 %v1092
  %v1124 = vunpack.c.l.b16 %v1093
  %v1125 = vunpack.c.h.b16 %v1093
  %v1126 = vunpack.c.l.b16 %v1094
  %v1127 = vunpack.c.h.b16 %v1094
  %v1128 = vunpack.c.l.b16 %v1095
  %v1129 = vunpack.c.h.b16 %v1095
  %v1130 = vunpack.c.l.b16 %v1096
  %v1131 = vunpack.c.h.b16 %v1096
  %v1132 = vunpack.c.l.b16 %v1097
  %v1133 = vunpack.c.h.b16 %v1097
  %v1134 = vpack.c.b16 %v1112, %v1110
  %v1135 = vpack.c.b16 %v1113, %v1111
  %v1136 = vpack.c.b16 %v1116, %v1114
  %v1137 = vpack.c.b16 %v1117, %v1115
  %v1138 = vpack.c.b16 %v1120, %v1118
  %v1139 = vpack.c.b16 %v1121, %v1119
  %v1140 = vpack.c.b16 %v1124, %v1122
  %v1141 = vpack.c.b16 %v1125, %v1123
  %v1142 = vpack.c.b16 %v1128, %v1126
  %v1143 = vpack.c.b16 %v1129, %v1127
  %v1144 = vpack.c.b16 %v1132, %v1130
  %v1145 = vpack.c.b16 %v1133, %v1131
  %1158 = vmatprep.subr.bf16.mxu0 0
  %1159 = vmatpush1.bf16.msra.mxu0 0
  %1160 = vmatprep.subr.bf16.mxu0 0
  %1161 = vmatpush1.bf16.msra.mxu0 0
  %1162 = vmatprep.subr.bf16.mxu0 %v1145
  %1163 = vmatpush1.bf16.msra.mxu0 %v1144
  %1164 = vmatprep.subr.bf16.mxu0 %v1143
  %1165 = vmatpush1.bf16.msra.mxu0 %v1142
  %1166 = vmatprep.subr.bf16.mxu0 %v1141
  %1167 = vmatpush1.bf16.msra.mxu0 %v1140
  %1168 = vmatprep.subr.bf16.mxu0 %v1139
  %1169 = vmatpush1.bf16.msra.mxu0 %v1138
  %1170 = vmatprep.subr.bf16.mxu0 %v1137
  %1171 = vmatpush1.bf16.msra.mxu0 %v1136
  %1172 = vmatprep.subr.bf16.mxu0 %v1135
  %1173 = vmatpush1.bf16.msra.mxu0 %v1134
  %1174 = vmatprep.subr.bf16.mxu0 0
  %1175 = vmatpush2.bf16.msra.mxu0 0
  %1176 = vmatprep.subr.bf16.mxu0 0
  %1177 = vmatpush2.bf16.msra.mxu0 0
  %1178 = vmatprep.subr.bf16.mxu0 0
  %1179 = vmatpush2.bf16.msra.mxu0 0
  %1180 = vmatprep.subr.bf16.mxu0 0
  %1181 = vmatpush2.bf16.msra.mxu0 0
  %1182 = vmatprep.subr.bf16.mxu0 0
  %1183 = vmatpush2.bf16.msra.mxu0 0
  %1184 = vmatprep.subr.bf16.mxu0 0
  %1185 = vmatpush2.bf16.msra.mxu0 0
  %1186 = vmatprep.subr.bf16.mxu0 0
  %1187 = vmatpush2.bf16.msra.mxu0 0
  %1188 = vmatprep.subr.bf16.mxu0 0
  %1189 = vmatpush2.bf16.msra.mxu0 0
  %1190 = vmatprep.mubr.bf16.mxu0 0
  %1191 = vmatmul.mubr.bf16.gmra.mxu0 %v225
  %v1192 = vpop.f32.mrf.mxu0
  %v1193 = vpop.f32.mrf.mxu0
  %v1194 = vpop.f32.mrf.mxu0
  %v1195 = vpop.f32.mrf.mxu0
  %1196 = vmatprep.mubr.bf16.mxu0 0
  %1197 = vmatmul.mubr.bf16.gmra.mxu0 %v228
  %v1198 = vpop.f32.mrf.mxu0
  %v1199 = vpop.f32.mrf.mxu0
  %v1200 = vpop.f32.mrf.mxu0
  %v1201 = vadd.f32 0.0, %v1200
  %v1202 = vpop.f32.mrf.mxu0
  %v1203 = vadd.f32 0.0, %v1202
  %1204 = vmatprep.mubr.bf16.mxu0 0
  %1205 = vmatmul.mubr.bf16.gmra.mxu0 %v231
  %v1206 = vpop.f32.mrf.mxu0
  %v1207 = vadd.f32 0.0, %v1206
  %v1208 = vpop.f32.mrf.mxu0
  %v1209 = vadd.f32 0.0, %v1208
  %v1210 = vpop.f32.mrf.mxu0
  %v1211 = vadd.f32 0.0, %v1210
  %v1212 = vpop.f32.mrf.mxu0
  %v1213 = vadd.f32 0.0, %v1212
  %1214 = vmatprep.mubr.bf16.mxu0 0
  %1215 = vmatmul.mubr.bf16.gmra.mxu0 %v234
  %v1216 = vpop.f32.mrf.mxu0
  %v1217 = vadd.f32 0.0, %v1216
  %v1218 = vpop.f32.mrf.mxu0
  %v1219 = vadd.f32 0.0, %v1218
  %v1220 = vpop.f32.mrf.mxu0
  %v1221 = vadd.f32 0.0, %v1220
  %v1222 = vpop.f32.mrf.mxu0
  %v1223 = vadd.f32 0.0, %v1222
  %1224 = vmatprep.mubr.bf16.mxu0 0
  %1225 = vmatmul.mubr.bf16.gmra.mxu0 %v237
  %v1226 = vpop.f32.mrf.mxu0
  %v1227 = vadd.f32 0.0, %v1226
  %v1228 = vpop.f32.mrf.mxu0
  %v1229 = vadd.f32 0.0, %v1228
  %v1230 = vpop.f32.mrf.mxu0
  %v1231 = vadd.f32 0.0, %v1230
  %v1232 = vpop.f32.mrf.mxu0
  %v1233 = vadd.f32 0.0, %v1232
  %1234 = vmatprep.mubr.bf16.mxu0 0
  %1235 = vmatmul.mubr.bf16.gmra.mxu0 %v240
  %v1236 = vpop.f32.mrf.mxu0
  %v1237 = vadd.f32 0.0, %v1236
  %v1238 = vpop.f32.mrf.mxu0
  %v1239 = vadd.f32 0.0, %v1238
  %v1240 = vpop.f32.mrf.mxu0
  %v1241 = vadd.f32 0.0, %v1240
  %v1242 = vpop.f32.mrf.mxu0
  %v1243 = vadd.f32 0.0, %v1242
  %1244 = vmatprep.mubr.bf16.mxu0 0
  %1245 = vmatmul.mubr.bf16.gmra.mxu0 %v243
  %v1246 = vpop.f32.mrf.mxu0
  %v1247 = vadd.f32 0.0, %v1246
  %v1248 = vpop.f32.mrf.mxu0
  %v1249 = vadd.f32 0.0, %v1248
  %v1250 = vpop.f32.mrf.mxu0
  %v1251 = vadd.f32 0.0, %v1250
  %v1252 = vpop.f32.mrf.mxu0
  %v1253 = vadd.f32 0.0, %v1252
  %1254 = vmatprep.mubr.bf16.mxu0 0
  %1255 = vmatmul.mubr.bf16.gmra.mxu0 %v246
  %v1256 = vpop.f32.mrf.mxu0
  %v1257 = vadd.f32 0.0, %v1256
  %v1258 = vpop.f32.mrf.mxu0
  %v1259 = vadd.f32 0.0, %v1258
  %v1260 = vpop.f32.mrf.mxu0
  %v1261 = vadd.f32 0.0, %v1260
  %v1262 = vpop.f32.mrf.mxu0
  %v1263 = vadd.f32 0.0, %v1262
  %1264 = vmatprep.mubr.bf16.mxu0 0
  %1265 = vmatmul.mubr.bf16.gmra.mxu0 %v249
  %v1266 = vpop.f32.mrf.mxu0
  %v1267 = vadd.f32 0.0, %v1266
  %v1268 = vpop.f32.mrf.mxu0
  %v1269 = vadd.f32 0.0, %v1268
  %v1270 = vpop.f32.mrf.mxu0
  %v1271 = vadd.f32 0.0, %v1270
  %v1272 = vpop.f32.mrf.mxu0
  %v1273 = vadd.f32 0.0, %v1272
  %1274 = vmatprep.mubr.bf16.mxu0 0
  %1275 = vmatmul.mubr.bf16.gmra.mxu0 %v252
  %v1276 = vpop.f32.mrf.mxu0
  %v1277 = vadd.f32 0.0, %v1276
  %v1278 = vpop.f32.mrf.mxu0
  %v1279 = vadd.f32 0.0, %v1278
  %v1280 = vpop.f32.mrf.mxu0
  %v1281 = vadd.f32 0.0, %v1280
  %v1282 = vpop.f32.mrf.mxu0
  %v1283 = vadd.f32 0.0, %v1282
  %1284 = vmatprep.mubr.bf16.mxu0 0
  %1285 = vmatmul.mubr.bf16.gmra.mxu0 %v255
  %v1286 = vpop.f32.mrf.mxu0
  %v1287 = vadd.f32 0.0, %v1286
  %v1288 = vpop.f32.mrf.mxu0
  %v1289 = vadd.f32 0.0, %v1288
  %v1290 = vpop.f32.mrf.mxu0
  %v1291 = vadd.f32 0.0, %v1290
  %v1292 = vpop.f32.mrf.mxu0
  %v1293 = vadd.f32 0.0, %v1292
  %1294 = vmatprep.mubr.bf16.mxu0 0
  %1295 = vmatmul.mubr.bf16.gmra.mxu0 %v258
  %v1296 = vpop.f32.mrf.mxu0
  %v1297 = vadd.f32 0.0, %v1296
  %v1298 = vpop.f32.mrf.mxu0
  %v1299 = vadd.f32 0.0, %v1298
  %v1300 = vpop.f32.mrf.mxu0
  %v1301 = vadd.f32 0.0, %v1300
  %v1302 = vpop.f32.mrf.mxu0
  %v1303 = vadd.f32 0.0, %v1302
  %1304 = vmatprep.mubr.bf16.mxu0 0
  %1305 = vmatmul.mubr.bf16.gmra.mxu0 %v261
  %v1306 = vpop.f32.mrf.mxu0
  %v1307 = vadd.f32 0.0, %v1306
  %v1308 = vpop.f32.mrf.mxu0
  %v1309 = vadd.f32 0.0, %v1308
  %v1310 = vpop.f32.mrf.mxu0
  %v1311 = vadd.f32 0.0, %v1310
  %v1312 = vpop.f32.mrf.mxu0
  %v1313 = vadd.f32 0.0, %v1312
  %1314 = vmatprep.mubr.bf16.mxu0 0
  %1315 = vmatmul.mubr.bf16.gmra.mxu0 %v264
  %v1316 = vpop.f32.mrf.mxu0
  %v1317 = vadd.f32 0.0, %v1316
  %v1318 = vpop.f32.mrf.mxu0
  %v1319 = vadd.f32 0.0, %v1318
  %v1320 = vpop.f32.mrf.mxu0
  %v1321 = vadd.f32 0.0, %v1320
  %v1322 = vpop.f32.mrf.mxu0
  %v1323 = vadd.f32 0.0, %v1322
  %1324 = vmatprep.mubr.bf16.mxu0 0
  %1325 = vmatmul.mubr.bf16.gmra.mxu0 %v267
  %v1326 = vpop.f32.mrf.mxu0
  %v1327 = vadd.f32 0.0, %v1326
  %v1328 = vpop.f32.mrf.mxu0
  %v1329 = vadd.f32 0.0, %v1328
  %v1330 = vpop.f32.mrf.mxu0
  %v1331 = vadd.f32 0.0, %v1330
  %v1332 = vpop.f32.mrf.mxu0
  %v1333 = vadd.f32 0.0, %v1332
  %1334 = vmatprep.mubr.bf16.mxu0 0
  %1335 = vmatmul.mubr.bf16.gmra.mxu0 %v270
  %v1336 = vpop.f32.mrf.mxu0
  %v1337 = vadd.f32 0.0, %v1336
  %v1338 = vpop.f32.mrf.mxu0
  %v1339 = vadd.f32 0.0, %v1338
  %v1340 = vpop.f32.mrf.mxu0
  %v1341 = vpop.f32.mrf.mxu0
  %1342 = vdwg.mxu0
  %v1343 = vadd.f32 %v1029, %v1201
  %v1344 = vadd.f32 %v1030, %v1203
  %v1345 = vadd.f32 %v1031, %v1207
  %v1346 = vadd.f32 %v1032, %v1209
  %v1347 = vadd.f32 %v1033, %v1211
  %v1348 = vadd.f32 %v1034, %v1213
  %v1349 = vadd.f32 %v1035, %v1217
  %v1350 = vadd.f32 %v1036, %v1219
  %v1351 = vadd.f32 %v1037, %v1221
  %v1352 = vadd.f32 %v1038, %v1223
  %v1353 = vadd.f32 %v1039, %v1227
  %v1354 = vadd.f32 %v1040, %v1229
  %v1355 = vadd.f32 %v1041, %v1231
  %v1356 = vadd.f32 %v1042, %v1233
  %v1357 = vadd.f32 %v1043, %v1237
  %v1358 = vadd.f32 %v1044, %v1239
  %v1359 = vadd.f32 %v1045, %v1241
  %v1360 = vadd.f32 %v1046, %v1243
  %v1361 = vadd.f32 %v1047, %v1247
  %v1362 = vadd.f32 %v1048, %v1249
  %v1363 = vadd.f32 %v1049, %v1251
  %v1364 = vadd.f32 %v1050, %v1253
  %v1365 = vadd.f32 %v1051, %v1257
  %v1366 = vadd.f32 %v1052, %v1259
  %v1367 = vadd.f32 %v1053, %v1261
  %v1368 = vadd.f32 %v1054, %v1263
  %v1369 = vadd.f32 %v1055, %v1267
  %v1370 = vadd.f32 %v1056, %v1269
  %v1371 = vadd.f32 %v1057, %v1271
  %v1372 = vadd.f32 %v1058, %v1273
  %v1373 = vadd.f32 %v1059, %v1277
  %v1374 = vadd.f32 %v1060, %v1279
  %v1375 = vadd.f32 %v1061, %v1281
  %v1376 = vadd.f32 %v1062, %v1283
  %v1377 = vadd.f32 %v1063, %v1287
  %v1378 = vadd.f32 %v1064, %v1289
  %v1379 = vadd.f32 %v1065, %v1291
  %v1380 = vadd.f32 %v1066, %v1293
  %v1381 = vadd.f32 %v1067, %v1297
  %v1382 = vadd.f32 %v1068, %v1299
  %v1383 = vadd.f32 %v1069, %v1301
  %v1384 = vadd.f32 %v1070, %v1303
  %v1385 = vadd.f32 %v1071, %v1307
  %v1386 = vadd.f32 %v1072, %v1309
  %v1387 = vadd.f32 %v1073, %v1311
  %v1388 = vadd.f32 %v1074, %v1313
  %v1389 = vadd.f32 %v1075, %v1317
  %v1390 = vadd.f32 %v1076, %v1319
  %v1391 = vadd.f32 %v1077, %v1321
  %v1392 = vadd.f32 %v1078, %v1323
  %v1393 = vadd.f32 %v1079, %v1327
  %v1394 = vadd.f32 %v1080, %v1329
  %v1395 = vadd.f32 %v1081, %v1331
  %v1396 = vadd.f32 %v1082, %v1333
  %v1397 = vadd.f32 %v1083, %v1337
  %v1398 = vadd.f32 %v1084, %v1339
  %s1399 = scalar_lea.vmem %s1, 384
  %v1400 = vld [vmem:[%s1399] sm:$0xff]
  %v1401 = vld [vmem:[%s1399 + $0x8] sm:$0xff]
  %v1402 = vld [vmem:[%s1399 + $0x10] sm:$0xff]
  %v1403 = vld [vmem:[%s1399 + $0x18] sm:$0xff]
  %v1404 = vld [vmem:[%s1399 + $0x20] sm:$0xff]
  %v1405 = vld [vmem:[%s1399 + $0x28] sm:$0xff]
  %v1406 = vld [vmem:[%s1399 + $0x30] sm:$0xff]
  %v1407 = vld [vmem:[%s1399 + $0x38] sm:$0xff]
  %v1408 = vld [vmem:[%s1399 + $0x40] sm:$0xff]
  %v1409 = vld [vmem:[%s1399 + $0x48] sm:$0xff]
  %v1410 = vld [vmem:[%s1399 + $0x50] sm:$0xff]
  %v1411 = vld [vmem:[%s1399 + $0x58] sm:$0xff]
  %v1424 = vunpack.c.l.b16 %v1400
  %v1425 = vunpack.c.h.b16 %v1400
  %v1426 = vunpack.c.l.b16 %v1401
  %v1427 = vunpack.c.h.b16 %v1401
  %v1428 = vunpack.c.l.b16 %v1402
  %v1429 = vunpack.c.h.b16 %v1402
  %v1430 = vunpack.c.l.b16 %v1403
  %v1431 = vunpack.c.h.b16 %v1403
  %v1432 = vunpack.c.l.b16 %v1404
  %v1433 = vunpack.c.h.b16 %v1404
  %v1434 = vunpack.c.l.b16 %v1405
  %v1435 = vunpack.c.h.b16 %v1405
  %v1436 = vunpack.c.l.b16 %v1406
  %v1437 = vunpack.c.h.b16 %v1406
  %v1438 = vunpack.c.l.b16 %v1407
  %v1439 = vunpack.c.h.b16 %v1407
  %v1440 = vunpack.c.l.b16 %v1408
  %v1441 = vunpack.c.h.b16 %v1408
  %v1442 = vunpack.c.l.b16 %v1409
  %v1443 = vunpack.c.h.b16 %v1409
  %v1444 = vunpack.c.l.b16 %v1410
  %v1445 = vunpack.c.h.b16 %v1410
  %v1446 = vunpack.c.l.b16 %v1411
  %v1447 = vunpack.c.h.b16 %v1411
  %v1448 = vpack.c.b16 %v1426, %v1424
  %v1449 = vpack.c.b16 %v1427, %v1425
  %v1450 = vpack.c.b16 %v1430, %v1428
  %v1451 = vpack.c.b16 %v1431, %v1429
  %v1452 = vpack.c.b16 %v1434, %v1432
  %v1453 = vpack.c.b16 %v1435, %v1433
  %v1454 = vpack.c.b16 %v1438, %v1436
  %v1455 = vpack.c.b16 %v1439, %v1437
  %v1456 = vpack.c.b16 %v1442, %v1440
  %v1457 = vpack.c.b16 %v1443, %v1441
  %v1458 = vpack.c.b16 %v1446, %v1444
  %v1459 = vpack.c.b16 %v1447, %v1445
  %1472 = vmatprep.subr.bf16.mxu0 0
  %1473 = vmatpush1.bf16.msra.mxu0 0
  %1474 = vmatprep.subr.bf16.mxu0 0
  %1475 = vmatpush1.bf16.msra.mxu0 0
  %1476 = vmatprep.subr.bf16.mxu0 %v1459
  %1477 = vmatpush1.bf16.msra.mxu0 %v1458
  %1478 = vmatprep.subr.bf16.mxu0 %v1457
  %1479 = vmatpush1.bf16.msra.mxu0 %v1456
  %1480 = vmatprep.subr.bf16.mxu0 %v1455
  %1481 = vmatpush1.bf16.msra.mxu0 %v1454
  %1482 = vmatprep.subr.bf16.mxu0 %v1453
  %1483 = vmatpush1.bf16.msra.mxu0 %v1452
  %1484 = vmatprep.subr.bf16.mxu0 %v1451
  %1485 = vmatpush1.bf16.msra.mxu0 %v1450
  %1486 = vmatprep.subr.bf16.mxu0 %v1449
  %1487 = vmatpush1.bf16.msra.mxu0 %v1448
  %1488 = vmatprep.subr.bf16.mxu0 0
  %1489 = vmatpush2.bf16.msra.mxu0 0
  %1490 = vmatprep.subr.bf16.mxu0 0
  %1491 = vmatpush2.bf16.msra.mxu0 0
  %1492 = vmatprep.subr.bf16.mxu0 0
  %1493 = vmatpush2.bf16.msra.mxu0 0
  %1494 = vmatprep.subr.bf16.mxu0 0
  %1495 = vmatpush2.bf16.msra.mxu0 0
  %1496 = vmatprep.subr.bf16.mxu0 0
  %1497 = vmatpush2.bf16.msra.mxu0 0
  %1498 = vmatprep.subr.bf16.mxu0 0
  %1499 = vmatpush2.bf16.msra.mxu0 0
  %1500 = vmatprep.subr.bf16.mxu0 0
  %1501 = vmatpush2.bf16.msra.mxu0 0
  %1502 = vmatprep.subr.bf16.mxu0 0
  %1503 = vmatpush2.bf16.msra.mxu0 0
  %1504 = vmatprep.mubr.bf16.mxu0 0
  %1505 = vmatmul.mubr.bf16.gmra.mxu0 %v225
  %v1506 = vpop.f32.mrf.mxu0
  %v1507 = vpop.f32.mrf.mxu0
  %v1508 = vpop.f32.mrf.mxu0
  %v1509 = vpop.f32.mrf.mxu0
  %1510 = vmatprep.mubr.bf16.mxu0 0
  %1511 = vmatmul.mubr.bf16.gmra.mxu0 %v228
  %v1512 = vpop.f32.mrf.mxu0
  %v1513 = vpop.f32.mrf.mxu0
  %v1514 = vpop.f32.mrf.mxu0
  %v1515 = vpop.f32.mrf.mxu0
  %1516 = vmatprep.mubr.bf16.mxu0 0
  %1517 = vmatmul.mubr.bf16.gmra.mxu0 %v231
  %v1518 = vpop.f32.mrf.mxu0
  %v1519 = vadd.f32 0.0, %v1518
  %v1520 = vpop.f32.mrf.mxu0
  %v1521 = vadd.f32 0.0, %v1520
  %v1522 = vpop.f32.mrf.mxu0
  %v1523 = vadd.f32 0.0, %v1522
  %v1524 = vpop.f32.mrf.mxu0
  %v1525 = vadd.f32 0.0, %v1524
  %1526 = vmatprep.mubr.bf16.mxu0 0
  %1527 = vmatmul.mubr.bf16.gmra.mxu0 %v234
  %v1528 = vpop.f32.mrf.mxu0
  %v1529 = vadd.f32 0.0, %v1528
  %v1530 = vpop.f32.mrf.mxu0
  %v1531 = vadd.f32 0.0, %v1530
  %v1532 = vpop.f32.mrf.mxu0
  %v1533 = vadd.f32 0.0, %v1532
  %v1534 = vpop.f32.mrf.mxu0
  %v1535 = vadd.f32 0.0, %v1534
  %1536 = vmatprep.mubr.bf16.mxu0 0
  %1537 = vmatmul.mubr.bf16.gmra.mxu0 %v237
  %v1538 = vpop.f32.mrf.mxu0
  %v1539 = vadd.f32 0.0, %v1538
  %v1540 = vpop.f32.mrf.mxu0
  %v1541 = vadd.f32 0.0, %v1540
  %v1542 = vpop.f32.mrf.mxu0
  %v1543 = vadd.f32 0.0, %v1542
  %v1544 = vpop.f32.mrf.mxu0
  %v1545 = vadd.f32 0.0, %v1544
  %1546 = vmatprep.mubr.bf16.mxu0 0
  %1547 = vmatmul.mubr.bf16.gmra.mxu0 %v240
  %v1548 = vpop.f32.mrf.mxu0
  %v1549 = vadd.f32 0.0, %v1548
  %v1550 = vpop.f32.mrf.mxu0
  %v1551 = vadd.f32 0.0, %v1550
  %v1552 = vpop.f32.mrf.mxu0
  %v1553 = vadd.f32 0.0, %v1552
  %v1554 = vpop.f32.mrf.mxu0
  %v1555 = vadd.f32 0.0, %v1554
  %1556 = vmatprep.mubr.bf16.mxu0 0
  %1557 = vmatmul.mubr.bf16.gmra.mxu0 %v243
  %v1558 = vpop.f32.mrf.mxu0
  %v1559 = vadd.f32 0.0, %v1558
  %v1560 = vpop.f32.mrf.mxu0
  %v1561 = vadd.f32 0.0, %v1560
  %v1562 = vpop.f32.mrf.mxu0
  %v1563 = vadd.f32 0.0, %v1562
  %v1564 = vpop.f32.mrf.mxu0
  %v1565 = vadd.f32 0.0, %v1564
  %1566 = vmatprep.mubr.bf16.mxu0 0
  %1567 = vmatmul.mubr.bf16.gmra.mxu0 %v246
  %v1568 = vpop.f32.mrf.mxu0
  %v1569 = vadd.f32 0.0, %v1568
  %v1570 = vpop.f32.mrf.mxu0
  %v1571 = vadd.f32 0.0, %v1570
  %v1572 = vpop.f32.mrf.mxu0
  %v1573 = vadd.f32 0.0, %v1572
  %v1574 = vpop.f32.mrf.mxu0
  %v1575 = vadd.f32 0.0, %v1574
  %1576 = vmatprep.mubr.bf16.mxu0 0
  %1577 = vmatmul.mubr.bf16.gmra.mxu0 %v249
  %v1578 = vpop.f32.mrf.mxu0
  %v1579 = vadd.f32 0.0, %v1578
  %v1580 = vpop.f32.mrf.mxu0
  %v1581 = vadd.f32 0.0, %v1580
  %v1582 = vpop.f32.mrf.mxu0
  %v1583 = vadd.f32 0.0, %v1582
  %v1584 = vpop.f32.mrf.mxu0
  %v1585 = vadd.f32 0.0, %v1584
  %1586 = vmatprep.mubr.bf16.mxu0 0
  %1587 = vmatmul.mubr.bf16.gmra.mxu0 %v252
  %v1588 = vpop.f32.mrf.mxu0
  %v1589 = vadd.f32 0.0, %v1588
  %v1590 = vpop.f32.mrf.mxu0
  %v1591 = vadd.f32 0.0, %v1590
  %v1592 = vpop.f32.mrf.mxu0
  %v1593 = vadd.f32 0.0, %v1592
  %v1594 = vpop.f32.mrf.mxu0
  %v1595 = vadd.f32 0.0, %v1594
  %1596 = vmatprep.mubr.bf16.mxu0 0
  %1597 = vmatmul.mubr.bf16.gmra.mxu0 %v255
  %v1598 = vpop.f32.mrf.mxu0
  %v1599 = vadd.f32 0.0, %v1598
  %v1600 = vpop.f32.mrf.mxu0
  %v1601 = vadd.f32 0.0, %v1600
  %v1602 = vpop.f32.mrf.mxu0
  %v1603 = vadd.f32 0.0, %v1602
  %v1604 = vpop.f32.mrf.mxu0
  %v1605 = vadd.f32 0.0, %v1604
  %1606 = vmatprep.mubr.bf16.mxu0 0
  %1607 = vmatmul.mubr.bf16.gmra.mxu0 %v258
  %v1608 = vpop.f32.mrf.mxu0
  %v1609 = vadd.f32 0.0, %v1608
  %v1610 = vpop.f32.mrf.mxu0
  %v1611 = vadd.f32 0.0, %v1610
  %v1612 = vpop.f32.mrf.mxu0
  %v1613 = vadd.f32 0.0, %v1612
  %v1614 = vpop.f32.mrf.mxu0
  %v1615 = vadd.f32 0.0, %v1614
  %1616 = vmatprep.mubr.bf16.mxu0 0
  %1617 = vmatmul.mubr.bf16.gmra.mxu0 %v261
  %v1618 = vpop.f32.mrf.mxu0
  %v1619 = vadd.f32 0.0, %v1618
  %v1620 = vpop.f32.mrf.mxu0
  %v1621 = vadd.f32 0.0, %v1620
  %v1622 = vpop.f32.mrf.mxu0
  %v1623 = vadd.f32 0.0, %v1622
  %v1624 = vpop.f32.mrf.mxu0
  %v1625 = vadd.f32 0.0, %v1624
  %1626 = vmatprep.mubr.bf16.mxu0 0
  %1627 = vmatmul.mubr.bf16.gmra.mxu0 %v264
  %v1628 = vpop.f32.mrf.mxu0
  %v1629 = vadd.f32 0.0, %v1628
  %v1630 = vpop.f32.mrf.mxu0
  %v1631 = vadd.f32 0.0, %v1630
  %v1632 = vpop.f32.mrf.mxu0
  %v1633 = vadd.f32 0.0, %v1632
  %v1634 = vpop.f32.mrf.mxu0
  %v1635 = vadd.f32 0.0, %v1634
  %1636 = vmatprep.mubr.bf16.mxu0 0
  %1637 = vmatmul.mubr.bf16.gmra.mxu0 %v267
  %v1638 = vpop.f32.mrf.mxu0
  %v1639 = vadd.f32 0.0, %v1638
  %v1640 = vpop.f32.mrf.mxu0
  %v1641 = vadd.f32 0.0, %v1640
  %v1642 = vpop.f32.mrf.mxu0
  %v1643 = vadd.f32 0.0, %v1642
  %v1644 = vpop.f32.mrf.mxu0
  %v1645 = vadd.f32 0.0, %v1644
  %1646 = vmatprep.mubr.bf16.mxu0 0
  %1647 = vmatmul.mubr.bf16.gmra.mxu0 %v270
  %v1648 = vpop.f32.mrf.mxu0
  %v1649 = vadd.f32 0.0, %v1648
  %v1650 = vpop.f32.mrf.mxu0
  %v1651 = vadd.f32 0.0, %v1650
  %v1652 = vpop.f32.mrf.mxu0
  %v1653 = vadd.f32 0.0, %v1652
  %v1654 = vpop.f32.mrf.mxu0
  %v1655 = vadd.f32 0.0, %v1654
  %1656 = vdwg.mxu0
  %v1657 = vadd.f32 %v1343, %v1519
  %v1658 = vadd.f32 %v1344, %v1521
  %v1659 = vadd.f32 %v1345, %v1523
  %v1660 = vadd.f32 %v1346, %v1525
  %v1661 = vadd.f32 %v1347, %v1529
  %v1662 = vadd.f32 %v1348, %v1531
  %v1663 = vadd.f32 %v1349, %v1533
  %v1664 = vadd.f32 %v1350, %v1535
  %v1665 = vadd.f32 %v1351, %v1539
  %v1666 = vadd.f32 %v1352, %v1541
  %v1667 = vadd.f32 %v1353, %v1543
  %v1668 = vadd.f32 %v1354, %v1545
  %v1669 = vadd.f32 %v1355, %v1549
  %v1670 = vadd.f32 %v1356, %v1551
  %v1671 = vadd.f32 %v1357, %v1553
  %v1672 = vadd.f32 %v1358, %v1555
  %v1673 = vadd.f32 %v1359, %v1559
  %v1674 = vadd.f32 %v1360, %v1561
  %v1675 = vadd.f32 %v1361, %v1563
  %v1676 = vadd.f32 %v1362, %v1565
  %v1677 = vadd.f32 %v1363, %v1569
  %v1678 = vadd.f32 %v1364, %v1571
  %v1679 = vadd.f32 %v1365, %v1573
  %v1680 = vadd.f32 %v1366, %v1575
  %v1681 = vadd.f32 %v1367, %v1579
  %v1682 = vadd.f32 %v1368, %v1581
  %v1683 = vadd.f32 %v1369, %v1583
  %v1684 = vadd.f32 %v1370, %v1585
  %v1685 = vadd.f32 %v1371, %v1589
  %v1686 = vadd.f32 %v1372, %v1591
  %v1687 = vadd.f32 %v1373, %v1593
  %v1688 = vadd.f32 %v1374, %v1595
  %v1689 = vadd.f32 %v1375, %v1599
  %v1690 = vadd.f32 %v1376, %v1601
  %v1691 = vadd.f32 %v1377, %v1603
  %v1692 = vadd.f32 %v1378, %v1605
  %v1693 = vadd.f32 %v1379, %v1609
  %v1694 = vadd.f32 %v1380, %v1611
  %v1695 = vadd.f32 %v1381, %v1613
  %v1696 = vadd.f32 %v1382, %v1615
  %v1697 = vadd.f32 %v1383, %v1619
  %v1698 = vadd.f32 %v1384, %v1621
  %v1699 = vadd.f32 %v1385, %v1623
  %v1700 = vadd.f32 %v1386, %v1625
  %v1701 = vadd.f32 %v1387, %v1629
  %v1702 = vadd.f32 %v1388, %v1631
  %v1703 = vadd.f32 %v1389, %v1633
  %v1704 = vadd.f32 %v1390, %v1635
  %v1705 = vadd.f32 %v1391, %v1639
  %v1706 = vadd.f32 %v1392, %v1641
  %v1707 = vadd.f32 %v1393, %v1643
  %v1708 = vadd.f32 %v1394, %v1645
  %v1709 = vadd.f32 %v1395, %v1649
  %v1710 = vadd.f32 %v1396, %v1651
  %v1711 = vadd.f32 %v1397, %v1653
  %v1712 = vadd.f32 %v1398, %v1655
  %v1713 = vld [vmem:[%s2] sm:$0xff]
  %v1714 = vld [vmem:[%s2 + $0x8] sm:$0xff]
  %v1715 = vld [vmem:[%s2 + $0x10] sm:$0xff]
  %v1716 = vld [vmem:[%s2 + $0x18] sm:$0xff]
  %v1717 = vld [vmem:[%s2 + $0x20] sm:$0xff]
  %v1718 = vld [vmem:[%s2 + $0x28] sm:$0xff]
  %v1719 = vld [vmem:[%s2 + $0x30] sm:$0xff]
  %v1720 = vld [vmem:[%s2 + $0x38] sm:$0xff]
  %v1721 = vld [vmem:[%s2 + $0x40] sm:$0xff]
  %v1722 = vld [vmem:[%s2 + $0x48] sm:$0xff]
  %v1723 = vld [vmem:[%s2 + $0x50] sm:$0xff]
  %v1724 = vld [vmem:[%s2 + $0x58] sm:$0xff]
  %v1737 = vunpack.c.l.b16 %v1713
  %v1738 = vunpack.c.h.b16 %v1713
  %v1739 = vunpack.c.l.b16 %v1714
  %v1740 = vunpack.c.h.b16 %v1714
  %v1741 = vunpack.c.l.b16 %v1715
  %v1742 = vunpack.c.h.b16 %v1715
  %v1743 = vunpack.c.l.b16 %v1716
  %v1744 = vunpack.c.h.b16 %v1716
  %v1745 = vunpack.c.l.b16 %v1717
  %v1746 = vunpack.c.h.b16 %v1717
  %v1747 = vunpack.c.l.b16 %v1718
  %v1748 = vunpack.c.h.b16 %v1718
  %v1749 = vunpack.c.l.b16 %v1719
  %v1750 = vunpack.c.h.b16 %v1719
  %v1751 = vunpack.c.l.b16 %v1720
  %v1752 = vunpack.c.h.b16 %v1720
  %v1753 = vunpack.c.l.b16 %v1721
  %v1754 = vunpack.c.h.b16 %v1721
  %v1755 = vunpack.c.l.b16 %v1722
  %v1756 = vunpack.c.h.b16 %v1722
  %v1757 = vunpack.c.l.b16 %v1723
  %v1758 = vunpack.c.h.b16 %v1723
  %v1759 = vunpack.c.l.b16 %v1724
  %v1760 = vunpack.c.h.b16 %v1724
  %v1761 = vpack.c.b16 %v1739, %v1737
  %v1762 = vpack.c.b16 %v1740, %v1738
  %v1763 = vpack.c.b16 %v1743, %v1741
  %v1764 = vpack.c.b16 %v1744, %v1742
  %v1765 = vpack.c.b16 %v1747, %v1745
  %v1766 = vpack.c.b16 %v1748, %v1746
  %v1767 = vpack.c.b16 %v1751, %v1749
  %v1768 = vpack.c.b16 %v1752, %v1750
  %v1769 = vpack.c.b16 %v1755, %v1753
  %v1770 = vpack.c.b16 %v1756, %v1754
  %v1771 = vpack.c.b16 %v1759, %v1757
  %v1772 = vpack.c.b16 %v1760, %v1758
  %1785 = vmatprep.subr.bf16.mxu0 0
  %1786 = vmatpush1.bf16.msra.mxu0 0
  %1787 = vmatprep.subr.bf16.mxu0 0
  %1788 = vmatpush1.bf16.msra.mxu0 0
  %1789 = vmatprep.subr.bf16.mxu0 %v1772
  %1790 = vmatpush1.bf16.msra.mxu0 %v1771
  %1791 = vmatprep.subr.bf16.mxu0 %v1770
  %1792 = vmatpush1.bf16.msra.mxu0 %v1769
  %1793 = vmatprep.subr.bf16.mxu0 %v1768
  %1794 = vmatpush1.bf16.msra.mxu0 %v1767
  %1795 = vmatprep.subr.bf16.mxu0 %v1766
  %1796 = vmatpush1.bf16.msra.mxu0 %v1765
  %1797 = vmatprep.subr.bf16.mxu0 %v1764
  %1798 = vmatpush1.bf16.msra.mxu0 %v1763
  %1799 = vmatprep.subr.bf16.mxu0 %v1762
  %1800 = vmatpush1.bf16.msra.mxu0 %v1761
  %1801 = vmatprep.subr.bf16.mxu0 0
  %1802 = vmatpush2.bf16.msra.mxu0 0
  %1803 = vmatprep.subr.bf16.mxu0 0
  %1804 = vmatpush2.bf16.msra.mxu0 0
  %1805 = vmatprep.subr.bf16.mxu0 0
  %1806 = vmatpush2.bf16.msra.mxu0 0
  %1807 = vmatprep.subr.bf16.mxu0 0
  %1808 = vmatpush2.bf16.msra.mxu0 0
  %1809 = vmatprep.subr.bf16.mxu0 0
  %1810 = vmatpush2.bf16.msra.mxu0 0
  %1811 = vmatprep.subr.bf16.mxu0 0
  %1812 = vmatpush2.bf16.msra.mxu0 0
  %1813 = vmatprep.subr.bf16.mxu0 0
  %1814 = vmatpush2.bf16.msra.mxu0 0
  %1815 = vmatprep.subr.bf16.mxu0 0
  %1816 = vmatpush2.bf16.msra.mxu0 0
  %1817 = vmatprep.mubr.bf16.mxu0 0
  %1818 = vmatmul.mubr.bf16.gmra.mxu0 %v225
  %v1819 = vpop.f32.mrf.mxu0
  %v1820 = vadd.f32 0.0, %v1819
  %v1821 = vpop.f32.mrf.mxu0
  %v1822 = vadd.f32 0.0, %v1821
  %v1823 = vpop.f32.mrf.mxu0
  %v1824 = vadd.f32 0.0, %v1823
  %v1825 = vpop.f32.mrf.mxu0
  %v1826 = vadd.f32 0.0, %v1825
  %1827 = vmatprep.mubr.bf16.mxu0 0
  %1828 = vmatmul.mubr.bf16.gmra.mxu0 %v228
  %v1829 = vpop.f32.mrf.mxu0
  %v1830 = vadd.f32 0.0, %v1829
  %v1831 = vpop.f32.mrf.mxu0
  %v1832 = vadd.f32 0.0, %v1831
  %v1833 = vpop.f32.mrf.mxu0
  %v1834 = vadd.f32 0.0, %v1833
  %v1835 = vpop.f32.mrf.mxu0
  %v1836 = vadd.f32 0.0, %v1835
  %1837 = vmatprep.mubr.bf16.mxu0 0
  %1838 = vmatmul.mubr.bf16.gmra.mxu0 %v231
  %v1839 = vpop.f32.mrf.mxu0
  %v1840 = vadd.f32 0.0, %v1839
  %v1841 = vpop.f32.mrf.mxu0
  %v1842 = vadd.f32 0.0, %v1841
  %v1843 = vpop.f32.mrf.mxu0
  %v1844 = vadd.f32 0.0, %v1843
  %v1845 = vpop.f32.mrf.mxu0
  %v1846 = vadd.f32 0.0, %v1845
  %1847 = vmatprep.mubr.bf16.mxu0 0
  %1848 = vmatmul.mubr.bf16.gmra.mxu0 %v234
  %v1849 = vpop.f32.mrf.mxu0
  %v1850 = vadd.f32 0.0, %v1849
  %v1851 = vpop.f32.mrf.mxu0
  %v1852 = vadd.f32 0.0, %v1851
  %v1853 = vpop.f32.mrf.mxu0
  %v1854 = vadd.f32 0.0, %v1853
  %v1855 = vpop.f32.mrf.mxu0
  %v1856 = vadd.f32 0.0, %v1855
  %1857 = vmatprep.mubr.bf16.mxu0 0
  %1858 = vmatmul.mubr.bf16.gmra.mxu0 %v237
  %v1859 = vpop.f32.mrf.mxu0
  %v1860 = vadd.f32 0.0, %v1859
  %v1861 = vpop.f32.mrf.mxu0
  %v1862 = vadd.f32 0.0, %v1861
  %v1863 = vpop.f32.mrf.mxu0
  %v1864 = vadd.f32 0.0, %v1863
  %v1865 = vpop.f32.mrf.mxu0
  %v1866 = vadd.f32 0.0, %v1865
  %1867 = vmatprep.mubr.bf16.mxu0 0
  %1868 = vmatmul.mubr.bf16.gmra.mxu0 %v240
  %v1869 = vpop.f32.mrf.mxu0
  %v1870 = vadd.f32 0.0, %v1869
  %v1871 = vpop.f32.mrf.mxu0
  %v1872 = vadd.f32 0.0, %v1871
  %v1873 = vpop.f32.mrf.mxu0
  %v1874 = vadd.f32 0.0, %v1873
  %v1875 = vpop.f32.mrf.mxu0
  %v1876 = vadd.f32 0.0, %v1875
  %1877 = vmatprep.mubr.bf16.mxu0 0
  %1878 = vmatmul.mubr.bf16.gmra.mxu0 %v243
  %v1879 = vpop.f32.mrf.mxu0
  %v1880 = vadd.f32 0.0, %v1879
  %v1881 = vpop.f32.mrf.mxu0
  %v1882 = vadd.f32 0.0, %v1881
  %v1883 = vpop.f32.mrf.mxu0
  %v1884 = vadd.f32 0.0, %v1883
  %v1885 = vpop.f32.mrf.mxu0
  %v1886 = vadd.f32 0.0, %v1885
  %1887 = vmatprep.mubr.bf16.mxu0 0
  %1888 = vmatmul.mubr.bf16.gmra.mxu0 %v246
  %v1889 = vpop.f32.mrf.mxu0
  %v1890 = vadd.f32 0.0, %v1889
  %v1891 = vpop.f32.mrf.mxu0
  %v1892 = vadd.f32 0.0, %v1891
  %v1893 = vpop.f32.mrf.mxu0
  %v1894 = vadd.f32 0.0, %v1893
  %v1895 = vpop.f32.mrf.mxu0
  %v1896 = vadd.f32 0.0, %v1895
  %1897 = vmatprep.mubr.bf16.mxu0 0
  %1898 = vmatmul.mubr.bf16.gmra.mxu0 %v249
  %v1899 = vpop.f32.mrf.mxu0
  %v1900 = vadd.f32 0.0, %v1899
  %v1901 = vpop.f32.mrf.mxu0
  %v1902 = vadd.f32 0.0, %v1901
  %v1903 = vpop.f32.mrf.mxu0
  %v1904 = vadd.f32 0.0, %v1903
  %v1905 = vpop.f32.mrf.mxu0
  %v1906 = vadd.f32 0.0, %v1905
  %1907 = vmatprep.mubr.bf16.mxu0 0
  %1908 = vmatmul.mubr.bf16.gmra.mxu0 %v252
  %v1909 = vpop.f32.mrf.mxu0
  %v1910 = vadd.f32 0.0, %v1909
  %v1911 = vpop.f32.mrf.mxu0
  %v1912 = vadd.f32 0.0, %v1911
  %v1913 = vpop.f32.mrf.mxu0
  %v1914 = vadd.f32 0.0, %v1913
  %v1915 = vpop.f32.mrf.mxu0
  %v1916 = vadd.f32 0.0, %v1915
  %1917 = vmatprep.mubr.bf16.mxu0 0
  %1918 = vmatmul.mubr.bf16.gmra.mxu0 %v255
  %v1919 = vpop.f32.mrf.mxu0
  %v1920 = vadd.f32 0.0, %v1919
  %v1921 = vpop.f32.mrf.mxu0
  %v1922 = vadd.f32 0.0, %v1921
  %v1923 = vpop.f32.mrf.mxu0
  %v1924 = vadd.f32 0.0, %v1923
  %v1925 = vpop.f32.mrf.mxu0
  %v1926 = vadd.f32 0.0, %v1925
  %1927 = vmatprep.mubr.bf16.mxu0 0
  %1928 = vmatmul.mubr.bf16.gmra.mxu0 %v258
  %v1929 = vpop.f32.mrf.mxu0
  %v1930 = vadd.f32 0.0, %v1929
  %v1931 = vpop.f32.mrf.mxu0
  %v1932 = vadd.f32 0.0, %v1931
  %v1933 = vpop.f32.mrf.mxu0
  %v1934 = vadd.f32 0.0, %v1933
  %v1935 = vpop.f32.mrf.mxu0
  %v1936 = vadd.f32 0.0, %v1935
  %1937 = vmatprep.mubr.bf16.mxu0 0
  %1938 = vmatmul.mubr.bf16.gmra.mxu0 %v261
  %v1939 = vpop.f32.mrf.mxu0
  %v1940 = vadd.f32 0.0, %v1939
  %v1941 = vpop.f32.mrf.mxu0
  %v1942 = vadd.f32 0.0, %v1941
  %v1943 = vpop.f32.mrf.mxu0
  %v1944 = vadd.f32 0.0, %v1943
  %v1945 = vpop.f32.mrf.mxu0
  %v1946 = vadd.f32 0.0, %v1945
  %1947 = vmatprep.mubr.bf16.mxu0 0
  %1948 = vmatmul.mubr.bf16.gmra.mxu0 %v264
  %v1949 = vpop.f32.mrf.mxu0
  %v1950 = vadd.f32 0.0, %v1949
  %v1951 = vpop.f32.mrf.mxu0
  %v1952 = vadd.f32 0.0, %v1951
  %v1953 = vpop.f32.mrf.mxu0
  %v1954 = vadd.f32 0.0, %v1953
  %v1955 = vpop.f32.mrf.mxu0
  %v1956 = vadd.f32 0.0, %v1955
  %1957 = vmatprep.mubr.bf16.mxu0 0
  %1958 = vmatmul.mubr.bf16.gmra.mxu0 %v267
  %v1959 = vpop.f32.mrf.mxu0
  %v1960 = vpop.f32.mrf.mxu0
  %v1961 = vpop.f32.mrf.mxu0
  %v1962 = vpop.f32.mrf.mxu0
  %1963 = vmatprep.mubr.bf16.mxu0 0
  %1964 = vmatmul.mubr.bf16.gmra.mxu0 %v270
  %v1965 = vpop.f32.mrf.mxu0
  %v1966 = vpop.f32.mrf.mxu0
  %v1967 = vpop.f32.mrf.mxu0
  %v1968 = vpop.f32.mrf.mxu0
  %1969 = vdwg.mxu0
  %s1970 = scalar_lea.vmem %s2, 96
  %v1971 = vld [vmem:[%s1970] sm:$0xff]
  %v1972 = vld [vmem:[%s1970 + $0x8] sm:$0xff]
  %v1973 = vld [vmem:[%s1970 + $0x10] sm:$0xff]
  %v1974 = vld [vmem:[%s1970 + $0x18] sm:$0xff]
  %v1975 = vld [vmem:[%s1970 + $0x20] sm:$0xff]
  %v1976 = vld [vmem:[%s1970 + $0x28] sm:$0xff]
  %v1977 = vld [vmem:[%s1970 + $0x30] sm:$0xff]
  %v1978 = vld [vmem:[%s1970 + $0x38] sm:$0xff]
  %v1979 = vld [vmem:[%s1970 + $0x40] sm:$0xff]
  %v1980 = vld [vmem:[%s1970 + $0x48] sm:$0xff]
  %v1981 = vld [vmem:[%s1970 + $0x50] sm:$0xff]
  %v1982 = vld [vmem:[%s1970 + $0x58] sm:$0xff]
  %v1995 = vunpack.c.l.b16 %v1971
  %v1996 = vunpack.c.h.b16 %v1971
  %v1997 = vunpack.c.l.b16 %v1972
  %v1998 = vunpack.c.h.b16 %v1972
  %v1999 = vunpack.c.l.b16 %v1973
  %v2000 = vunpack.c.h.b16 %v1973
  %v2001 = vunpack.c.l.b16 %v1974
  %v2002 = vunpack.c.h.b16 %v1974
  %v2003 = vunpack.c.l.b16 %v1975
  %v2004 = vunpack.c.h.b16 %v1975
  %v2005 = vunpack.c.l.b16 %v1976
  %v2006 = vunpack.c.h.b16 %v1976
  %v2007 = vunpack.c.l.b16 %v1977
  %v2008 = vunpack.c.h.b16 %v1977
  %v2009 = vunpack.c.l.b16 %v1978
  %v2010 = vunpack.c.h.b16 %v1978
  %v2011 = vunpack.c.l.b16 %v1979
  %v2012 = vunpack.c.h.b16 %v1979
  %v2013 = vunpack.c.l.b16 %v1980
  %v2014 = vunpack.c.h.b16 %v1980
  %v2015 = vunpack.c.l.b16 %v1981
  %v2016 = vunpack.c.h.b16 %v1981
  %v2017 = vunpack.c.l.b16 %v1982
  %v2018 = vunpack.c.h.b16 %v1982
  %v2019 = vpack.c.b16 %v1997, %v1995
  %v2020 = vpack.c.b16 %v1998, %v1996
  %v2021 = vpack.c.b16 %v2001, %v1999
  %v2022 = vpack.c.b16 %v2002, %v2000
  %v2023 = vpack.c.b16 %v2005, %v2003
  %v2024 = vpack.c.b16 %v2006, %v2004
  %v2025 = vpack.c.b16 %v2009, %v2007
  %v2026 = vpack.c.b16 %v2010, %v2008
  %v2027 = vpack.c.b16 %v2013, %v2011
  %v2028 = vpack.c.b16 %v2014, %v2012
  %v2029 = vpack.c.b16 %v2017, %v2015
  %v2030 = vpack.c.b16 %v2018, %v2016
  %2043 = vmatprep.subr.bf16.mxu0 0
  %2044 = vmatpush1.bf16.msra.mxu0 0
  %2045 = vmatprep.subr.bf16.mxu0 0
  %2046 = vmatpush1.bf16.msra.mxu0 0
  %2047 = vmatprep.subr.bf16.mxu0 %v2030
  %2048 = vmatpush1.bf16.msra.mxu0 %v2029
  %2049 = vmatprep.subr.bf16.mxu0 %v2028
  %2050 = vmatpush1.bf16.msra.mxu0 %v2027
  %2051 = vmatprep.subr.bf16.mxu0 %v2026
  %2052 = vmatpush1.bf16.msra.mxu0 %v2025
  %2053 = vmatprep.subr.bf16.mxu0 %v2024
  %2054 = vmatpush1.bf16.msra.mxu0 %v2023
  %2055 = vmatprep.subr.bf16.mxu0 %v2022
  %2056 = vmatpush1.bf16.msra.mxu0 %v2021
  %2057 = vmatprep.subr.bf16.mxu0 %v2020
  %2058 = vmatpush1.bf16.msra.mxu0 %v2019
  %2059 = vmatprep.subr.bf16.mxu0 0
  %2060 = vmatpush2.bf16.msra.mxu0 0
  %2061 = vmatprep.subr.bf16.mxu0 0
  %2062 = vmatpush2.bf16.msra.mxu0 0
  %2063 = vmatprep.subr.bf16.mxu0 0
  %2064 = vmatpush2.bf16.msra.mxu0 0
  %2065 = vmatprep.subr.bf16.mxu0 0
  %2066 = vmatpush2.bf16.msra.mxu0 0
  %2067 = vmatprep.subr.bf16.mxu0 0
  %2068 = vmatpush2.bf16.msra.mxu0 0
  %2069 = vmatprep.subr.bf16.mxu0 0
  %2070 = vmatpush2.bf16.msra.mxu0 0
  %2071 = vmatprep.subr.bf16.mxu0 0
  %2072 = vmatpush2.bf16.msra.mxu0 0
  %2073 = vmatprep.subr.bf16.mxu0 0
  %2074 = vmatpush2.bf16.msra.mxu0 0
  %2075 = vmatprep.mubr.bf16.mxu0 0
  %2076 = vmatmul.mubr.bf16.gmra.mxu0 %v225
  %v2077 = vpop.f32.mrf.mxu0
  %v2078 = vpop.f32.mrf.mxu0
  %v2079 = vpop.f32.mrf.mxu0
  %v2080 = vadd.f32 0.0, %v2079
  %v2081 = vpop.f32.mrf.mxu0
  %v2082 = vadd.f32 0.0, %v2081
  %2083 = vmatprep.mubr.bf16.mxu0 0
  %2084 = vmatmul.mubr.bf16.gmra.mxu0 %v228
  %v2085 = vpop.f32.mrf.mxu0
  %v2086 = vadd.f32 0.0, %v2085
  %v2087 = vpop.f32.mrf.mxu0
  %v2088 = vadd.f32 0.0, %v2087
  %v2089 = vpop.f32.mrf.mxu0
  %v2090 = vadd.f32 0.0, %v2089
  %v2091 = vpop.f32.mrf.mxu0
  %v2092 = vadd.f32 0.0, %v2091
  %2093 = vmatprep.mubr.bf16.mxu0 0
  %2094 = vmatmul.mubr.bf16.gmra.mxu0 %v231
  %v2095 = vpop.f32.mrf.mxu0
  %v2096 = vadd.f32 0.0, %v2095
  %v2097 = vpop.f32.mrf.mxu0
  %v2098 = vadd.f32 0.0, %v2097
  %v2099 = vpop.f32.mrf.mxu0
  %v2100 = vadd.f32 0.0, %v2099
  %v2101 = vpop.f32.mrf.mxu0
  %v2102 = vadd.f32 0.0, %v2101
  %2103 = vmatprep.mubr.bf16.mxu0 0
  %2104 = vmatmul.mubr.bf16.gmra.mxu0 %v234
  %v2105 = vpop.f32.mrf.mxu0
  %v2106 = vadd.f32 0.0, %v2105
  %v2107 = vpop.f32.mrf.mxu0
  %v2108 = vadd.f32 0.0, %v2107
  %v2109 = vpop.f32.mrf.mxu0
  %v2110 = vadd.f32 0.0, %v2109
  %v2111 = vpop.f32.mrf.mxu0
  %v2112 = vadd.f32 0.0, %v2111
  %2113 = vmatprep.mubr.bf16.mxu0 0
  %2114 = vmatmul.mubr.bf16.gmra.mxu0 %v237
  %v2115 = vpop.f32.mrf.mxu0
  %v2116 = vadd.f32 0.0, %v2115
  %v2117 = vpop.f32.mrf.mxu0
  %v2118 = vadd.f32 0.0, %v2117
  %v2119 = vpop.f32.mrf.mxu0
  %v2120 = vadd.f32 0.0, %v2119
  %v2121 = vpop.f32.mrf.mxu0
  %v2122 = vadd.f32 0.0, %v2121
  %2123 = vmatprep.mubr.bf16.mxu0 0
  %2124 = vmatmul.mubr.bf16.gmra.mxu0 %v240
  %v2125 = vpop.f32.mrf.mxu0
  %v2126 = vadd.f32 0.0, %v2125
  %v2127 = vpop.f32.mrf.mxu0
  %v2128 = vadd.f32 0.0, %v2127
  %v2129 = vpop.f32.mrf.mxu0
  %v2130 = vadd.f32 0.0, %v2129
  %v2131 = vpop.f32.mrf.mxu0
  %v2132 = vadd.f32 0.0, %v2131
  %2133 = vmatprep.mubr.bf16.mxu0 0
  %2134 = vmatmul.mubr.bf16.gmra.mxu0 %v243
  %v2135 = vpop.f32.mrf.mxu0
  %v2136 = vadd.f32 0.0, %v2135
  %v2137 = vpop.f32.mrf.mxu0
  %v2138 = vadd.f32 0.0, %v2137
  %v2139 = vpop.f32.mrf.mxu0
  %v2140 = vadd.f32 0.0, %v2139
  %v2141 = vpop.f32.mrf.mxu0
  %v2142 = vadd.f32 0.0, %v2141
  %2143 = vmatprep.mubr.bf16.mxu0 0
  %2144 = vmatmul.mubr.bf16.gmra.mxu0 %v246
  %v2145 = vpop.f32.mrf.mxu0
  %v2146 = vadd.f32 0.0, %v2145
  %v2147 = vpop.f32.mrf.mxu0
  %v2148 = vadd.f32 0.0, %v2147
  %v2149 = vpop.f32.mrf.mxu0
  %v2150 = vadd.f32 0.0, %v2149
  %v2151 = vpop.f32.mrf.mxu0
  %v2152 = vadd.f32 0.0, %v2151
  %2153 = vmatprep.mubr.bf16.mxu0 0
  %2154 = vmatmul.mubr.bf16.gmra.mxu0 %v249
  %v2155 = vpop.f32.mrf.mxu0
  %v2156 = vadd.f32 0.0, %v2155
  %v2157 = vpop.f32.mrf.mxu0
  %v2158 = vadd.f32 0.0, %v2157
  %v2159 = vpop.f32.mrf.mxu0
  %v2160 = vadd.f32 0.0, %v2159
  %v2161 = vpop.f32.mrf.mxu0
  %v2162 = vadd.f32 0.0, %v2161
  %2163 = vmatprep.mubr.bf16.mxu0 0
  %2164 = vmatmul.mubr.bf16.gmra.mxu0 %v252
  %v2165 = vpop.f32.mrf.mxu0
  %v2166 = vadd.f32 0.0, %v2165
  %v2167 = vpop.f32.mrf.mxu0
  %v2168 = vadd.f32 0.0, %v2167
  %v2169 = vpop.f32.mrf.mxu0
  %v2170 = vadd.f32 0.0, %v2169
  %v2171 = vpop.f32.mrf.mxu0
  %v2172 = vadd.f32 0.0, %v2171
  %2173 = vmatprep.mubr.bf16.mxu0 0
  %2174 = vmatmul.mubr.bf16.gmra.mxu0 %v255
  %v2175 = vpop.f32.mrf.mxu0
  %v2176 = vadd.f32 0.0, %v2175
  %v2177 = vpop.f32.mrf.mxu0
  %v2178 = vadd.f32 0.0, %v2177
  %v2179 = vpop.f32.mrf.mxu0
  %v2180 = vadd.f32 0.0, %v2179
  %v2181 = vpop.f32.mrf.mxu0
  %v2182 = vadd.f32 0.0, %v2181
  %2183 = vmatprep.mubr.bf16.mxu0 0
  %2184 = vmatmul.mubr.bf16.gmra.mxu0 %v258
  %v2185 = vpop.f32.mrf.mxu0
  %v2186 = vadd.f32 0.0, %v2185
  %v2187 = vpop.f32.mrf.mxu0
  %v2188 = vadd.f32 0.0, %v2187
  %v2189 = vpop.f32.mrf.mxu0
  %v2190 = vadd.f32 0.0, %v2189
  %v2191 = vpop.f32.mrf.mxu0
  %v2192 = vadd.f32 0.0, %v2191
  %2193 = vmatprep.mubr.bf16.mxu0 0
  %2194 = vmatmul.mubr.bf16.gmra.mxu0 %v261
  %v2195 = vpop.f32.mrf.mxu0
  %v2196 = vadd.f32 0.0, %v2195
  %v2197 = vpop.f32.mrf.mxu0
  %v2198 = vadd.f32 0.0, %v2197
  %v2199 = vpop.f32.mrf.mxu0
  %v2200 = vadd.f32 0.0, %v2199
  %v2201 = vpop.f32.mrf.mxu0
  %v2202 = vadd.f32 0.0, %v2201
  %2203 = vmatprep.mubr.bf16.mxu0 0
  %2204 = vmatmul.mubr.bf16.gmra.mxu0 %v264
  %v2205 = vpop.f32.mrf.mxu0
  %v2206 = vadd.f32 0.0, %v2205
  %v2207 = vpop.f32.mrf.mxu0
  %v2208 = vadd.f32 0.0, %v2207
  %v2209 = vpop.f32.mrf.mxu0
  %v2210 = vadd.f32 0.0, %v2209
  %v2211 = vpop.f32.mrf.mxu0
  %v2212 = vadd.f32 0.0, %v2211
  %2213 = vmatprep.mubr.bf16.mxu0 0
  %2214 = vmatmul.mubr.bf16.gmra.mxu0 %v267
  %v2215 = vpop.f32.mrf.mxu0
  %v2216 = vadd.f32 0.0, %v2215
  %v2217 = vpop.f32.mrf.mxu0
  %v2218 = vadd.f32 0.0, %v2217
  %v2219 = vpop.f32.mrf.mxu0
  %v2220 = vpop.f32.mrf.mxu0
  %2221 = vmatprep.mubr.bf16.mxu0 0
  %2222 = vmatmul.mubr.bf16.gmra.mxu0 %v270
  %v2223 = vpop.f32.mrf.mxu0
  %v2224 = vpop.f32.mrf.mxu0
  %v2225 = vpop.f32.mrf.mxu0
  %v2226 = vpop.f32.mrf.mxu0
  %2227 = vdwg.mxu0
  %v2228 = vadd.f32 %v1820, %v2080
  %v2229 = vadd.f32 %v1822, %v2082
  %v2230 = vadd.f32 %v1824, %v2086
  %v2231 = vadd.f32 %v1826, %v2088
  %v2232 = vadd.f32 %v1830, %v2090
  %v2233 = vadd.f32 %v1832, %v2092
  %v2234 = vadd.f32 %v1834, %v2096
  %v2235 = vadd.f32 %v1836, %v2098
  %v2236 = vadd.f32 %v1840, %v2100
  %v2237 = vadd.f32 %v1842, %v2102
  %v2238 = vadd.f32 %v1844, %v2106
  %v2239 = vadd.f32 %v1846, %v2108
  %v2240 = vadd.f32 %v1850, %v2110
  %v2241 = vadd.f32 %v1852, %v2112
  %v2242 = vadd.f32 %v1854, %v2116
  %v2243 = vadd.f32 %v1856, %v2118
  %v2244 = vadd.f32 %v1860, %v2120
  %v2245 = vadd.f32 %v1862, %v2122
  %v2246 = vadd.f32 %v1864, %v2126
  %v2247 = vadd.f32 %v1866, %v2128
  %v2248 = vadd.f32 %v1870, %v2130
  %v2249 = vadd.f32 %v1872, %v2132
  %v2250 = vadd.f32 %v1874, %v2136
  %v2251 = vadd.f32 %v1876, %v2138
  %v2252 = vadd.f32 %v1880, %v2140
  %v2253 = vadd.f32 %v1882, %v2142
  %v2254 = vadd.f32 %v1884, %v2146
  %v2255 = vadd.f32 %v1886, %v2148
  %v2256 = vadd.f32 %v1890, %v2150
  %v2257 = vadd.f32 %v1892, %v2152
  %v2258 = vadd.f32 %v1894, %v2156
  %v2259 = vadd.f32 %v1896, %v2158
  %v2260 = vadd.f32 %v1900, %v2160
  %v2261 = vadd.f32 %v1902, %v2162
  %v2262 = vadd.f32 %v1904, %v2166
  %v2263 = vadd.f32 %v1906, %v2168
  %v2264 = vadd.f32 %v1910, %v2170
  %v2265 = vadd.f32 %v1912, %v2172
  %v2266 = vadd.f32 %v1914, %v2176
  %v2267 = vadd.f32 %v1916, %v2178
  %v2268 = vadd.f32 %v1920, %v2180
  %v2269 = vadd.f32 %v1922, %v2182
  %v2270 = vadd.f32 %v1924, %v2186
  %v2271 = vadd.f32 %v1926, %v2188
  %v2272 = vadd.f32 %v1930, %v2190
  %v2273 = vadd.f32 %v1932, %v2192
  %v2274 = vadd.f32 %v1934, %v2196
  %v2275 = vadd.f32 %v1936, %v2198
  %v2276 = vadd.f32 %v1940, %v2200
  %v2277 = vadd.f32 %v1942, %v2202
  %v2278 = vadd.f32 %v1944, %v2206
  %v2279 = vadd.f32 %v1946, %v2208
  %v2280 = vadd.f32 %v1950, %v2210
  %v2281 = vadd.f32 %v1952, %v2212
  %v2282 = vadd.f32 %v1954, %v2216
  %v2283 = vadd.f32 %v1956, %v2218
  %s2284 = scalar_lea.vmem %s2, 192
  %v2285 = vld [vmem:[%s2284] sm:$0xff]
  %v2286 = vld [vmem:[%s2284 + $0x8] sm:$0xff]
  %v2287 = vld [vmem:[%s2284 + $0x10] sm:$0xff]
  %v2288 = vld [vmem:[%s2284 + $0x18] sm:$0xff]
  %v2289 = vld [vmem:[%s2284 + $0x20] sm:$0xff]
  %v2290 = vld [vmem:[%s2284 + $0x28] sm:$0xff]
  %v2291 = vld [vmem:[%s2284 + $0x30] sm:$0xff]
  %v2292 = vld [vmem:[%s2284 + $0x38] sm:$0xff]
  %v2293 = vld [vmem:[%s2284 + $0x40] sm:$0xff]
  %v2294 = vld [vmem:[%s2284 + $0x48] sm:$0xff]
  %v2295 = vld [vmem:[%s2284 + $0x50] sm:$0xff]
  %v2296 = vld [vmem:[%s2284 + $0x58] sm:$0xff]
  %v2309 = vunpack.c.l.b16 %v2285
  %v2310 = vunpack.c.h.b16 %v2285
  %v2311 = vunpack.c.l.b16 %v2286
  %v2312 = vunpack.c.h.b16 %v2286
  %v2313 = vunpack.c.l.b16 %v2287
  %v2314 = vunpack.c.h.b16 %v2287
  %v2315 = vunpack.c.l.b16 %v2288
  %v2316 = vunpack.c.h.b16 %v2288
  %v2317 = vunpack.c.l.b16 %v2289
  %v2318 = vunpack.c.h.b16 %v2289
  %v2319 = vunpack.c.l.b16 %v2290
  %v2320 = vunpack.c.h.b16 %v2290
  %v2321 = vunpack.c.l.b16 %v2291
  %v2322 = vunpack.c.h.b16 %v2291
  %v2323 = vunpack.c.l.b16 %v2292
  %v2324 = vunpack.c.h.b16 %v2292
  %v2325 = vunpack.c.l.b16 %v2293
  %v2326 = vunpack.c.h.b16 %v2293
  %v2327 = vunpack.c.l.b16 %v2294
  %v2328 = vunpack.c.h.b16 %v2294
  %v2329 = vunpack.c.l.b16 %v2295
  %v2330 = vunpack.c.h.b16 %v2295
  %v2331 = vunpack.c.l.b16 %v2296
  %v2332 = vunpack.c.h.b16 %v2296
  %v2333 = vpack.c.b16 %v2311, %v2309
  %v2334 = vpack.c.b16 %v2312, %v2310
  %v2335 = vpack.c.b16 %v2315, %v2313
  %v2336 = vpack.c.b16 %v2316, %v2314
  %v2337 = vpack.c.b16 %v2319, %v2317
  %v2338 = vpack.c.b16 %v2320, %v2318
  %v2339 = vpack.c.b16 %v2323, %v2321
  %v2340 = vpack.c.b16 %v2324, %v2322
  %v2341 = vpack.c.b16 %v2327, %v2325
  %v2342 = vpack.c.b16 %v2328, %v2326
  %v2343 = vpack.c.b16 %v2331, %v2329
  %v2344 = vpack.c.b16 %v2332, %v2330
  %2357 = vmatprep.subr.bf16.mxu0 0
  %2358 = vmatpush1.bf16.msra.mxu0 0
  %2359 = vmatprep.subr.bf16.mxu0 0
  %2360 = vmatpush1.bf16.msra.mxu0 0
  %2361 = vmatprep.subr.bf16.mxu0 %v2344
  %2362 = vmatpush1.bf16.msra.mxu0 %v2343
  %2363 = vmatprep.subr.bf16.mxu0 %v2342
  %2364 = vmatpush1.bf16.msra.mxu0 %v2341
  %2365 = vmatprep.subr.bf16.mxu0 %v2340
  %2366 = vmatpush1.bf16.msra.mxu0 %v2339
  %2367 = vmatprep.subr.bf16.mxu0 %v2338
  %2368 = vmatpush1.bf16.msra.mxu0 %v2337
  %2369 = vmatprep.subr.bf16.mxu0 %v2336
  %2370 = vmatpush1.bf16.msra.mxu0 %v2335
  %2371 = vmatprep.subr.bf16.mxu0 %v2334
  %2372 = vmatpush1.bf16.msra.mxu0 %v2333
  %2373 = vmatprep.subr.bf16.mxu0 0
  %2374 = vmatpush2.bf16.msra.mxu0 0
  %2375 = vmatprep.subr.bf16.mxu0 0
  %2376 = vmatpush2.bf16.msra.mxu0 0
  %2377 = vmatprep.subr.bf16.mxu0 0
  %2378 = vmatpush2.bf16.msra.mxu0 0
  %2379 = vmatprep.subr.bf16.mxu0 0
  %2380 = vmatpush2.bf16.msra.mxu0 0
  %2381 = vmatprep.subr.bf16.mxu0 0
  %2382 = vmatpush2.bf16.msra.mxu0 0
  %2383 = vmatprep.subr.bf16.mxu0 0
  %2384 = vmatpush2.bf16.msra.mxu0 0
  %2385 = vmatprep.subr.bf16.mxu0 0
  %2386 = vmatpush2.bf16.msra.mxu0 0
  %2387 = vmatprep.subr.bf16.mxu0 0
  %2388 = vmatpush2.bf16.msra.mxu0 0
  %2389 = vmatprep.mubr.bf16.mxu0 0
  %2390 = vmatmul.mubr.bf16.gmra.mxu0 %v225
  %v2391 = vpop.f32.mrf.mxu0
  %v2392 = vpop.f32.mrf.mxu0
  %v2393 = vpop.f32.mrf.mxu0
  %v2394 = vpop.f32.mrf.mxu0
  %2395 = vmatprep.mubr.bf16.mxu0 0
  %2396 = vmatmul.mubr.bf16.gmra.mxu0 %v228
  %v2397 = vpop.f32.mrf.mxu0
  %v2398 = vadd.f32 0.0, %v2397
  %v2399 = vpop.f32.mrf.mxu0
  %v2400 = vadd.f32 0.0, %v2399
  %v2401 = vpop.f32.mrf.mxu0
  %v2402 = vadd.f32 0.0, %v2401
  %v2403 = vpop.f32.mrf.mxu0
  %v2404 = vadd.f32 0.0, %v2403
  %2405 = vmatprep.mubr.bf16.mxu0 0
  %2406 = vmatmul.mubr.bf16.gmra.mxu0 %v231
  %v2407 = vpop.f32.mrf.mxu0
  %v2408 = vadd.f32 0.0, %v2407
  %v2409 = vpop.f32.mrf.mxu0
  %v2410 = vadd.f32 0.0, %v2409
  %v2411 = vpop.f32.mrf.mxu0
  %v2412 = vadd.f32 0.0, %v2411
  %v2413 = vpop.f32.mrf.mxu0
  %v2414 = vadd.f32 0.0, %v2413
  %2415 = vmatprep.mubr.bf16.mxu0 0
  %2416 = vmatmul.mubr.bf16.gmra.mxu0 %v234
  %v2417 = vpop.f32.mrf.mxu0
  %v2418 = vadd.f32 0.0, %v2417
  %v2419 = vpop.f32.mrf.mxu0
  %v2420 = vadd.f32 0.0, %v2419
  %v2421 = vpop.f32.mrf.mxu0
  %v2422 = vadd.f32 0.0, %v2421
  %v2423 = vpop.f32.mrf.mxu0
  %v2424 = vadd.f32 0.0, %v2423
  %2425 = vmatprep.mubr.bf16.mxu0 0
  %2426 = vmatmul.mubr.bf16.gmra.mxu0 %v237
  %v2427 = vpop.f32.mrf.mxu0
  %v2428 = vadd.f32 0.0, %v2427
  %v2429 = vpop.f32.mrf.mxu0
  %v2430 = vadd.f32 0.0, %v2429
  %v2431 = vpop.f32.mrf.mxu0
  %v2432 = vadd.f32 0.0, %v2431
  %v2433 = vpop.f32.mrf.mxu0
  %v2434 = vadd.f32 0.0, %v2433
  %2435 = vmatprep.mubr.bf16.mxu0 0
  %2436 = vmatmul.mubr.bf16.gmra.mxu0 %v240
  %v2437 = vpop.f32.mrf.mxu0
  %v2438 = vadd.f32 0.0, %v2437
  %v2439 = vpop.f32.mrf.mxu0
  %v2440 = vadd.f32 0.0, %v2439
  %v2441 = vpop.f32.mrf.mxu0
  %v2442 = vadd.f32 0.0, %v2441
  %v2443 = vpop.f32.mrf.mxu0
  %v2444 = vadd.f32 0.0, %v2443
  %2445 = vmatprep.mubr.bf16.mxu0 0
  %2446 = vmatmul.mubr.bf16.gmra.mxu0 %v243
  %v2447 = vpop.f32.mrf.mxu0
  %v2448 = vadd.f32 0.0, %v2447
  %v2449 = vpop.f32.mrf.mxu0
  %v2450 = vadd.f32 0.0, %v2449
  %v2451 = vpop.f32.mrf.mxu0
  %v2452 = vadd.f32 0.0, %v2451
  %v2453 = vpop.f32.mrf.mxu0
  %v2454 = vadd.f32 0.0, %v2453
  %2455 = vmatprep.mubr.bf16.mxu0 0
  %2456 = vmatmul.mubr.bf16.gmra.mxu0 %v246
  %v2457 = vpop.f32.mrf.mxu0
  %v2458 = vadd.f32 0.0, %v2457
  %v2459 = vpop.f32.mrf.mxu0
  %v2460 = vadd.f32 0.0, %v2459
  %v2461 = vpop.f32.mrf.mxu0
  %v2462 = vadd.f32 0.0, %v2461
  %v2463 = vpop.f32.mrf.mxu0
  %v2464 = vadd.f32 0.0, %v2463
  %2465 = vmatprep.mubr.bf16.mxu0 0
  %2466 = vmatmul.mubr.bf16.gmra.mxu0 %v249
  %v2467 = vpop.f32.mrf.mxu0
  %v2468 = vadd.f32 0.0, %v2467
  %v2469 = vpop.f32.mrf.mxu0
  %v2470 = vadd.f32 0.0, %v2469
  %v2471 = vpop.f32.mrf.mxu0
  %v2472 = vadd.f32 0.0, %v2471
  %v2473 = vpop.f32.mrf.mxu0
  %v2474 = vadd.f32 0.0, %v2473
  %2475 = vmatprep.mubr.bf16.mxu0 0
  %2476 = vmatmul.mubr.bf16.gmra.mxu0 %v252
  %v2477 = vpop.f32.mrf.mxu0
  %v2478 = vadd.f32 0.0, %v2477
  %v2479 = vpop.f32.mrf.mxu0
  %v2480 = vadd.f32 0.0, %v2479
  %v2481 = vpop.f32.mrf.mxu0
  %v2482 = vadd.f32 0.0, %v2481
  %v2483 = vpop.f32.mrf.mxu0
  %v2484 = vadd.f32 0.0, %v2483
  %2485 = vmatprep.mubr.bf16.mxu0 0
  %2486 = vmatmul.mubr.bf16.gmra.mxu0 %v255
  %v2487 = vpop.f32.mrf.mxu0
  %v2488 = vadd.f32 0.0, %v2487
  %v2489 = vpop.f32.mrf.mxu0
  %v2490 = vadd.f32 0.0, %v2489
  %v2491 = vpop.f32.mrf.mxu0
  %v2492 = vadd.f32 0.0, %v2491
  %v2493 = vpop.f32.mrf.mxu0
  %v2494 = vadd.f32 0.0, %v2493
  %2495 = vmatprep.mubr.bf16.mxu0 0
  %2496 = vmatmul.mubr.bf16.gmra.mxu0 %v258
  %v2497 = vpop.f32.mrf.mxu0
  %v2498 = vadd.f32 0.0, %v2497
  %v2499 = vpop.f32.mrf.mxu0
  %v2500 = vadd.f32 0.0, %v2499
  %v2501 = vpop.f32.mrf.mxu0
  %v2502 = vadd.f32 0.0, %v2501
  %v2503 = vpop.f32.mrf.mxu0
  %v2504 = vadd.f32 0.0, %v2503
  %2505 = vmatprep.mubr.bf16.mxu0 0
  %2506 = vmatmul.mubr.bf16.gmra.mxu0 %v261
  %v2507 = vpop.f32.mrf.mxu0
  %v2508 = vadd.f32 0.0, %v2507
  %v2509 = vpop.f32.mrf.mxu0
  %v2510 = vadd.f32 0.0, %v2509
  %v2511 = vpop.f32.mrf.mxu0
  %v2512 = vadd.f32 0.0, %v2511
  %v2513 = vpop.f32.mrf.mxu0
  %v2514 = vadd.f32 0.0, %v2513
  %2515 = vmatprep.mubr.bf16.mxu0 0
  %2516 = vmatmul.mubr.bf16.gmra.mxu0 %v264
  %v2517 = vpop.f32.mrf.mxu0
  %v2518 = vadd.f32 0.0, %v2517
  %v2519 = vpop.f32.mrf.mxu0
  %v2520 = vadd.f32 0.0, %v2519
  %v2521 = vpop.f32.mrf.mxu0
  %v2522 = vadd.f32 0.0, %v2521
  %v2523 = vpop.f32.mrf.mxu0
  %v2524 = vadd.f32 0.0, %v2523
  %2525 = vmatprep.mubr.bf16.mxu0 0
  %2526 = vmatmul.mubr.bf16.gmra.mxu0 %v267
  %v2527 = vpop.f32.mrf.mxu0
  %v2528 = vadd.f32 0.0, %v2527
  %v2529 = vpop.f32.mrf.mxu0
  %v2530 = vadd.f32 0.0, %v2529
  %v2531 = vpop.f32.mrf.mxu0
  %v2532 = vadd.f32 0.0, %v2531
  %v2533 = vpop.f32.mrf.mxu0
  %v2534 = vadd.f32 0.0, %v2533
  %2535 = vmatprep.mubr.bf16.mxu0 0
  %2536 = vmatmul.mubr.bf16.gmra.mxu0 %v270
  %v2537 = vpop.f32.mrf.mxu0
  %v2538 = vpop.f32.mrf.mxu0
  %v2539 = vpop.f32.mrf.mxu0
  %v2540 = vpop.f32.mrf.mxu0
  %2541 = vdwg.mxu0
  %v2542 = vadd.f32 %v2228, %v2398
  %v2543 = vadd.f32 %v2229, %v2400
  %v2544 = vadd.f32 %v2230, %v2402
  %v2545 = vadd.f32 %v2231, %v2404
  %v2546 = vadd.f32 %v2232, %v2408
  %v2547 = vadd.f32 %v2233, %v2410
  %v2548 = vadd.f32 %v2234, %v2412
  %v2549 = vadd.f32 %v2235, %v2414
  %v2550 = vadd.f32 %v2236, %v2418
  %v2551 = vadd.f32 %v2237, %v2420
  %v2552 = vadd.f32 %v2238, %v2422
  %v2553 = vadd.f32 %v2239, %v2424
  %v2554 = vadd.f32 %v2240, %v2428
  %v2555 = vadd.f32 %v2241, %v2430
  %v2556 = vadd.f32 %v2242, %v2432
  %v2557 = vadd.f32 %v2243, %v2434
  %v2558 = vadd.f32 %v2244, %v2438
  %v2559 = vadd.f32 %v2245, %v2440
  %v2560 = vadd.f32 %v2246, %v2442
  %v2561 = vadd.f32 %v2247, %v2444
  %v2562 = vadd.f32 %v2248, %v2448
  %v2563 = vadd.f32 %v2249, %v2450
  %v2564 = vadd.f32 %v2250, %v2452
  %v2565 = vadd.f32 %v2251, %v2454
  %v2566 = vadd.f32 %v2252, %v2458
  %v2567 = vadd.f32 %v2253, %v2460
  %v2568 = vadd.f32 %v2254, %v2462
  %v2569 = vadd.f32 %v2255, %v2464
  %v2570 = vadd.f32 %v2256, %v2468
  %v2571 = vadd.f32 %v2257, %v2470
  %v2572 = vadd.f32 %v2258, %v2472
  %v2573 = vadd.f32 %v2259, %v2474
  %v2574 = vadd.f32 %v2260, %v2478
  %v2575 = vadd.f32 %v2261, %v2480
  %v2576 = vadd.f32 %v2262, %v2482
  %v2577 = vadd.f32 %v2263, %v2484
  %v2578 = vadd.f32 %v2264, %v2488
  %v2579 = vadd.f32 %v2265, %v2490
  %v2580 = vadd.f32 %v2266, %v2492
  %v2581 = vadd.f32 %v2267, %v2494
  %v2582 = vadd.f32 %v2268, %v2498
  %v2583 = vadd.f32 %v2269, %v2500
  %v2584 = vadd.f32 %v2270, %v2502
  %v2585 = vadd.f32 %v2271, %v2504
  %v2586 = vadd.f32 %v2272, %v2508
  %v2587 = vadd.f32 %v2273, %v2510
  %v2588 = vadd.f32 %v2274, %v2512
  %v2589 = vadd.f32 %v2275, %v2514
  %v2590 = vadd.f32 %v2276, %v2518
  %v2591 = vadd.f32 %v2277, %v2520
  %v2592 = vadd.f32 %v2278, %v2522
  %v2593 = vadd.f32 %v2279, %v2524
  %v2594 = vadd.f32 %v2280, %v2528
  %v2595 = vadd.f32 %v2281, %v2530
  %v2596 = vadd.f32 %v2282, %v2532
  %v2597 = vadd.f32 %v2283, %v2534
  %s2598 = scalar_lea.vmem %s2, 288
  %v2599 = vld [vmem:[%s2598] sm:$0xff]
  %v2600 = vld [vmem:[%s2598 + $0x8] sm:$0xff]
  %v2601 = vld [vmem:[%s2598 + $0x10] sm:$0xff]
  %v2602 = vld [vmem:[%s2598 + $0x18] sm:$0xff]
  %v2603 = vld [vmem:[%s2598 + $0x20] sm:$0xff]
  %v2604 = vld [vmem:[%s2598 + $0x28] sm:$0xff]
  %v2605 = vld [vmem:[%s2598 + $0x30] sm:$0xff]
  %v2606 = vld [vmem:[%s2598 + $0x38] sm:$0xff]
  %v2607 = vld [vmem:[%s2598 + $0x40] sm:$0xff]
  %v2608 = vld [vmem:[%s2598 + $0x48] sm:$0xff]
  %v2609 = vld [vmem:[%s2598 + $0x50] sm:$0xff]
  %v2610 = vld [vmem:[%s2598 + $0x58] sm:$0xff]
  %v2623 = vunpack.c.l.b16 %v2599
  %v2624 = vunpack.c.h.b16 %v2599
  %v2625 = vunpack.c.l.b16 %v2600
  %v2626 = vunpack.c.h.b16 %v2600
  %v2627 = vunpack.c.l.b16 %v2601
  %v2628 = vunpack.c.h.b16 %v2601
  %v2629 = vunpack.c.l.b16 %v2602
  %v2630 = vunpack.c.h.b16 %v2602
  %v2631 = vunpack.c.l.b16 %v2603
  %v2632 = vunpack.c.h.b16 %v2603
  %v2633 = vunpack.c.l.b16 %v2604
  %v2634 = vunpack.c.h.b16 %v2604
  %v2635 = vunpack.c.l.b16 %v2605
  %v2636 = vunpack.c.h.b16 %v2605
  %v2637 = vunpack.c.l.b16 %v2606
  %v2638 = vunpack.c.h.b16 %v2606
  %v2639 = vunpack.c.l.b16 %v2607
  %v2640 = vunpack.c.h.b16 %v2607
  %v2641 = vunpack.c.l.b16 %v2608
  %v2642 = vunpack.c.h.b16 %v2608
  %v2643 = vunpack.c.l.b16 %v2609
  %v2644 = vunpack.c.h.b16 %v2609
  %v2645 = vunpack.c.l.b16 %v2610
  %v2646 = vunpack.c.h.b16 %v2610
  %v2647 = vpack.c.b16 %v2625, %v2623
  %v2648 = vpack.c.b16 %v2626, %v2624
  %v2649 = vpack.c.b16 %v2629, %v2627
  %v2650 = vpack.c.b16 %v2630, %v2628
  %v2651 = vpack.c.b16 %v2633, %v2631
  %v2652 = vpack.c.b16 %v2634, %v2632
  %v2653 = vpack.c.b16 %v2637, %v2635
  %v2654 = vpack.c.b16 %v2638, %v2636
  %v2655 = vpack.c.b16 %v2641, %v2639
  %v2656 = vpack.c.b16 %v2642, %v2640
  %v2657 = vpack.c.b16 %v2645, %v2643
  %v2658 = vpack.c.b16 %v2646, %v2644
  %2671 = vmatprep.subr.bf16.mxu0 0
  %2672 = vmatpush1.bf16.msra.mxu0 0
  %2673 = vmatprep.subr.bf16.mxu0 0
  %2674 = vmatpush1.bf16.msra.mxu0 0
  %2675 = vmatprep.subr.bf16.mxu0 %v2658
  %2676 = vmatpush1.bf16.msra.mxu0 %v2657
  %2677 = vmatprep.subr.bf16.mxu0 %v2656
  %2678 = vmatpush1.bf16.msra.mxu0 %v2655
  %2679 = vmatprep.subr.bf16.mxu0 %v2654
  %2680 = vmatpush1.bf16.msra.mxu0 %v2653
  %2681 = vmatprep.subr.bf16.mxu0 %v2652
  %2682 = vmatpush1.bf16.msra.mxu0 %v2651
  %2683 = vmatprep.subr.bf16.mxu0 %v2650
  %2684 = vmatpush1.bf16.msra.mxu0 %v2649
  %2685 = vmatprep.subr.bf16.mxu0 %v2648
  %2686 = vmatpush1.bf16.msra.mxu0 %v2647
  %2687 = vmatprep.subr.bf16.mxu0 0
  %2688 = vmatpush2.bf16.msra.mxu0 0
  %2689 = vmatprep.subr.bf16.mxu0 0
  %2690 = vmatpush2.bf16.msra.mxu0 0
  %2691 = vmatprep.subr.bf16.mxu0 0
  %2692 = vmatpush2.bf16.msra.mxu0 0
  %2693 = vmatprep.subr.bf16.mxu0 0
  %2694 = vmatpush2.bf16.msra.mxu0 0
  %2695 = vmatprep.subr.bf16.mxu0 0
  %2696 = vmatpush2.bf16.msra.mxu0 0
  %2697 = vmatprep.subr.bf16.mxu0 0
  %2698 = vmatpush2.bf16.msra.mxu0 0
  %2699 = vmatprep.subr.bf16.mxu0 0
  %2700 = vmatpush2.bf16.msra.mxu0 0
  %2701 = vmatprep.subr.bf16.mxu0 0
  %2702 = vmatpush2.bf16.msra.mxu0 0
  %2703 = vmatprep.mubr.bf16.mxu0 0
  %2704 = vmatmul.mubr.bf16.gmra.mxu0 %v225
  %v2705 = vpop.f32.mrf.mxu0
  %v2706 = vpop.f32.mrf.mxu0
  %v2707 = vpop.f32.mrf.mxu0
  %v2708 = vpop.f32.mrf.mxu0
  %2709 = vmatprep.mubr.bf16.mxu0 0
  %2710 = vmatmul.mubr.bf16.gmra.mxu0 %v228
  %v2711 = vpop.f32.mrf.mxu0
  %v2712 = vpop.f32.mrf.mxu0
  %v2713 = vpop.f32.mrf.mxu0
  %v2714 = vadd.f32 0.0, %v2713
  %v2715 = vpop.f32.mrf.mxu0
  %v2716 = vadd.f32 0.0, %v2715
  %2717 = vmatprep.mubr.bf16.mxu0 0
  %2718 = vmatmul.mubr.bf16.gmra.mxu0 %v231
  %v2719 = vpop.f32.mrf.mxu0
  %v2720 = vadd.f32 0.0, %v2719
  %v2721 = vpop.f32.mrf.mxu0
  %v2722 = vadd.f32 0.0, %v2721
  %v2723 = vpop.f32.mrf.mxu0
  %v2724 = vadd.f32 0.0, %v2723
  %v2725 = vpop.f32.mrf.mxu0
  %v2726 = vadd.f32 0.0, %v2725
  %2727 = vmatprep.mubr.bf16.mxu0 0
  %2728 = vmatmul.mubr.bf16.gmra.mxu0 %v234
  %v2729 = vpop.f32.mrf.mxu0
  %v2730 = vadd.f32 0.0, %v2729
  %v2731 = vpop.f32.mrf.mxu0
  %v2732 = vadd.f32 0.0, %v2731
  %v2733 = vpop.f32.mrf.mxu0
  %v2734 = vadd.f32 0.0, %v2733
  %v2735 = vpop.f32.mrf.mxu0
  %v2736 = vadd.f32 0.0, %v2735
  %2737 = vmatprep.mubr.bf16.mxu0 0
  %2738 = vmatmul.mubr.bf16.gmra.mxu0 %v237
  %v2739 = vpop.f32.mrf.mxu0
  %v2740 = vadd.f32 0.0, %v2739
  %v2741 = vpop.f32.mrf.mxu0
  %v2742 = vadd.f32 0.0, %v2741
  %v2743 = vpop.f32.mrf.mxu0
  %v2744 = vadd.f32 0.0, %v2743
  %v2745 = vpop.f32.mrf.mxu0
  %v2746 = vadd.f32 0.0, %v2745
  %2747 = vmatprep.mubr.bf16.mxu0 0
  %2748 = vmatmul.mubr.bf16.gmra.mxu0 %v240
  %v2749 = vpop.f32.mrf.mxu0
  %v2750 = vadd.f32 0.0, %v2749
  %v2751 = vpop.f32.mrf.mxu0
  %v2752 = vadd.f32 0.0, %v2751
  %v2753 = vpop.f32.mrf.mxu0
  %v2754 = vadd.f32 0.0, %v2753
  %v2755 = vpop.f32.mrf.mxu0
  %v2756 = vadd.f32 0.0, %v2755
  %2757 = vmatprep.mubr.bf16.mxu0 0
  %2758 = vmatmul.mubr.bf16.gmra.mxu0 %v243
  %v2759 = vpop.f32.mrf.mxu0
  %v2760 = vadd.f32 0.0, %v2759
  %v2761 = vpop.f32.mrf.mxu0
  %v2762 = vadd.f32 0.0, %v2761
  %v2763 = vpop.f32.mrf.mxu0
  %v2764 = vadd.f32 0.0, %v2763
  %v2765 = vpop.f32.mrf.mxu0
  %v2766 = vadd.f32 0.0, %v2765
  %2767 = vmatprep.mubr.bf16.mxu0 0
  %2768 = vmatmul.mubr.bf16.gmra.mxu0 %v246
  %v2769 = vpop.f32.mrf.mxu0
  %v2770 = vadd.f32 0.0, %v2769
  %v2771 = vpop.f32.mrf.mxu0
  %v2772 = vadd.f32 0.0, %v2771
  %v2773 = vpop.f32.mrf.mxu0
  %v2774 = vadd.f32 0.0, %v2773
  %v2775 = vpop.f32.mrf.mxu0
  %v2776 = vadd.f32 0.0, %v2775
  %2777 = vmatprep.mubr.bf16.mxu0 0
  %2778 = vmatmul.mubr.bf16.gmra.mxu0 %v249
  %v2779 = vpop.f32.mrf.mxu0
  %v2780 = vadd.f32 0.0, %v2779
  %v2781 = vpop.f32.mrf.mxu0
  %v2782 = vadd.f32 0.0, %v2781
  %v2783 = vpop.f32.mrf.mxu0
  %v2784 = vadd.f32 0.0, %v2783
  %v2785 = vpop.f32.mrf.mxu0
  %v2786 = vadd.f32 0.0, %v2785
  %2787 = vmatprep.mubr.bf16.mxu0 0
  %2788 = vmatmul.mubr.bf16.gmra.mxu0 %v252
  %v2789 = vpop.f32.mrf.mxu0
  %v2790 = vadd.f32 0.0, %v2789
  %v2791 = vpop.f32.mrf.mxu0
  %v2792 = vadd.f32 0.0, %v2791
  %v2793 = vpop.f32.mrf.mxu0
  %v2794 = vadd.f32 0.0, %v2793
  %v2795 = vpop.f32.mrf.mxu0
  %v2796 = vadd.f32 0.0, %v2795
  %2797 = vmatprep.mubr.bf16.mxu0 0
  %2798 = vmatmul.mubr.bf16.gmra.mxu0 %v255
  %v2799 = vpop.f32.mrf.mxu0
  %v2800 = vadd.f32 0.0, %v2799
  %v2801 = vpop.f32.mrf.mxu0
  %v2802 = vadd.f32 0.0, %v2801
  %v2803 = vpop.f32.mrf.mxu0
  %v2804 = vadd.f32 0.0, %v2803
  %v2805 = vpop.f32.mrf.mxu0
  %v2806 = vadd.f32 0.0, %v2805
  %2807 = vmatprep.mubr.bf16.mxu0 0
  %2808 = vmatmul.mubr.bf16.gmra.mxu0 %v258
  %v2809 = vpop.f32.mrf.mxu0
  %v2810 = vadd.f32 0.0, %v2809
  %v2811 = vpop.f32.mrf.mxu0
  %v2812 = vadd.f32 0.0, %v2811
  %v2813 = vpop.f32.mrf.mxu0
  %v2814 = vadd.f32 0.0, %v2813
  %v2815 = vpop.f32.mrf.mxu0
  %v2816 = vadd.f32 0.0, %v2815
  %2817 = vmatprep.mubr.bf16.mxu0 0
  %2818 = vmatmul.mubr.bf16.gmra.mxu0 %v261
  %v2819 = vpop.f32.mrf.mxu0
  %v2820 = vadd.f32 0.0, %v2819
  %v2821 = vpop.f32.mrf.mxu0
  %v2822 = vadd.f32 0.0, %v2821
  %v2823 = vpop.f32.mrf.mxu0
  %v2824 = vadd.f32 0.0, %v2823
  %v2825 = vpop.f32.mrf.mxu0
  %v2826 = vadd.f32 0.0, %v2825
  %2827 = vmatprep.mubr.bf16.mxu0 0
  %2828 = vmatmul.mubr.bf16.gmra.mxu0 %v264
  %v2829 = vpop.f32.mrf.mxu0
  %v2830 = vadd.f32 0.0, %v2829
  %v2831 = vpop.f32.mrf.mxu0
  %v2832 = vadd.f32 0.0, %v2831
  %v2833 = vpop.f32.mrf.mxu0
  %v2834 = vadd.f32 0.0, %v2833
  %v2835 = vpop.f32.mrf.mxu0
  %v2836 = vadd.f32 0.0, %v2835
  %2837 = vmatprep.mubr.bf16.mxu0 0
  %2838 = vmatmul.mubr.bf16.gmra.mxu0 %v267
  %v2839 = vpop.f32.mrf.mxu0
  %v2840 = vadd.f32 0.0, %v2839
  %v2841 = vpop.f32.mrf.mxu0
  %v2842 = vadd.f32 0.0, %v2841
  %v2843 = vpop.f32.mrf.mxu0
  %v2844 = vadd.f32 0.0, %v2843
  %v2845 = vpop.f32.mrf.mxu0
  %v2846 = vadd.f32 0.0, %v2845
  %2847 = vmatprep.mubr.bf16.mxu0 0
  %2848 = vmatmul.mubr.bf16.gmra.mxu0 %v270
  %v2849 = vpop.f32.mrf.mxu0
  %v2850 = vadd.f32 0.0, %v2849
  %v2851 = vpop.f32.mrf.mxu0
  %v2852 = vadd.f32 0.0, %v2851
  %v2853 = vpop.f32.mrf.mxu0
  %v2854 = vpop.f32.mrf.mxu0
  %2855 = vdwg.mxu0
  %v2856 = vadd.f32 %v2542, %v2714
  %v2857 = vadd.f32 %v2543, %v2716
  %v2858 = vadd.f32 %v2544, %v2720
  %v2859 = vadd.f32 %v2545, %v2722
  %v2860 = vadd.f32 %v2546, %v2724
  %v2861 = vadd.f32 %v2547, %v2726
  %v2862 = vadd.f32 %v2548, %v2730
  %v2863 = vadd.f32 %v2549, %v2732
  %v2864 = vadd.f32 %v2550, %v2734
  %v2865 = vadd.f32 %v2551, %v2736
  %v2866 = vadd.f32 %v2552, %v2740
  %v2867 = vadd.f32 %v2553, %v2742
  %v2868 = vadd.f32 %v2554, %v2744
  %v2869 = vadd.f32 %v2555, %v2746
  %v2870 = vadd.f32 %v2556, %v2750
  %v2871 = vadd.f32 %v2557, %v2752
  %v2872 = vadd.f32 %v2558, %v2754
  %v2873 = vadd.f32 %v2559, %v2756
  %v2874 = vadd.f32 %v2560, %v2760
  %v2875 = vadd.f32 %v2561, %v2762
  %v2876 = vadd.f32 %v2562, %v2764
  %v2877 = vadd.f32 %v2563, %v2766
  %v2878 = vadd.f32 %v2564, %v2770
  %v2879 = vadd.f32 %v2565, %v2772
  %v2880 = vadd.f32 %v2566, %v2774
  %v2881 = vadd.f32 %v2567, %v2776
  %v2882 = vadd.f32 %v2568, %v2780
  %v2883 = vadd.f32 %v2569, %v2782
  %v2884 = vadd.f32 %v2570, %v2784
  %v2885 = vadd.f32 %v2571, %v2786
  %v2886 = vadd.f32 %v2572, %v2790
  %v2887 = vadd.f32 %v2573, %v2792
  %v2888 = vadd.f32 %v2574, %v2794
  %v2889 = vadd.f32 %v2575, %v2796
  %v2890 = vadd.f32 %v2576, %v2800
  %v2891 = vadd.f32 %v2577, %v2802
  %v2892 = vadd.f32 %v2578, %v2804
  %v2893 = vadd.f32 %v2579, %v2806
  %v2894 = vadd.f32 %v2580, %v2810
  %v2895 = vadd.f32 %v2581, %v2812
  %v2896 = vadd.f32 %v2582, %v2814
  %v2897 = vadd.f32 %v2583, %v2816
  %v2898 = vadd.f32 %v2584, %v2820
  %v2899 = vadd.f32 %v2585, %v2822
  %v2900 = vadd.f32 %v2586, %v2824
  %v2901 = vadd.f32 %v2587, %v2826
  %v2902 = vadd.f32 %v2588, %v2830
  %v2903 = vadd.f32 %v2589, %v2832
  %v2904 = vadd.f32 %v2590, %v2834
  %v2905 = vadd.f32 %v2591, %v2836
  %v2906 = vadd.f32 %v2592, %v2840
  %v2907 = vadd.f32 %v2593, %v2842
  %v2908 = vadd.f32 %v2594, %v2844
  %v2909 = vadd.f32 %v2595, %v2846
  %v2910 = vadd.f32 %v2596, %v2850
  %v2911 = vadd.f32 %v2597, %v2852
  %s2912 = scalar_lea.vmem %s2, 384
  %v2913 = vld [vmem:[%s2912] sm:$0xff]
  %v2914 = vld [vmem:[%s2912 + $0x8] sm:$0xff]
  %v2915 = vld [vmem:[%s2912 + $0x10] sm:$0xff]
  %v2916 = vld [vmem:[%s2912 + $0x18] sm:$0xff]
  %v2917 = vld [vmem:[%s2912 + $0x20] sm:$0xff]
  %v2918 = vld [vmem:[%s2912 + $0x28] sm:$0xff]
  %v2919 = vld [vmem:[%s2912 + $0x30] sm:$0xff]
  %v2920 = vld [vmem:[%s2912 + $0x38] sm:$0xff]
  %v2921 = vld [vmem:[%s2912 + $0x40] sm:$0xff]
  %v2922 = vld [vmem:[%s2912 + $0x48] sm:$0xff]
  %v2923 = vld [vmem:[%s2912 + $0x50] sm:$0xff]
  %v2924 = vld [vmem:[%s2912 + $0x58] sm:$0xff]
  %v2937 = vunpack.c.l.b16 %v2913
  %v2938 = vunpack.c.h.b16 %v2913
  %v2939 = vunpack.c.l.b16 %v2914
  %v2940 = vunpack.c.h.b16 %v2914
  %v2941 = vunpack.c.l.b16 %v2915
  %v2942 = vunpack.c.h.b16 %v2915
  %v2943 = vunpack.c.l.b16 %v2916
  %v2944 = vunpack.c.h.b16 %v2916
  %v2945 = vunpack.c.l.b16 %v2917
  %v2946 = vunpack.c.h.b16 %v2917
  %v2947 = vunpack.c.l.b16 %v2918
  %v2948 = vunpack.c.h.b16 %v2918
  %v2949 = vunpack.c.l.b16 %v2919
  %v2950 = vunpack.c.h.b16 %v2919
  %v2951 = vunpack.c.l.b16 %v2920
  %v2952 = vunpack.c.h.b16 %v2920
  %v2953 = vunpack.c.l.b16 %v2921
  %v2954 = vunpack.c.h.b16 %v2921
  %v2955 = vunpack.c.l.b16 %v2922
  %v2956 = vunpack.c.h.b16 %v2922
  %v2957 = vunpack.c.l.b16 %v2923
  %v2958 = vunpack.c.h.b16 %v2923
  %v2959 = vunpack.c.l.b16 %v2924
  %v2960 = vunpack.c.h.b16 %v2924
  %v2961 = vpack.c.b16 %v2939, %v2937
  %v2962 = vpack.c.b16 %v2940, %v2938
  %v2963 = vpack.c.b16 %v2943, %v2941
  %v2964 = vpack.c.b16 %v2944, %v2942
  %v2965 = vpack.c.b16 %v2947, %v2945
  %v2966 = vpack.c.b16 %v2948, %v2946
  %v2967 = vpack.c.b16 %v2951, %v2949
  %v2968 = vpack.c.b16 %v2952, %v2950
  %v2969 = vpack.c.b16 %v2955, %v2953
  %v2970 = vpack.c.b16 %v2956, %v2954
  %v2971 = vpack.c.b16 %v2959, %v2957
  %v2972 = vpack.c.b16 %v2960, %v2958
  %2985 = vmatprep.subr.bf16.mxu0 0
  %2986 = vmatpush1.bf16.msra.mxu0 0
  %2987 = vmatprep.subr.bf16.mxu0 0
  %2988 = vmatpush1.bf16.msra.mxu0 0
  %2989 = vmatprep.subr.bf16.mxu0 %v2972
  %2990 = vmatpush1.bf16.msra.mxu0 %v2971
  %2991 = vmatprep.subr.bf16.mxu0 %v2970
  %2992 = vmatpush1.bf16.msra.mxu0 %v2969
  %2993 = vmatprep.subr.bf16.mxu0 %v2968
  %2994 = vmatpush1.bf16.msra.mxu0 %v2967
  %2995 = vmatprep.subr.bf16.mxu0 %v2966
  %2996 = vmatpush1.bf16.msra.mxu0 %v2965
  %2997 = vmatprep.subr.bf16.mxu0 %v2964
  %2998 = vmatpush1.bf16.msra.mxu0 %v2963
  %2999 = vmatprep.subr.bf16.mxu0 %v2962
  %3000 = vmatpush1.bf16.msra.mxu0 %v2961
  %3001 = vmatprep.subr.bf16.mxu0 0
  %3002 = vmatpush2.bf16.msra.mxu0 0
  %3003 = vmatprep.subr.bf16.mxu0 0
  %3004 = vmatpush2.bf16.msra.mxu0 0
  %3005 = vmatprep.subr.bf16.mxu0 0
  %3006 = vmatpush2.bf16.msra.mxu0 0
  %3007 = vmatprep.subr.bf16.mxu0 0
  %3008 = vmatpush2.bf16.msra.mxu0 0
  %3009 = vmatprep.subr.bf16.mxu0 0
  %3010 = vmatpush2.bf16.msra.mxu0 0
  %3011 = vmatprep.subr.bf16.mxu0 0
  %3012 = vmatpush2.bf16.msra.mxu0 0
  %3013 = vmatprep.subr.bf16.mxu0 0
  %3014 = vmatpush2.bf16.msra.mxu0 0
  %3015 = vmatprep.subr.bf16.mxu0 0
  %3016 = vmatpush2.bf16.msra.mxu0 0
  %3017 = vmatprep.mubr.bf16.mxu0 0
  %3018 = vmatmul.mubr.bf16.gmra.mxu0 %v225
  %v3019 = vpop.f32.mrf.mxu0
  %v3020 = vpop.f32.mrf.mxu0
  %v3021 = vpop.f32.mrf.mxu0
  %v3022 = vpop.f32.mrf.mxu0
  %3023 = vmatprep.mubr.bf16.mxu0 0
  %3024 = vmatmul.mubr.bf16.gmra.mxu0 %v228
  %v3025 = vpop.f32.mrf.mxu0
  %v3026 = vpop.f32.mrf.mxu0
  %v3027 = vpop.f32.mrf.mxu0
  %v3028 = vpop.f32.mrf.mxu0
  %3029 = vmatprep.mubr.bf16.mxu0 0
  %3030 = vmatmul.mubr.bf16.gmra.mxu0 %v231
  %v3031 = vpop.f32.mrf.mxu0
  %v3032 = vadd.f32 0.0, %v3031
  %v3033 = vpop.f32.mrf.mxu0
  %v3034 = vadd.f32 0.0, %v3033
  %v3035 = vpop.f32.mrf.mxu0
  %v3036 = vadd.f32 0.0, %v3035
  %v3037 = vpop.f32.mrf.mxu0
  %v3038 = vadd.f32 0.0, %v3037
  %3039 = vmatprep.mubr.bf16.mxu0 0
  %3040 = vmatmul.mubr.bf16.gmra.mxu0 %v234
  %v3041 = vpop.f32.mrf.mxu0
  %v3042 = vadd.f32 0.0, %v3041
  %v3043 = vpop.f32.mrf.mxu0
  %v3044 = vadd.f32 0.0, %v3043
  %v3045 = vpop.f32.mrf.mxu0
  %v3046 = vadd.f32 0.0, %v3045
  %v3047 = vpop.f32.mrf.mxu0
  %v3048 = vadd.f32 0.0, %v3047
  %3049 = vmatprep.mubr.bf16.mxu0 0
  %3050 = vmatmul.mubr.bf16.gmra.mxu0 %v237
  %v3051 = vpop.f32.mrf.mxu0
  %v3052 = vadd.f32 0.0, %v3051
  %v3053 = vpop.f32.mrf.mxu0
  %v3054 = vadd.f32 0.0, %v3053
  %v3055 = vpop.f32.mrf.mxu0
  %v3056 = vadd.f32 0.0, %v3055
  %v3057 = vpop.f32.mrf.mxu0
  %v3058 = vadd.f32 0.0, %v3057
  %3059 = vmatprep.mubr.bf16.mxu0 0
  %3060 = vmatmul.mubr.bf16.gmra.mxu0 %v240
  %v3061 = vpop.f32.mrf.mxu0
  %v3062 = vadd.f32 0.0, %v3061
  %v3063 = vpop.f32.mrf.mxu0
  %v3064 = vadd.f32 0.0, %v3063
  %v3065 = vpop.f32.mrf.mxu0
  %v3066 = vadd.f32 0.0, %v3065
  %v3067 = vpop.f32.mrf.mxu0
  %v3068 = vadd.f32 0.0, %v3067
  %3069 = vmatprep.mubr.bf16.mxu0 0
  %3070 = vmatmul.mubr.bf16.gmra.mxu0 %v243
  %v3071 = vpop.f32.mrf.mxu0
  %v3072 = vadd.f32 0.0, %v3071
  %v3073 = vpop.f32.mrf.mxu0
  %v3074 = vadd.f32 0.0, %v3073
  %v3075 = vpop.f32.mrf.mxu0
  %v3076 = vadd.f32 0.0, %v3075
  %v3077 = vpop.f32.mrf.mxu0
  %v3078 = vadd.f32 0.0, %v3077
  %3079 = vmatprep.mubr.bf16.mxu0 0
  %3080 = vmatmul.mubr.bf16.gmra.mxu0 %v246
  %v3081 = vpop.f32.mrf.mxu0
  %v3082 = vadd.f32 0.0, %v3081
  %v3083 = vpop.f32.mrf.mxu0
  %v3084 = vadd.f32 0.0, %v3083
  %v3085 = vpop.f32.mrf.mxu0
  %v3086 = vadd.f32 0.0, %v3085
  %v3087 = vpop.f32.mrf.mxu0
  %v3088 = vadd.f32 0.0, %v3087
  %3089 = vmatprep.mubr.bf16.mxu0 0
  %3090 = vmatmul.mubr.bf16.gmra.mxu0 %v249
  %v3091 = vpop.f32.mrf.mxu0
  %v3092 = vadd.f32 0.0, %v3091
  %v3093 = vpop.f32.mrf.mxu0
  %v3094 = vadd.f32 0.0, %v3093
  %v3095 = vpop.f32.mrf.mxu0
  %v3096 = vadd.f32 0.0, %v3095
  %v3097 = vpop.f32.mrf.mxu0
  %v3098 = vadd.f32 0.0, %v3097
  %3099 = vmatprep.mubr.bf16.mxu0 0
  %3100 = vmatmul.mubr.bf16.gmra.mxu0 %v252
  %v3101 = vpop.f32.mrf.mxu0
  %v3102 = vadd.f32 0.0, %v3101
  %v3103 = vpop.f32.mrf.mxu0
  %v3104 = vadd.f32 0.0, %v3103
  %v3105 = vpop.f32.mrf.mxu0
  %v3106 = vadd.f32 0.0, %v3105
  %v3107 = vpop.f32.mrf.mxu0
  %v3108 = vadd.f32 0.0, %v3107
  %3109 = vmatprep.mubr.bf16.mxu0 0
  %3110 = vmatmul.mubr.bf16.gmra.mxu0 %v255
  %v3111 = vpop.f32.mrf.mxu0
  %v3112 = vadd.f32 0.0, %v3111
  %v3113 = vpop.f32.mrf.mxu0
  %v3114 = vadd.f32 0.0, %v3113
  %v3115 = vpop.f32.mrf.mxu0
  %v3116 = vadd.f32 0.0, %v3115
  %v3117 = vpop.f32.mrf.mxu0
  %v3118 = vadd.f32 0.0, %v3117
  %3119 = vmatprep.mubr.bf16.mxu0 0
  %3120 = vmatmul.mubr.bf16.gmra.mxu0 %v258
  %v3121 = vpop.f32.mrf.mxu0
  %v3122 = vadd.f32 0.0, %v3121
  %v3123 = vpop.f32.mrf.mxu0
  %v3124 = vadd.f32 0.0, %v3123
  %v3125 = vpop.f32.mrf.mxu0
  %v3126 = vadd.f32 0.0, %v3125
  %v3127 = vpop.f32.mrf.mxu0
  %v3128 = vadd.f32 0.0, %v3127
  %3129 = vmatprep.mubr.bf16.mxu0 0
  %3130 = vmatmul.mubr.bf16.gmra.mxu0 %v261
  %v3131 = vpop.f32.mrf.mxu0
  %v3132 = vadd.f32 0.0, %v3131
  %v3133 = vpop.f32.mrf.mxu0
  %v3134 = vadd.f32 0.0, %v3133
  %v3135 = vpop.f32.mrf.mxu0
  %v3136 = vadd.f32 0.0, %v3135
  %v3137 = vpop.f32.mrf.mxu0
  %v3138 = vadd.f32 0.0, %v3137
  %3139 = vmatprep.mubr.bf16.mxu0 0
  %3140 = vmatmul.mubr.bf16.gmra.mxu0 %v264
  %v3141 = vpop.f32.mrf.mxu0
  %v3142 = vadd.f32 0.0, %v3141
  %v3143 = vpop.f32.mrf.mxu0
  %v3144 = vadd.f32 0.0, %v3143
  %v3145 = vpop.f32.mrf.mxu0
  %v3146 = vadd.f32 0.0, %v3145
  %v3147 = vpop.f32.mrf.mxu0
  %v3148 = vadd.f32 0.0, %v3147
  %3149 = vmatprep.mubr.bf16.mxu0 0
  %3150 = vmatmul.mubr.bf16.gmra.mxu0 %v267
  %v3151 = vpop.f32.mrf.mxu0
  %v3152 = vadd.f32 0.0, %v3151
  %v3153 = vpop.f32.mrf.mxu0
  %v3154 = vadd.f32 0.0, %v3153
  %v3155 = vpop.f32.mrf.mxu0
  %v3156 = vadd.f32 0.0, %v3155
  %v3157 = vpop.f32.mrf.mxu0
  %v3158 = vadd.f32 0.0, %v3157
  %3159 = vmatprep.mubr.bf16.mxu0 0
  %3160 = vmatmul.mubr.bf16.gmra.mxu0 %v270
  %v3161 = vpop.f32.mrf.mxu0
  %v3162 = vadd.f32 0.0, %v3161
  %v3163 = vpop.f32.mrf.mxu0
  %v3164 = vadd.f32 0.0, %v3163
  %v3165 = vpop.f32.mrf.mxu0
  %v3166 = vadd.f32 0.0, %v3165
  %v3167 = vpop.f32.mrf.mxu0
  %v3168 = vadd.f32 0.0, %v3167
  %3169 = vdwg.mxu0
  %v3170 = vadd.f32 %v2856, %v3032
  %v3171 = vadd.f32 %v2857, %v3034
  %v3172 = vadd.f32 %v2858, %v3036
  %v3173 = vadd.f32 %v2859, %v3038
  %v3174 = vadd.f32 %v2860, %v3042
  %v3175 = vadd.f32 %v2861, %v3044
  %v3176 = vadd.f32 %v2862, %v3046
  %v3177 = vadd.f32 %v2863, %v3048
  %v3178 = vadd.f32 %v2864, %v3052
  %v3179 = vadd.f32 %v2865, %v3054
  %v3180 = vadd.f32 %v2866, %v3056
  %v3181 = vadd.f32 %v2867, %v3058
  %v3182 = vadd.f32 %v2868, %v3062
  %v3183 = vadd.f32 %v2869, %v3064
  %v3184 = vadd.f32 %v2870, %v3066
  %v3185 = vadd.f32 %v2871, %v3068
  %v3186 = vadd.f32 %v2872, %v3072
  %v3187 = vadd.f32 %v2873, %v3074
  %v3188 = vadd.f32 %v2874, %v3076
  %v3189 = vadd.f32 %v2875, %v3078
  %v3190 = vadd.f32 %v2876, %v3082
  %v3191 = vadd.f32 %v2877, %v3084
  %v3192 = vadd.f32 %v2878, %v3086
  %v3193 = vadd.f32 %v2879, %v3088
  %v3194 = vadd.f32 %v2880, %v3092
  %v3195 = vadd.f32 %v2881, %v3094
  %v3196 = vadd.f32 %v2882, %v3096
  %v3197 = vadd.f32 %v2883, %v3098
  %v3198 = vadd.f32 %v2884, %v3102
  %v3199 = vadd.f32 %v2885, %v3104
  %v3200 = vadd.f32 %v2886, %v3106
  %v3201 = vadd.f32 %v2887, %v3108
  %v3202 = vadd.f32 %v2888, %v3112
  %v3203 = vadd.f32 %v2889, %v3114
  %v3204 = vadd.f32 %v2890, %v3116
  %v3205 = vadd.f32 %v2891, %v3118
  %v3206 = vadd.f32 %v2892, %v3122
  %v3207 = vadd.f32 %v2893, %v3124
  %v3208 = vadd.f32 %v2894, %v3126
  %v3209 = vadd.f32 %v2895, %v3128
  %v3210 = vadd.f32 %v2896, %v3132
  %v3211 = vadd.f32 %v2897, %v3134
  %v3212 = vadd.f32 %v2898, %v3136
  %v3213 = vadd.f32 %v2899, %v3138
  %v3214 = vadd.f32 %v2900, %v3142
  %v3215 = vadd.f32 %v2901, %v3144
  %v3216 = vadd.f32 %v2902, %v3146
  %v3217 = vadd.f32 %v2903, %v3148
  %v3218 = vadd.f32 %v2904, %v3152
  %v3219 = vadd.f32 %v2905, %v3154
  %v3220 = vadd.f32 %v2906, %v3156
  %v3221 = vadd.f32 %v2907, %v3158
  %v3222 = vadd.f32 %v2908, %v3162
  %v3223 = vadd.f32 %v2909, %v3164
  %v3224 = vadd.f32 %v2910, %v3166
  %v3225 = vadd.f32 %v2911, %v3168
  %v3226 = vmax.f32 %v1657, %v3170
  %v3227 = vmax.f32 %v1658, %v3171
  %v3228 = vmax.f32 %v1659, %v3172
  %v3229 = vmax.f32 %v1660, %v3173
  %v3230 = vmax.f32 %v1661, %v3174
  %v3231 = vmax.f32 %v1662, %v3175
  %v3232 = vmax.f32 %v1663, %v3176
  %v3233 = vmax.f32 %v1664, %v3177
  %v3234 = vmax.f32 %v1665, %v3178
  %v3235 = vmax.f32 %v1666, %v3179
  %v3236 = vmax.f32 %v1667, %v3180
  %v3237 = vmax.f32 %v1668, %v3181
  %v3238 = vmax.f32 %v1669, %v3182
  %v3239 = vmax.f32 %v1670, %v3183
  %v3240 = vmax.f32 %v1671, %v3184
  %v3241 = vmax.f32 %v1672, %v3185
  %v3242 = vmax.f32 %v1673, %v3186
  %v3243 = vmax.f32 %v1674, %v3187
  %v3244 = vmax.f32 %v1675, %v3188
  %v3245 = vmax.f32 %v1676, %v3189
  %v3246 = vmax.f32 %v1677, %v3190
  %v3247 = vmax.f32 %v1678, %v3191
  %v3248 = vmax.f32 %v1679, %v3192
  %v3249 = vmax.f32 %v1680, %v3193
  %v3250 = vmax.f32 %v1681, %v3194
  %v3251 = vmax.f32 %v1682, %v3195
  %v3252 = vmax.f32 %v1683, %v3196
  %v3253 = vmax.f32 %v1684, %v3197
  %v3254 = vmax.f32 %v1685, %v3198
  %v3255 = vmax.f32 %v1686, %v3199
  %v3256 = vmax.f32 %v1687, %v3200
  %v3257 = vmax.f32 %v1688, %v3201
  %v3258 = vmax.f32 %v1689, %v3202
  %v3259 = vmax.f32 %v1690, %v3203
  %v3260 = vmax.f32 %v1691, %v3204
  %v3261 = vmax.f32 %v1692, %v3205
  %v3262 = vmax.f32 %v1693, %v3206
  %v3263 = vmax.f32 %v1694, %v3207
  %v3264 = vmax.f32 %v1695, %v3208
  %v3265 = vmax.f32 %v1696, %v3209
  %v3266 = vmax.f32 %v1697, %v3210
  %v3267 = vmax.f32 %v1698, %v3211
  %v3268 = vmax.f32 %v1699, %v3212
  %v3269 = vmax.f32 %v1700, %v3213
  %v3270 = vmax.f32 %v1701, %v3214
  %v3271 = vmax.f32 %v1702, %v3215
  %v3272 = vmax.f32 %v1703, %v3216
  %v3273 = vmax.f32 %v1704, %v3217
  %v3274 = vmax.f32 %v1705, %v3218
  %v3275 = vmax.f32 %v1706, %v3219
  %v3276 = vmax.f32 %v1707, %v3220
  %v3277 = vmax.f32 %v1708, %v3221
  %v3278 = vmax.f32 %v1709, %v3222
  %v3279 = vmax.f32 %v1710, %v3223
  %v3280 = vmax.f32 %v1711, %v3224
  %v3281 = vmax.f32 %v1712, %v3225
  %v3282 = vld [vmem:[%s3] sm:$0x3]
  %v3284 = vlaneseq
  %v3285 = vshrl.u32 %v3284, 7
  %v3286 = vsub.s32 0, %v3285
  %v3287 = vrot.slane %v3282, %v3286
  %v3288 = vlaneseq
  %v3289 = vshrl.u32 %v3288, 7
  %v3290 = vsub.s32 1, %v3289
  %v3291 = vrot.slane %v3282, %v3290
  %v3294 = vadd.f32 %v3226, %v3287
  %v3295 = vadd.f32 %v3227, %v3291
  %v3296 = vadd.f32 %v3228, %v3287
  %v3297 = vadd.f32 %v3229, %v3291
  %v3298 = vadd.f32 %v3230, %v3287
  %v3299 = vadd.f32 %v3231, %v3291
  %v3300 = vadd.f32 %v3232, %v3287
  %v3301 = vadd.f32 %v3233, %v3291
  %v3302 = vadd.f32 %v3234, %v3287
  %v3303 = vadd.f32 %v3235, %v3291
  %v3304 = vadd.f32 %v3236, %v3287
  %v3305 = vadd.f32 %v3237, %v3291
  %v3306 = vadd.f32 %v3238, %v3287
  %v3307 = vadd.f32 %v3239, %v3291
  %v3308 = vadd.f32 %v3240, %v3287
  %v3309 = vadd.f32 %v3241, %v3291
  %v3310 = vadd.f32 %v3242, %v3287
  %v3311 = vadd.f32 %v3243, %v3291
  %v3312 = vadd.f32 %v3244, %v3287
  %v3313 = vadd.f32 %v3245, %v3291
  %v3314 = vadd.f32 %v3246, %v3287
  %v3315 = vadd.f32 %v3247, %v3291
  %v3316 = vadd.f32 %v3248, %v3287
  %v3317 = vadd.f32 %v3249, %v3291
  %v3318 = vadd.f32 %v3250, %v3287
  %v3319 = vadd.f32 %v3251, %v3291
  %v3320 = vadd.f32 %v3252, %v3287
  %v3321 = vadd.f32 %v3253, %v3291
  %v3322 = vadd.f32 %v3254, %v3287
  %v3323 = vadd.f32 %v3255, %v3291
  %v3324 = vadd.f32 %v3256, %v3287
  %v3325 = vadd.f32 %v3257, %v3291
  %v3326 = vadd.f32 %v3258, %v3287
  %v3327 = vadd.f32 %v3259, %v3291
  %v3328 = vadd.f32 %v3260, %v3287
  %v3329 = vadd.f32 %v3261, %v3291
  %v3330 = vadd.f32 %v3262, %v3287
  %v3331 = vadd.f32 %v3263, %v3291
  %v3332 = vadd.f32 %v3264, %v3287
  %v3333 = vadd.f32 %v3265, %v3291
  %v3334 = vadd.f32 %v3266, %v3287
  %v3335 = vadd.f32 %v3267, %v3291
  %v3336 = vadd.f32 %v3268, %v3287
  %v3337 = vadd.f32 %v3269, %v3291
  %v3338 = vadd.f32 %v3270, %v3287
  %v3339 = vadd.f32 %v3271, %v3291
  %v3340 = vadd.f32 %v3272, %v3287
  %v3341 = vadd.f32 %v3273, %v3291
  %v3342 = vadd.f32 %v3274, %v3287
  %v3343 = vadd.f32 %v3275, %v3291
  %v3344 = vadd.f32 %v3276, %v3287
  %v3345 = vadd.f32 %v3277, %v3291
  %v3346 = vadd.f32 %v3278, %v3287
  %v3347 = vadd.f32 %v3279, %v3291
  %v3348 = vadd.f32 %v3280, %v3287
  %v3349 = vadd.f32 %v3281, %v3291
  %v3350 = vmax.f32 %v3294, %v3296
  %v3351 = vmax.f32 %v3295, %v3297
  %v3352 = vmax.f32 %v3298, %v3300
  %v3353 = vmax.f32 %v3299, %v3301
  %v3354 = vmax.f32 %v3302, %v3304
  %v3355 = vmax.f32 %v3303, %v3305
  %v3356 = vmax.f32 %v3306, %v3308
  %v3357 = vmax.f32 %v3307, %v3309
  %v3358 = vmax.f32 %v3310, %v3312
  %v3359 = vmax.f32 %v3311, %v3313
  %v3360 = vmax.f32 %v3314, %v3316
  %v3361 = vmax.f32 %v3315, %v3317
  %v3362 = vmax.f32 %v3318, %v3320
  %v3363 = vmax.f32 %v3319, %v3321
  %v3364 = vmax.f32 %v3322, %v3324
  %v3365 = vmax.f32 %v3323, %v3325
  %v3366 = vmax.f32 %v3326, %v3328
  %v3367 = vmax.f32 %v3327, %v3329
  %v3368 = vmax.f32 %v3330, %v3332
  %v3369 = vmax.f32 %v3331, %v3333
  %v3370 = vmax.f32 %v3334, %v3336
  %v3371 = vmax.f32 %v3335, %v3337
  %v3372 = vmax.f32 %v3338, %v3340
  %v3373 = vmax.f32 %v3339, %v3341
  %v3374 = vmax.f32 %v3342, %v3344
  %v3375 = vmax.f32 %v3343, %v3345
  %v3376 = vmax.f32 %v3346, %v3348
  %v3377 = vmax.f32 %v3347, %v3349
  %v3378 = vmax.f32 %v3350, 0.0
  %v3379 = vmax.f32 %v3351, 0.0
  %v3380 = vmax.f32 %v3352, 0.0
  %v3381 = vmax.f32 %v3353, 0.0
  %v3382 = vmax.f32 %v3354, 0.0
  %v3383 = vmax.f32 %v3355, 0.0
  %v3384 = vmax.f32 %v3356, 0.0
  %v3385 = vmax.f32 %v3357, 0.0
  %v3386 = vmax.f32 %v3358, 0.0
  %v3387 = vmax.f32 %v3359, 0.0
  %v3388 = vmax.f32 %v3360, 0.0
  %v3389 = vmax.f32 %v3361, 0.0
  %v3390 = vmax.f32 %v3362, 0.0
  %v3391 = vmax.f32 %v3363, 0.0
  %v3392 = vmax.f32 %v3364, 0.0
  %v3393 = vmax.f32 %v3365, 0.0
  %v3394 = vmax.f32 %v3366, 0.0
  %v3395 = vmax.f32 %v3367, 0.0
  %v3396 = vmax.f32 %v3368, 0.0
  %v3397 = vmax.f32 %v3369, 0.0
  %v3398 = vmax.f32 %v3370, 0.0
  %v3399 = vmax.f32 %v3371, 0.0
  %v3400 = vmax.f32 %v3372, 0.0
  %v3401 = vmax.f32 %v3373, 0.0
  %v3402 = vmax.f32 %v3374, 0.0
  %v3403 = vmax.f32 %v3375, 0.0
  %v3404 = vmax.f32 %v3376, 0.0
  %v3405 = vmax.f32 %v3377, 0.0
  %v3406 = vpack.c.bf16 %v3378, %v3378
  %v3407 = vpack.c.bf16 %v3379, %v3379
  %v3408 = vpack.c.bf16 %v3380, %v3380
  %v3409 = vpack.c.bf16 %v3381, %v3381
  %v3410 = vpack.c.bf16 %v3382, %v3382
  %v3411 = vpack.c.bf16 %v3383, %v3383
  %v3412 = vpack.c.bf16 %v3384, %v3384
  %v3413 = vpack.c.bf16 %v3385, %v3385
  %v3414 = vpack.c.bf16 %v3386, %v3386
  %v3415 = vpack.c.bf16 %v3387, %v3387
  %v3416 = vpack.c.bf16 %v3388, %v3388
  %v3417 = vpack.c.bf16 %v3389, %v3389
  %v3418 = vpack.c.bf16 %v3390, %v3390
  %v3419 = vpack.c.bf16 %v3391, %v3391
  %v3420 = vpack.c.bf16 %v3392, %v3392
  %v3421 = vpack.c.bf16 %v3393, %v3393
  %v3422 = vpack.c.bf16 %v3394, %v3394
  %v3423 = vpack.c.bf16 %v3395, %v3395
  %v3424 = vpack.c.bf16 %v3396, %v3396
  %v3425 = vpack.c.bf16 %v3397, %v3397
  %v3426 = vpack.c.bf16 %v3398, %v3398
  %v3427 = vpack.c.bf16 %v3399, %v3399
  %v3428 = vpack.c.bf16 %v3400, %v3400
  %v3429 = vpack.c.bf16 %v3401, %v3401
  %v3430 = vpack.c.bf16 %v3402, %v3402
  %v3431 = vpack.c.bf16 %v3403, %v3403
  %v3432 = vpack.c.bf16 %v3404, %v3404
  %v3433 = vpack.c.bf16 %v3405, %v3405
  %v3462 = vunpack.c.l.b16 %v3406
  %v3463 = vunpack.c.l.b16 %v3407
  %v3464 = vunpack.c.l.b16 %v3408
  %v3465 = vunpack.c.l.b16 %v3409
  %v3466 = vunpack.c.l.b16 %v3410
  %v3467 = vunpack.c.l.b16 %v3411
  %v3468 = vunpack.c.l.b16 %v3412
  %v3469 = vunpack.c.l.b16 %v3413
  %v3470 = vunpack.c.l.b16 %v3414
  %v3471 = vunpack.c.l.b16 %v3415
  %v3472 = vunpack.c.l.b16 %v3416
  %v3473 = vunpack.c.l.b16 %v3417
  %v3474 = vunpack.c.l.b16 %v3418
  %v3475 = vunpack.c.l.b16 %v3419
  %v3476 = vunpack.c.l.b16 %v3420
  %v3477 = vunpack.c.l.b16 %v3421
  %v3478 = vunpack.c.l.b16 %v3422
  %v3479 = vunpack.c.l.b16 %v3423
  %v3480 = vunpack.c.l.b16 %v3424
  %v3481 = vunpack.c.l.b16 %v3425
  %v3482 = vunpack.c.l.b16 %v3426
  %v3483 = vunpack.c.l.b16 %v3427
  %v3484 = vunpack.c.l.b16 %v3428
  %v3485 = vunpack.c.l.b16 %v3429
  %v3486 = vunpack.c.l.b16 %v3430
  %v3487 = vunpack.c.l.b16 %v3431
  %v3488 = vunpack.c.l.b16 %v3432
  %v3489 = vunpack.c.l.b16 %v3433
  %v3490 = vld [vmem:[%s4] sm:$0xf]
  %v3491 = vld [vmem:[%s4 + $0x4] sm:$0xf]
  %v3492 = vld [vmem:[%s4 + $0x8] sm:$0xf]
  %v3493 = vld [vmem:[%s4 + $0xc] sm:$0xf]
  %v3494 = vld [vmem:[%s4 + $0x10] sm:$0xf]
  %v3495 = vld [vmem:[%s4 + $0x14] sm:$0xf]
  %v3496 = vld [vmem:[%s4 + $0x18] sm:$0xf]
  %v3497 = vld [vmem:[%s4 + $0x1c] sm:$0xf]
  %v3498 = vld [vmem:[%s4 + $0x20] sm:$0xf]
  %v3499 = vld [vmem:[%s4 + $0x24] sm:$0xf]
  %v3500 = vld [vmem:[%s4 + $0x28] sm:$0xf]
  %v3501 = vld [vmem:[%s4 + $0x2c] sm:$0xf]
  %v3502 = vld [vmem:[%s4 + $0x30] sm:$0xf]
  %v3503 = vld [vmem:[%s4 + $0x34] sm:$0xf]
  %v3504 = vld [vmem:[%s4 + $0x38] sm:$0xf]
  %v3505 = vld [vmem:[%s4 + $0x3c] sm:$0xf]
  %v3506 = vld [vmem:[%s4 + $0x40] sm:$0xf]
  %v3507 = vld [vmem:[%s4 + $0x44] sm:$0x3]
  %v3508 = vpack.c.b16 %v3464, %v3462
  %v3509 = vpack.c.b16 %v3465, %v3463
  %v3510 = vpack.c.b16 %v3468, %v3466
  %v3511 = vpack.c.b16 %v3469, %v3467
  %v3512 = vpack.c.b16 %v3472, %v3470
  %v3513 = vpack.c.b16 %v3473, %v3471
  %v3514 = vpack.c.b16 %v3476, %v3474
  %v3515 = vpack.c.b16 %v3477, %v3475
  %v3516 = vpack.c.b16 %v3480, %v3478
  %v3517 = vpack.c.b16 %v3481, %v3479
  %v3518 = vpack.c.b16 %v3484, %v3482
  %v3519 = vpack.c.b16 %v3485, %v3483
  %v3520 = vpack.c.b16 %v3488, %v3486
  %v3521 = vpack.c.b16 %v3489, %v3487
  %v3547 = vunpack.c.l.b16 %v3490
  %v3548 = vunpack.c.l.b16 %v3491
  %v3549 = vunpack.c.l.b16 %v3492
  %v3550 = vunpack.c.l.b16 %v3493
  %v3551 = vunpack.c.l.b16 %v3494
  %v3552 = vunpack.c.l.b16 %v3495
  %v3553 = vunpack.c.l.b16 %v3496
  %v3554 = vunpack.c.l.b16 %v3497
  %v3555 = vunpack.c.l.b16 %v3498
  %v3556 = vunpack.c.l.b16 %v3499
  %v3557 = vunpack.c.l.b16 %v3500
  %v3558 = vunpack.c.l.b16 %v3501
  %v3559 = vunpack.c.l.b16 %v3502
  %v3560 = vunpack.c.l.b16 %v3503
  %v3561 = vunpack.c.l.b16 %v3504
  %v3562 = vunpack.c.l.b16 %v3505
  %v3563 = vunpack.c.l.b16 %v3506
  %v3564 = vunpack.c.l.b16 %v3507
  %v3565 = vpack.c.b16 %v3548, %v3547
  %v3566 = vpack.c.b16 %v3550, %v3549
  %v3567 = vpack.c.b16 %v3552, %v3551
  %v3568 = vpack.c.b16 %v3554, %v3553
  %v3569 = vpack.c.b16 %v3556, %v3555
  %v3570 = vpack.c.b16 %v3558, %v3557
  %v3571 = vpack.c.b16 %v3560, %v3559
  %v3572 = vpack.c.b16 %v3562, %v3561
  %v3573 = vpack.c.b16 %v3564, %v3563
  %vm3582 = vcmask 97280
  %v3584 = vsel %vm3582, %v3509, 0
  %v3587 = vsel %vm3582, %v3511, 0
  %v3590 = vsel %vm3582, %v3513, 0
  %v3593 = vsel %vm3582, %v3515, 0
  %v3596 = vsel %vm3582, %v3517, 0
  %v3599 = vsel %vm3582, %v3519, 0
  %v3602 = vsel %vm3582, %v3521, 0
  %vm3604 = vcmask 1045504
  %v3606 = vsel %vm3604, %v3573, 0
  %3608 = vmatprep.subr.bf16.mxu0 0
  %3609 = vmatpush1.bf16.msra.mxu0 %v3572
  %3610 = vmatprep.subr.bf16.mxu0 0
  %3611 = vmatpush1.bf16.msra.mxu0 %v3571
  %3612 = vmatprep.subr.bf16.mxu0 0
  %3613 = vmatpush1.bf16.msra.mxu0 %v3570
  %3614 = vmatprep.subr.bf16.mxu0 0
  %3615 = vmatpush1.bf16.msra.mxu0 %v3569
  %3616 = vmatprep.subr.bf16.mxu0 0
  %3617 = vmatpush1.bf16.msra.mxu0 %v3568
  %3618 = vmatprep.subr.bf16.mxu0 0
  %3619 = vmatpush1.bf16.msra.mxu0 %v3567
  %3620 = vmatprep.subr.bf16.mxu0 0
  %3621 = vmatpush1.bf16.msra.mxu0 %v3566
  %3622 = vmatprep.subr.bf16.mxu0 0
  %3623 = vmatpush1.bf16.msra.mxu0 %v3565
  %3624 = vmatprep.subr.bf16.mxu0 0
  %3625 = vmatpush2.bf16.msra.mxu0 0
  %3626 = vmatprep.subr.bf16.mxu0 0
  %3627 = vmatpush2.bf16.msra.mxu0 0
  %3628 = vmatprep.subr.bf16.mxu0 0
  %3629 = vmatpush2.bf16.msra.mxu0 0
  %3630 = vmatprep.subr.bf16.mxu0 0
  %3631 = vmatpush2.bf16.msra.mxu0 0
  %3632 = vmatprep.subr.bf16.mxu0 0
  %3633 = vmatpush2.bf16.msra.mxu0 0
  %3634 = vmatprep.subr.bf16.mxu0 0
  %3635 = vmatpush2.bf16.msra.mxu0 0
  %3636 = vmatprep.subr.bf16.mxu0 0
  %3637 = vmatpush2.bf16.msra.mxu0 0
  %3638 = vmatprep.subr.bf16.mxu0 0
  %3639 = vmatpush2.bf16.msra.mxu0 %v3606
  %3640 = vmatprep.mubr.bf16.mxu0 %v3584
  %3641 = vmatmul.mubr.bf16.gmra.mxu0 %v3508
  %v3642 = vpop.f32.mrf.mxu0
  %v3643 = vadd.f32 0.0, %v3642
  %v3644 = vpop.f32.mrf.mxu0
  %v3645 = vpop.f32.mrf.mxu0
  %v3646 = vadd.f32 0.0, %v3645
  %v3647 = vpop.f32.mrf.mxu0
  %3648 = vmatprep.mubr.bf16.mxu0 %v3587
  %3649 = vmatmul.mubr.bf16.gmra.mxu0 %v3510
  %v3650 = vpop.f32.mrf.mxu0
  %v3651 = vadd.f32 0.0, %v3650
  %v3652 = vpop.f32.mrf.mxu0
  %v3653 = vpop.f32.mrf.mxu0
  %v3654 = vadd.f32 0.0, %v3653
  %v3655 = vpop.f32.mrf.mxu0
  %3656 = vmatprep.mubr.bf16.mxu0 %v3590
  %3657 = vmatmul.mubr.bf16.gmra.mxu0 %v3512
  %v3658 = vpop.f32.mrf.mxu0
  %v3659 = vadd.f32 0.0, %v3658
  %v3660 = vpop.f32.mrf.mxu0
  %v3661 = vpop.f32.mrf.mxu0
  %v3662 = vadd.f32 0.0, %v3661
  %v3663 = vpop.f32.mrf.mxu0
  %3664 = vmatprep.mubr.bf16.mxu0 %v3593
  %3665 = vmatmul.mubr.bf16.gmra.mxu0 %v3514
  %v3666 = vpop.f32.mrf.mxu0
  %v3667 = vadd.f32 0.0, %v3666
  %v3668 = vpop.f32.mrf.mxu0
  %v3669 = vpop.f32.mrf.mxu0
  %v3670 = vadd.f32 0.0, %v3669
  %v3671 = vpop.f32.mrf.mxu0
  %3672 = vmatprep.mubr.bf16.mxu0 %v3596
  %3673 = vmatmul.mubr.bf16.gmra.mxu0 %v3516
  %v3674 = vpop.f32.mrf.mxu0
  %v3675 = vadd.f32 0.0, %v3674
  %v3676 = vpop.f32.mrf.mxu0
  %v3677 = vpop.f32.mrf.mxu0
  %v3678 = vadd.f32 0.0, %v3677
  %v3679 = vpop.f32.mrf.mxu0
  %3680 = vmatprep.mubr.bf16.mxu0 %v3599
  %3681 = vmatmul.mubr.bf16.gmra.mxu0 %v3518
  %v3682 = vpop.f32.mrf.mxu0
  %v3683 = vpop.f32.mrf.mxu0
  %v3684 = vpop.f32.mrf.mxu0
  %v3685 = vpop.f32.mrf.mxu0
  %3686 = vmatprep.mubr.bf16.mxu0 %v3602
  %3687 = vmatmul.mubr.bf16.gmra.mxu0 %v3520
  %v3688 = vpop.f32.mrf.mxu0
  %v3689 = vpop.f32.mrf.mxu0
  %v3690 = vpop.f32.mrf.mxu0
  %v3691 = vpop.f32.mrf.mxu0
  %3692 = vdwg.mxu0
  %s3693 = scalar_lea.vmem %s4, 72
  %v3694 = vld [vmem:[%s3693] sm:$0xf]
  %v3695 = vld [vmem:[%s3693 + $0x4] sm:$0xf]
  %v3696 = vld [vmem:[%s3693 + $0x8] sm:$0xf]
  %v3697 = vld [vmem:[%s3693 + $0xc] sm:$0xf]
  %v3698 = vld [vmem:[%s3693 + $0x10] sm:$0xf]
  %v3699 = vld [vmem:[%s3693 + $0x14] sm:$0xf]
  %v3700 = vld [vmem:[%s3693 + $0x18] sm:$0xf]
  %v3701 = vld [vmem:[%s3693 + $0x1c] sm:$0xf]
  %v3702 = vld [vmem:[%s3693 + $0x20] sm:$0xf]
  %v3703 = vld [vmem:[%s3693 + $0x24] sm:$0xf]
  %v3704 = vld [vmem:[%s3693 + $0x28] sm:$0xf]
  %v3705 = vld [vmem:[%s3693 + $0x2c] sm:$0xf]
  %v3706 = vld [vmem:[%s3693 + $0x30] sm:$0xf]
  %v3707 = vld [vmem:[%s3693 + $0x34] sm:$0xf]
  %v3708 = vld [vmem:[%s3693 + $0x38] sm:$0xf]
  %v3709 = vld [vmem:[%s3693 + $0x3c] sm:$0xf]
  %v3710 = vld [vmem:[%s3693 + $0x40] sm:$0xf]
  %v3711 = vld [vmem:[%s3693 + $0x44] sm:$0x3]
  %v3730 = vunpack.c.l.b16 %v3694
  %v3731 = vunpack.c.l.b16 %v3695
  %v3732 = vunpack.c.l.b16 %v3696
  %v3733 = vunpack.c.l.b16 %v3697
  %v3734 = vunpack.c.l.b16 %v3698
  %v3735 = vunpack.c.l.b16 %v3699
  %v3736 = vunpack.c.l.b16 %v3700
  %v3737 = vunpack.c.l.b16 %v3701
  %v3738 = vunpack.c.l.b16 %v3702
  %v3739 = vunpack.c.l.b16 %v3703
  %v3740 = vunpack.c.l.b16 %v3704
  %v3741 = vunpack.c.l.b16 %v3705
  %v3742 = vunpack.c.l.b16 %v3706
  %v3743 = vunpack.c.l.b16 %v3707
  %v3744 = vunpack.c.l.b16 %v3708
  %v3745 = vunpack.c.l.b16 %v3709
  %v3746 = vunpack.c.l.b16 %v3710
  %v3747 = vunpack.c.l.b16 %v3711
  %v3748 = vpack.c.b16 %v3731, %v3730
  %v3749 = vpack.c.b16 %v3733, %v3732
  %v3750 = vpack.c.b16 %v3735, %v3734
  %v3751 = vpack.c.b16 %v3737, %v3736
  %v3752 = vpack.c.b16 %v3739, %v3738
  %v3753 = vpack.c.b16 %v3741, %v3740
  %v3754 = vpack.c.b16 %v3743, %v3742
  %v3755 = vpack.c.b16 %v3745, %v3744
  %v3756 = vpack.c.b16 %v3747, %v3746
  %v3766 = vsel %vm3604, %v3756, 0
  %3768 = vmatprep.subr.bf16.mxu0 0
  %3769 = vmatpush1.bf16.msra.mxu0 %v3755
  %3770 = vmatprep.subr.bf16.mxu0 0
  %3771 = vmatpush1.bf16.msra.mxu0 %v3754
  %3772 = vmatprep.subr.bf16.mxu0 0
  %3773 = vmatpush1.bf16.msra.mxu0 %v3753
  %3774 = vmatprep.subr.bf16.mxu0 0
  %3775 = vmatpush1.bf16.msra.mxu0 %v3752
  %3776 = vmatprep.subr.bf16.mxu0 0
  %3777 = vmatpush1.bf16.msra.mxu0 %v3751
  %3778 = vmatprep.subr.bf16.mxu0 0
  %3779 = vmatpush1.bf16.msra.mxu0 %v3750
  %3780 = vmatprep.subr.bf16.mxu0 0
  %3781 = vmatpush1.bf16.msra.mxu0 %v3749
  %3782 = vmatprep.subr.bf16.mxu0 0
  %3783 = vmatpush1.bf16.msra.mxu0 %v3748
  %3784 = vmatprep.subr.bf16.mxu0 0
  %3785 = vmatpush2.bf16.msra.mxu0 0
  %3786 = vmatprep.subr.bf16.mxu0 0
  %3787 = vmatpush2.bf16.msra.mxu0 0
  %3788 = vmatprep.subr.bf16.mxu0 0
  %3789 = vmatpush2.bf16.msra.mxu0 0
  %3790 = vmatprep.subr.bf16.mxu0 0
  %3791 = vmatpush2.bf16.msra.mxu0 0
  %3792 = vmatprep.subr.bf16.mxu0 0
  %3793 = vmatpush2.bf16.msra.mxu0 0
  %3794 = vmatprep.subr.bf16.mxu0 0
  %3795 = vmatpush2.bf16.msra.mxu0 0
  %3796 = vmatprep.subr.bf16.mxu0 0
  %3797 = vmatpush2.bf16.msra.mxu0 0
  %3798 = vmatprep.subr.bf16.mxu0 0
  %3799 = vmatpush2.bf16.msra.mxu0 %v3766
  %3800 = vmatprep.mubr.bf16.mxu0 %v3584
  %3801 = vmatmul.mubr.bf16.gmra.mxu0 %v3508
  %v3802 = vpop.f32.mrf.mxu0
  %v3803 = vpop.f32.mrf.mxu0
  %v3804 = vpop.f32.mrf.mxu0
  %v3805 = vadd.f32 0.0, %v3804
  %v3806 = vpop.f32.mrf.mxu0
  %3807 = vmatprep.mubr.bf16.mxu0 %v3587
  %3808 = vmatmul.mubr.bf16.gmra.mxu0 %v3510
  %v3809 = vpop.f32.mrf.mxu0
  %v3810 = vadd.f32 0.0, %v3809
  %v3811 = vpop.f32.mrf.mxu0
  %v3812 = vpop.f32.mrf.mxu0
  %v3813 = vadd.f32 0.0, %v3812
  %v3814 = vpop.f32.mrf.mxu0
  %3815 = vmatprep.mubr.bf16.mxu0 %v3590
  %3816 = vmatmul.mubr.bf16.gmra.mxu0 %v3512
  %v3817 = vpop.f32.mrf.mxu0
  %v3818 = vadd.f32 0.0, %v3817
  %v3819 = vpop.f32.mrf.mxu0
  %v3820 = vpop.f32.mrf.mxu0
  %v3821 = vadd.f32 0.0, %v3820
  %v3822 = vpop.f32.mrf.mxu0
  %3823 = vmatprep.mubr.bf16.mxu0 %v3593
  %3824 = vmatmul.mubr.bf16.gmra.mxu0 %v3514
  %v3825 = vpop.f32.mrf.mxu0
  %v3826 = vadd.f32 0.0, %v3825
  %v3827 = vpop.f32.mrf.mxu0
  %v3828 = vpop.f32.mrf.mxu0
  %v3829 = vadd.f32 0.0, %v3828
  %v3830 = vpop.f32.mrf.mxu0
  %3831 = vmatprep.mubr.bf16.mxu0 %v3596
  %3832 = vmatmul.mubr.bf16.gmra.mxu0 %v3516
  %v3833 = vpop.f32.mrf.mxu0
  %v3834 = vadd.f32 0.0, %v3833
  %v3835 = vpop.f32.mrf.mxu0
  %v3836 = vpop.f32.mrf.mxu0
  %v3837 = vadd.f32 0.0, %v3836
  %v3838 = vpop.f32.mrf.mxu0
  %3839 = vmatprep.mubr.bf16.mxu0 %v3599
  %3840 = vmatmul.mubr.bf16.gmra.mxu0 %v3518
  %v3841 = vpop.f32.mrf.mxu0
  %v3842 = vadd.f32 0.0, %v3841
  %v3843 = vpop.f32.mrf.mxu0
  %v3844 = vpop.f32.mrf.mxu0
  %v3845 = vpop.f32.mrf.mxu0
  %3846 = vmatprep.mubr.bf16.mxu0 %v3602
  %3847 = vmatmul.mubr.bf16.gmra.mxu0 %v3520
  %v3848 = vpop.f32.mrf.mxu0
  %v3849 = vpop.f32.mrf.mxu0
  %v3850 = vpop.f32.mrf.mxu0
  %v3851 = vpop.f32.mrf.mxu0
  %3852 = vdwg.mxu0
  %v3853 = vadd.f32 %v3643, %v3805
  %v3854 = vadd.f32 %v3646, %v3810
  %v3855 = vadd.f32 %v3651, %v3813
  %v3856 = vadd.f32 %v3654, %v3818
  %v3857 = vadd.f32 %v3659, %v3821
  %v3858 = vadd.f32 %v3662, %v3826
  %v3859 = vadd.f32 %v3667, %v3829
  %v3860 = vadd.f32 %v3670, %v3834
  %v3861 = vadd.f32 %v3675, %v3837
  %v3862 = vadd.f32 %v3678, %v3842
  %s3863 = scalar_lea.vmem %s4, 144
  %v3864 = vld [vmem:[%s3863] sm:$0xf]
  %v3865 = vld [vmem:[%s3863 + $0x4] sm:$0xf]
  %v3866 = vld [vmem:[%s3863 + $0x8] sm:$0xf]
  %v3867 = vld [vmem:[%s3863 + $0xc] sm:$0xf]
  %v3868 = vld [vmem:[%s3863 + $0x10] sm:$0xf]
  %v3869 = vld [vmem:[%s3863 + $0x14] sm:$0xf]
  %v3870 = vld [vmem:[%s3863 + $0x18] sm:$0xf]
  %v3871 = vld [vmem:[%s3863 + $0x1c] sm:$0xf]
  %v3872 = vld [vmem:[%s3863 + $0x20] sm:$0xf]
  %v3873 = vld [vmem:[%s3863 + $0x24] sm:$0xf]
  %v3874 = vld [vmem:[%s3863 + $0x28] sm:$0xf]
  %v3875 = vld [vmem:[%s3863 + $0x2c] sm:$0xf]
  %v3876 = vld [vmem:[%s3863 + $0x30] sm:$0xf]
  %v3877 = vld [vmem:[%s3863 + $0x34] sm:$0xf]
  %v3878 = vld [vmem:[%s3863 + $0x38] sm:$0xf]
  %v3879 = vld [vmem:[%s3863 + $0x3c] sm:$0xf]
  %v3880 = vld [vmem:[%s3863 + $0x40] sm:$0xf]
  %v3881 = vld [vmem:[%s3863 + $0x44] sm:$0x3]
  %v3900 = vunpack.c.l.b16 %v3864
  %v3901 = vunpack.c.l.b16 %v3865
  %v3902 = vunpack.c.l.b16 %v3866
  %v3903 = vunpack.c.l.b16 %v3867
  %v3904 = vunpack.c.l.b16 %v3868
  %v3905 = vunpack.c.l.b16 %v3869
  %v3906 = vunpack.c.l.b16 %v3870
  %v3907 = vunpack.c.l.b16 %v3871
  %v3908 = vunpack.c.l.b16 %v3872
  %v3909 = vunpack.c.l.b16 %v3873
  %v3910 = vunpack.c.l.b16 %v3874
  %v3911 = vunpack.c.l.b16 %v3875
  %v3912 = vunpack.c.l.b16 %v3876
  %v3913 = vunpack.c.l.b16 %v3877
  %v3914 = vunpack.c.l.b16 %v3878
  %v3915 = vunpack.c.l.b16 %v3879
  %v3916 = vunpack.c.l.b16 %v3880
  %v3917 = vunpack.c.l.b16 %v3881
  %v3918 = vpack.c.b16 %v3901, %v3900
  %v3919 = vpack.c.b16 %v3903, %v3902
  %v3920 = vpack.c.b16 %v3905, %v3904
  %v3921 = vpack.c.b16 %v3907, %v3906
  %v3922 = vpack.c.b16 %v3909, %v3908
  %v3923 = vpack.c.b16 %v3911, %v3910
  %v3924 = vpack.c.b16 %v3913, %v3912
  %v3925 = vpack.c.b16 %v3915, %v3914
  %v3926 = vpack.c.b16 %v3917, %v3916
  %v3936 = vsel %vm3604, %v3926, 0
  %3938 = vmatprep.subr.bf16.mxu0 0
  %3939 = vmatpush1.bf16.msra.mxu0 %v3925
  %3940 = vmatprep.subr.bf16.mxu0 0
  %3941 = vmatpush1.bf16.msra.mxu0 %v3924
  %3942 = vmatprep.subr.bf16.mxu0 0
  %3943 = vmatpush1.bf16.msra.mxu0 %v3923
  %3944 = vmatprep.subr.bf16.mxu0 0
  %3945 = vmatpush1.bf16.msra.mxu0 %v3922
  %3946 = vmatprep.subr.bf16.mxu0 0
  %3947 = vmatpush1.bf16.msra.mxu0 %v3921
  %3948 = vmatprep.subr.bf16.mxu0 0
  %3949 = vmatpush1.bf16.msra.mxu0 %v3920
  %3950 = vmatprep.subr.bf16.mxu0 0
  %3951 = vmatpush1.bf16.msra.mxu0 %v3919
  %3952 = vmatprep.subr.bf16.mxu0 0
  %3953 = vmatpush1.bf16.msra.mxu0 %v3918
  %3954 = vmatprep.subr.bf16.mxu0 0
  %3955 = vmatpush2.bf16.msra.mxu0 0
  %3956 = vmatprep.subr.bf16.mxu0 0
  %3957 = vmatpush2.bf16.msra.mxu0 0
  %3958 = vmatprep.subr.bf16.mxu0 0
  %3959 = vmatpush2.bf16.msra.mxu0 0
  %3960 = vmatprep.subr.bf16.mxu0 0
  %3961 = vmatpush2.bf16.msra.mxu0 0
  %3962 = vmatprep.subr.bf16.mxu0 0
  %3963 = vmatpush2.bf16.msra.mxu0 0
  %3964 = vmatprep.subr.bf16.mxu0 0
  %3965 = vmatpush2.bf16.msra.mxu0 0
  %3966 = vmatprep.subr.bf16.mxu0 0
  %3967 = vmatpush2.bf16.msra.mxu0 0
  %3968 = vmatprep.subr.bf16.mxu0 0
  %3969 = vmatpush2.bf16.msra.mxu0 %v3936
  %3970 = vmatprep.mubr.bf16.mxu0 %v3584
  %3971 = vmatmul.mubr.bf16.gmra.mxu0 %v3508
  %v3972 = vpop.f32.mrf.mxu0
  %v3973 = vpop.f32.mrf.mxu0
  %v3974 = vpop.f32.mrf.mxu0
  %v3975 = vpop.f32.mrf.mxu0
  %3976 = vmatprep.mubr.bf16.mxu0 %v3587
  %3977 = vmatmul.mubr.bf16.gmra.mxu0 %v3510
  %v3978 = vpop.f32.mrf.mxu0
  %v3979 = vadd.f32 0.0, %v3978
  %v3980 = vpop.f32.mrf.mxu0
  %v3981 = vpop.f32.mrf.mxu0
  %v3982 = vadd.f32 0.0, %v3981
  %v3983 = vpop.f32.mrf.mxu0
  %3984 = vmatprep.mubr.bf16.mxu0 %v3590
  %3985 = vmatmul.mubr.bf16.gmra.mxu0 %v3512
  %v3986 = vpop.f32.mrf.mxu0
  %v3987 = vadd.f32 0.0, %v3986
  %v3988 = vpop.f32.mrf.mxu0
  %v3989 = vpop.f32.mrf.mxu0
  %v3990 = vadd.f32 0.0, %v3989
  %v3991 = vpop.f32.mrf.mxu0
  %3992 = vmatprep.mubr.bf16.mxu0 %v3593
  %3993 = vmatmul.mubr.bf16.gmra.mxu0 %v3514
  %v3994 = vpop.f32.mrf.mxu0
  %v3995 = vadd.f32 0.0, %v3994
  %v3996 = vpop.f32.mrf.mxu0
  %v3997 = vpop.f32.mrf.mxu0
  %v3998 = vadd.f32 0.0, %v3997
  %v3999 = vpop.f32.mrf.mxu0
  %4000 = vmatprep.mubr.bf16.mxu0 %v3596
  %4001 = vmatmul.mubr.bf16.gmra.mxu0 %v3516
  %v4002 = vpop.f32.mrf.mxu0
  %v4003 = vadd.f32 0.0, %v4002
  %v4004 = vpop.f32.mrf.mxu0
  %v4005 = vpop.f32.mrf.mxu0
  %v4006 = vadd.f32 0.0, %v4005
  %v4007 = vpop.f32.mrf.mxu0
  %4008 = vmatprep.mubr.bf16.mxu0 %v3599
  %4009 = vmatmul.mubr.bf16.gmra.mxu0 %v3518
  %v4010 = vpop.f32.mrf.mxu0
  %v4011 = vadd.f32 0.0, %v4010
  %v4012 = vpop.f32.mrf.mxu0
  %v4013 = vpop.f32.mrf.mxu0
  %v4014 = vadd.f32 0.0, %v4013
  %v4015 = vpop.f32.mrf.mxu0
  %4016 = vmatprep.mubr.bf16.mxu0 %v3602
  %4017 = vmatmul.mubr.bf16.gmra.mxu0 %v3520
  %v4018 = vpop.f32.mrf.mxu0
  %v4019 = vpop.f32.mrf.mxu0
  %v4020 = vpop.f32.mrf.mxu0
  %v4021 = vpop.f32.mrf.mxu0
  %4022 = vdwg.mxu0
  %v4023 = vadd.f32 %v3853, %v3979
  %v4024 = vadd.f32 %v3854, %v3982
  %v4025 = vadd.f32 %v3855, %v3987
  %v4026 = vadd.f32 %v3856, %v3990
  %v4027 = vadd.f32 %v3857, %v3995
  %v4028 = vadd.f32 %v3858, %v3998
  %v4029 = vadd.f32 %v3859, %v4003
  %v4030 = vadd.f32 %v3860, %v4006
  %v4031 = vadd.f32 %v3861, %v4011
  %v4032 = vadd.f32 %v3862, %v4014
  %s4033 = scalar_lea.vmem %s4, 216
  %v4034 = vld [vmem:[%s4033] sm:$0xf]
  %v4035 = vld [vmem:[%s4033 + $0x4] sm:$0xf]
  %v4036 = vld [vmem:[%s4033 + $0x8] sm:$0xf]
  %v4037 = vld [vmem:[%s4033 + $0xc] sm:$0xf]
  %v4038 = vld [vmem:[%s4033 + $0x10] sm:$0xf]
  %v4039 = vld [vmem:[%s4033 + $0x14] sm:$0xf]
  %v4040 = vld [vmem:[%s4033 + $0x18] sm:$0xf]
  %v4041 = vld [vmem:[%s4033 + $0x1c] sm:$0xf]
  %v4042 = vld [vmem:[%s4033 + $0x20] sm:$0xf]
  %v4043 = vld [vmem:[%s4033 + $0x24] sm:$0xf]
  %v4044 = vld [vmem:[%s4033 + $0x28] sm:$0xf]
  %v4045 = vld [vmem:[%s4033 + $0x2c] sm:$0xf]
  %v4046 = vld [vmem:[%s4033 + $0x30] sm:$0xf]
  %v4047 = vld [vmem:[%s4033 + $0x34] sm:$0xf]
  %v4048 = vld [vmem:[%s4033 + $0x38] sm:$0xf]
  %v4049 = vld [vmem:[%s4033 + $0x3c] sm:$0xf]
  %v4050 = vld [vmem:[%s4033 + $0x40] sm:$0xf]
  %v4051 = vld [vmem:[%s4033 + $0x44] sm:$0x3]
  %v4070 = vunpack.c.l.b16 %v4034
  %v4071 = vunpack.c.l.b16 %v4035
  %v4072 = vunpack.c.l.b16 %v4036
  %v4073 = vunpack.c.l.b16 %v4037
  %v4074 = vunpack.c.l.b16 %v4038
  %v4075 = vunpack.c.l.b16 %v4039
  %v4076 = vunpack.c.l.b16 %v4040
  %v4077 = vunpack.c.l.b16 %v4041
  %v4078 = vunpack.c.l.b16 %v4042
  %v4079 = vunpack.c.l.b16 %v4043
  %v4080 = vunpack.c.l.b16 %v4044
  %v4081 = vunpack.c.l.b16 %v4045
  %v4082 = vunpack.c.l.b16 %v4046
  %v4083 = vunpack.c.l.b16 %v4047
  %v4084 = vunpack.c.l.b16 %v4048
  %v4085 = vunpack.c.l.b16 %v4049
  %v4086 = vunpack.c.l.b16 %v4050
  %v4087 = vunpack.c.l.b16 %v4051
  %v4088 = vpack.c.b16 %v4071, %v4070
  %v4089 = vpack.c.b16 %v4073, %v4072
  %v4090 = vpack.c.b16 %v4075, %v4074
  %v4091 = vpack.c.b16 %v4077, %v4076
  %v4092 = vpack.c.b16 %v4079, %v4078
  %v4093 = vpack.c.b16 %v4081, %v4080
  %v4094 = vpack.c.b16 %v4083, %v4082
  %v4095 = vpack.c.b16 %v4085, %v4084
  %v4096 = vpack.c.b16 %v4087, %v4086
  %v4106 = vsel %vm3604, %v4096, 0
  %4108 = vmatprep.subr.bf16.mxu0 0
  %4109 = vmatpush1.bf16.msra.mxu0 %v4095
  %4110 = vmatprep.subr.bf16.mxu0 0
  %4111 = vmatpush1.bf16.msra.mxu0 %v4094
  %4112 = vmatprep.subr.bf16.mxu0 0
  %4113 = vmatpush1.bf16.msra.mxu0 %v4093
  %4114 = vmatprep.subr.bf16.mxu0 0
  %4115 = vmatpush1.bf16.msra.mxu0 %v4092
  %4116 = vmatprep.subr.bf16.mxu0 0
  %4117 = vmatpush1.bf16.msra.mxu0 %v4091
  %4118 = vmatprep.subr.bf16.mxu0 0
  %4119 = vmatpush1.bf16.msra.mxu0 %v4090
  %4120 = vmatprep.subr.bf16.mxu0 0
  %4121 = vmatpush1.bf16.msra.mxu0 %v4089
  %4122 = vmatprep.subr.bf16.mxu0 0
  %4123 = vmatpush1.bf16.msra.mxu0 %v4088
  %4124 = vmatprep.subr.bf16.mxu0 0
  %4125 = vmatpush2.bf16.msra.mxu0 0
  %4126 = vmatprep.subr.bf16.mxu0 0
  %4127 = vmatpush2.bf16.msra.mxu0 0
  %4128 = vmatprep.subr.bf16.mxu0 0
  %4129 = vmatpush2.bf16.msra.mxu0 0
  %4130 = vmatprep.subr.bf16.mxu0 0
  %4131 = vmatpush2.bf16.msra.mxu0 0
  %4132 = vmatprep.subr.bf16.mxu0 0
  %4133 = vmatpush2.bf16.msra.mxu0 0
  %4134 = vmatprep.subr.bf16.mxu0 0
  %4135 = vmatpush2.bf16.msra.mxu0 0
  %4136 = vmatprep.subr.bf16.mxu0 0
  %4137 = vmatpush2.bf16.msra.mxu0 0
  %4138 = vmatprep.subr.bf16.mxu0 0
  %4139 = vmatpush2.bf16.msra.mxu0 %v4106
  %4140 = vmatprep.mubr.bf16.mxu0 %v3584
  %4141 = vmatmul.mubr.bf16.gmra.mxu0 %v3508
  %v4142 = vpop.f32.mrf.mxu0
  %v4143 = vpop.f32.mrf.mxu0
  %v4144 = vpop.f32.mrf.mxu0
  %v4145 = vpop.f32.mrf.mxu0
  %4146 = vmatprep.mubr.bf16.mxu0 %v3587
  %4147 = vmatmul.mubr.bf16.gmra.mxu0 %v3510
  %v4148 = vpop.f32.mrf.mxu0
  %v4149 = vpop.f32.mrf.mxu0
  %v4150 = vpop.f32.mrf.mxu0
  %v4151 = vadd.f32 0.0, %v4150
  %v4152 = vpop.f32.mrf.mxu0
  %4153 = vmatprep.mubr.bf16.mxu0 %v3590
  %4154 = vmatmul.mubr.bf16.gmra.mxu0 %v3512
  %v4155 = vpop.f32.mrf.mxu0
  %v4156 = vadd.f32 0.0, %v4155
  %v4157 = vpop.f32.mrf.mxu0
  %v4158 = vpop.f32.mrf.mxu0
  %v4159 = vadd.f32 0.0, %v4158
  %v4160 = vpop.f32.mrf.mxu0
  %4161 = vmatprep.mubr.bf16.mxu0 %v3593
  %4162 = vmatmul.mubr.bf16.gmra.mxu0 %v3514
  %v4163 = vpop.f32.mrf.mxu0
  %v4164 = vadd.f32 0.0, %v4163
  %v4165 = vpop.f32.mrf.mxu0
  %v4166 = vpop.f32.mrf.mxu0
  %v4167 = vadd.f32 0.0, %v4166
  %v4168 = vpop.f32.mrf.mxu0
  %4169 = vmatprep.mubr.bf16.mxu0 %v3596
  %4170 = vmatmul.mubr.bf16.gmra.mxu0 %v3516
  %v4171 = vpop.f32.mrf.mxu0
  %v4172 = vadd.f32 0.0, %v4171
  %v4173 = vpop.f32.mrf.mxu0
  %v4174 = vpop.f32.mrf.mxu0
  %v4175 = vadd.f32 0.0, %v4174
  %v4176 = vpop.f32.mrf.mxu0
  %4177 = vmatprep.mubr.bf16.mxu0 %v3599
  %4178 = vmatmul.mubr.bf16.gmra.mxu0 %v3518
  %v4179 = vpop.f32.mrf.mxu0
  %v4180 = vadd.f32 0.0, %v4179
  %v4181 = vpop.f32.mrf.mxu0
  %v4182 = vpop.f32.mrf.mxu0
  %v4183 = vadd.f32 0.0, %v4182
  %v4184 = vpop.f32.mrf.mxu0
  %4185 = vmatprep.mubr.bf16.mxu0 %v3602
  %4186 = vmatmul.mubr.bf16.gmra.mxu0 %v3520
  %v4187 = vpop.f32.mrf.mxu0
  %v4188 = vadd.f32 0.0, %v4187
  %v4189 = vpop.f32.mrf.mxu0
  %v4190 = vpop.f32.mrf.mxu0
  %v4191 = vpop.f32.mrf.mxu0
  %4192 = vdwg.mxu0
  %v4193 = vadd.f32 %v4023, %v4151
  %v4194 = vadd.f32 %v4024, %v4156
  %v4195 = vadd.f32 %v4025, %v4159
  %v4196 = vadd.f32 %v4026, %v4164
  %v4197 = vadd.f32 %v4027, %v4167
  %v4198 = vadd.f32 %v4028, %v4172
  %v4199 = vadd.f32 %v4029, %v4175
  %v4200 = vadd.f32 %v4030, %v4180
  %v4201 = vadd.f32 %v4031, %v4183
  %v4202 = vadd.f32 %v4032, %v4188
  %s4203 = scalar_lea.vmem %s4, 288
  %v4204 = vld [vmem:[%s4203] sm:$0xf]
  %v4205 = vld [vmem:[%s4203 + $0x4] sm:$0xf]
  %v4206 = vld [vmem:[%s4203 + $0x8] sm:$0xf]
  %v4207 = vld [vmem:[%s4203 + $0xc] sm:$0xf]
  %v4208 = vld [vmem:[%s4203 + $0x10] sm:$0xf]
  %v4209 = vld [vmem:[%s4203 + $0x14] sm:$0xf]
  %v4210 = vld [vmem:[%s4203 + $0x18] sm:$0xf]
  %v4211 = vld [vmem:[%s4203 + $0x1c] sm:$0xf]
  %v4212 = vld [vmem:[%s4203 + $0x20] sm:$0xf]
  %v4213 = vld [vmem:[%s4203 + $0x24] sm:$0xf]
  %v4214 = vld [vmem:[%s4203 + $0x28] sm:$0xf]
  %v4215 = vld [vmem:[%s4203 + $0x2c] sm:$0xf]
  %v4216 = vld [vmem:[%s4203 + $0x30] sm:$0xf]
  %v4217 = vld [vmem:[%s4203 + $0x34] sm:$0xf]
  %v4218 = vld [vmem:[%s4203 + $0x38] sm:$0xf]
  %v4219 = vld [vmem:[%s4203 + $0x3c] sm:$0xf]
  %v4220 = vld [vmem:[%s4203 + $0x40] sm:$0xf]
  %v4221 = vld [vmem:[%s4203 + $0x44] sm:$0x3]
  %v4240 = vunpack.c.l.b16 %v4204
  %v4241 = vunpack.c.l.b16 %v4205
  %v4242 = vunpack.c.l.b16 %v4206
  %v4243 = vunpack.c.l.b16 %v4207
  %v4244 = vunpack.c.l.b16 %v4208
  %v4245 = vunpack.c.l.b16 %v4209
  %v4246 = vunpack.c.l.b16 %v4210
  %v4247 = vunpack.c.l.b16 %v4211
  %v4248 = vunpack.c.l.b16 %v4212
  %v4249 = vunpack.c.l.b16 %v4213
  %v4250 = vunpack.c.l.b16 %v4214
  %v4251 = vunpack.c.l.b16 %v4215
  %v4252 = vunpack.c.l.b16 %v4216
  %v4253 = vunpack.c.l.b16 %v4217
  %v4254 = vunpack.c.l.b16 %v4218
  %v4255 = vunpack.c.l.b16 %v4219
  %v4256 = vunpack.c.l.b16 %v4220
  %v4257 = vunpack.c.l.b16 %v4221
  %v4258 = vpack.c.b16 %v4241, %v4240
  %v4259 = vpack.c.b16 %v4243, %v4242
  %v4260 = vpack.c.b16 %v4245, %v4244
  %v4261 = vpack.c.b16 %v4247, %v4246
  %v4262 = vpack.c.b16 %v4249, %v4248
  %v4263 = vpack.c.b16 %v4251, %v4250
  %v4264 = vpack.c.b16 %v4253, %v4252
  %v4265 = vpack.c.b16 %v4255, %v4254
  %v4266 = vpack.c.b16 %v4257, %v4256
  %v4276 = vsel %vm3604, %v4266, 0
  %4278 = vmatprep.subr.bf16.mxu0 0
  %4279 = vmatpush1.bf16.msra.mxu0 %v4265
  %4280 = vmatprep.subr.bf16.mxu0 0
  %4281 = vmatpush1.bf16.msra.mxu0 %v4264
  %4282 = vmatprep.subr.bf16.mxu0 0
  %4283 = vmatpush1.bf16.msra.mxu0 %v4263
  %4284 = vmatprep.subr.bf16.mxu0 0
  %4285 = vmatpush1.bf16.msra.mxu0 %v4262
  %4286 = vmatprep.subr.bf16.mxu0 0
  %4287 = vmatpush1.bf16.msra.mxu0 %v4261
  %4288 = vmatprep.subr.bf16.mxu0 0
  %4289 = vmatpush1.bf16.msra.mxu0 %v4260
  %4290 = vmatprep.subr.bf16.mxu0 0
  %4291 = vmatpush1.bf16.msra.mxu0 %v4259
  %4292 = vmatprep.subr.bf16.mxu0 0
  %4293 = vmatpush1.bf16.msra.mxu0 %v4258
  %4294 = vmatprep.subr.bf16.mxu0 0
  %4295 = vmatpush2.bf16.msra.mxu0 0
  %4296 = vmatprep.subr.bf16.mxu0 0
  %4297 = vmatpush2.bf16.msra.mxu0 0
  %4298 = vmatprep.subr.bf16.mxu0 0
  %4299 = vmatpush2.bf16.msra.mxu0 0
  %4300 = vmatprep.subr.bf16.mxu0 0
  %4301 = vmatpush2.bf16.msra.mxu0 0
  %4302 = vmatprep.subr.bf16.mxu0 0
  %4303 = vmatpush2.bf16.msra.mxu0 0
  %4304 = vmatprep.subr.bf16.mxu0 0
  %4305 = vmatpush2.bf16.msra.mxu0 0
  %4306 = vmatprep.subr.bf16.mxu0 0
  %4307 = vmatpush2.bf16.msra.mxu0 0
  %4308 = vmatprep.subr.bf16.mxu0 0
  %4309 = vmatpush2.bf16.msra.mxu0 %v4276
  %4310 = vmatprep.mubr.bf16.mxu0 %v3584
  %4311 = vmatmul.mubr.bf16.gmra.mxu0 %v3508
  %v4312 = vpop.f32.mrf.mxu0
  %v4313 = vpop.f32.mrf.mxu0
  %v4314 = vpop.f32.mrf.mxu0
  %v4315 = vpop.f32.mrf.mxu0
  %4316 = vmatprep.mubr.bf16.mxu0 %v3587
  %4317 = vmatmul.mubr.bf16.gmra.mxu0 %v3510
  %v4318 = vpop.f32.mrf.mxu0
  %v4319 = vpop.f32.mrf.mxu0
  %v4320 = vpop.f32.mrf.mxu0
  %v4321 = vpop.f32.mrf.mxu0
  %4322 = vmatprep.mubr.bf16.mxu0 %v3590
  %4323 = vmatmul.mubr.bf16.gmra.mxu0 %v3512
  %v4324 = vpop.f32.mrf.mxu0
  %v4325 = vadd.f32 0.0, %v4324
  %v4326 = vpop.f32.mrf.mxu0
  %v4327 = vpop.f32.mrf.mxu0
  %v4328 = vadd.f32 0.0, %v4327
  %v4329 = vpop.f32.mrf.mxu0
  %4330 = vmatprep.mubr.bf16.mxu0 %v3593
  %4331 = vmatmul.mubr.bf16.gmra.mxu0 %v3514
  %v4332 = vpop.f32.mrf.mxu0
  %v4333 = vadd.f32 0.0, %v4332
  %v4334 = vpop.f32.mrf.mxu0
  %v4335 = vpop.f32.mrf.mxu0
  %v4336 = vadd.f32 0.0, %v4335
  %v4337 = vpop.f32.mrf.mxu0
  %4338 = vmatprep.mubr.bf16.mxu0 %v3596
  %4339 = vmatmul.mubr.bf16.gmra.mxu0 %v3516
  %v4340 = vpop.f32.mrf.mxu0
  %v4341 = vadd.f32 0.0, %v4340
  %v4342 = vpop.f32.mrf.mxu0
  %v4343 = vpop.f32.mrf.mxu0
  %v4344 = vadd.f32 0.0, %v4343
  %v4345 = vpop.f32.mrf.mxu0
  %4346 = vmatprep.mubr.bf16.mxu0 %v3599
  %4347 = vmatmul.mubr.bf16.gmra.mxu0 %v3518
  %v4348 = vpop.f32.mrf.mxu0
  %v4349 = vadd.f32 0.0, %v4348
  %v4350 = vpop.f32.mrf.mxu0
  %v4351 = vpop.f32.mrf.mxu0
  %v4352 = vadd.f32 0.0, %v4351
  %v4353 = vpop.f32.mrf.mxu0
  %4354 = vmatprep.mubr.bf16.mxu0 %v3602
  %4355 = vmatmul.mubr.bf16.gmra.mxu0 %v3520
  %v4356 = vpop.f32.mrf.mxu0
  %v4357 = vadd.f32 0.0, %v4356
  %v4358 = vpop.f32.mrf.mxu0
  %v4359 = vpop.f32.mrf.mxu0
  %v4360 = vadd.f32 0.0, %v4359
  %v4361 = vpop.f32.mrf.mxu0
  %4362 = vdwg.mxu0
  %v4363 = vadd.f32 %v4193, %v4325
  %v4364 = vadd.f32 %v4194, %v4328
  %v4365 = vadd.f32 %v4195, %v4333
  %v4366 = vadd.f32 %v4196, %v4336
  %v4367 = vadd.f32 %v4197, %v4341
  %v4368 = vadd.f32 %v4198, %v4344
  %v4369 = vadd.f32 %v4199, %v4349
  %v4370 = vadd.f32 %v4200, %v4352
  %v4371 = vadd.f32 %v4201, %v4357
  %v4372 = vadd.f32 %v4202, %v4360
  %v4373 = vld [vmem:[%s5] sm:$0xf]
  %v4374 = vld [vmem:[%s5 + $0x4] sm:$0xf]
  %v4375 = vld [vmem:[%s5 + $0x8] sm:$0xf]
  %v4376 = vld [vmem:[%s5 + $0xc] sm:$0xf]
  %v4377 = vld [vmem:[%s5 + $0x10] sm:$0xf]
  %v4378 = vld [vmem:[%s5 + $0x14] sm:$0xf]
  %v4379 = vld [vmem:[%s5 + $0x18] sm:$0xf]
  %v4380 = vld [vmem:[%s5 + $0x1c] sm:$0xf]
  %v4381 = vld [vmem:[%s5 + $0x20] sm:$0xf]
  %v4382 = vld [vmem:[%s5 + $0x24] sm:$0xf]
  %v4383 = vld [vmem:[%s5 + $0x28] sm:$0xf]
  %v4384 = vld [vmem:[%s5 + $0x2c] sm:$0xf]
  %v4385 = vld [vmem:[%s5 + $0x30] sm:$0xf]
  %v4386 = vld [vmem:[%s5 + $0x34] sm:$0xf]
  %v4387 = vld [vmem:[%s5 + $0x38] sm:$0xf]
  %v4388 = vld [vmem:[%s5 + $0x3c] sm:$0xf]
  %v4389 = vld [vmem:[%s5 + $0x40] sm:$0xf]
  %v4390 = vld [vmem:[%s5 + $0x44] sm:$0x3]
  %v4409 = vunpack.c.l.b16 %v4373
  %v4410 = vunpack.c.l.b16 %v4374
  %v4411 = vunpack.c.l.b16 %v4375
  %v4412 = vunpack.c.l.b16 %v4376
  %v4413 = vunpack.c.l.b16 %v4377
  %v4414 = vunpack.c.l.b16 %v4378
  %v4415 = vunpack.c.l.b16 %v4379
  %v4416 = vunpack.c.l.b16 %v4380
  %v4417 = vunpack.c.l.b16 %v4381
  %v4418 = vunpack.c.l.b16 %v4382
  %v4419 = vunpack.c.l.b16 %v4383
  %v4420 = vunpack.c.l.b16 %v4384
  %v4421 = vunpack.c.l.b16 %v4385
  %v4422 = vunpack.c.l.b16 %v4386
  %v4423 = vunpack.c.l.b16 %v4387
  %v4424 = vunpack.c.l.b16 %v4388
  %v4425 = vunpack.c.l.b16 %v4389
  %v4426 = vunpack.c.l.b16 %v4390
  %v4427 = vpack.c.b16 %v4410, %v4409
  %v4428 = vpack.c.b16 %v4412, %v4411
  %v4429 = vpack.c.b16 %v4414, %v4413
  %v4430 = vpack.c.b16 %v4416, %v4415
  %v4431 = vpack.c.b16 %v4418, %v4417
  %v4432 = vpack.c.b16 %v4420, %v4419
  %v4433 = vpack.c.b16 %v4422, %v4421
  %v4434 = vpack.c.b16 %v4424, %v4423
  %v4435 = vpack.c.b16 %v4426, %v4425
  %v4445 = vsel %vm3604, %v4435, 0
  %4447 = vmatprep.subr.bf16.mxu0 0
  %4448 = vmatpush1.bf16.msra.mxu0 %v4434
  %4449 = vmatprep.subr.bf16.mxu0 0
  %4450 = vmatpush1.bf16.msra.mxu0 %v4433
  %4451 = vmatprep.subr.bf16.mxu0 0
  %4452 = vmatpush1.bf16.msra.mxu0 %v4432
  %4453 = vmatprep.subr.bf16.mxu0 0
  %4454 = vmatpush1.bf16.msra.mxu0 %v4431
  %4455 = vmatprep.subr.bf16.mxu0 0
  %4456 = vmatpush1.bf16.msra.mxu0 %v4430
  %4457 = vmatprep.subr.bf16.mxu0 0
  %4458 = vmatpush1.bf16.msra.mxu0 %v4429
  %4459 = vmatprep.subr.bf16.mxu0 0
  %4460 = vmatpush1.bf16.msra.mxu0 %v4428
  %4461 = vmatprep.subr.bf16.mxu0 0
  %4462 = vmatpush1.bf16.msra.mxu0 %v4427
  %4463 = vmatprep.subr.bf16.mxu0 0
  %4464 = vmatpush2.bf16.msra.mxu0 0
  %4465 = vmatprep.subr.bf16.mxu0 0
  %4466 = vmatpush2.bf16.msra.mxu0 0
  %4467 = vmatprep.subr.bf16.mxu0 0
  %4468 = vmatpush2.bf16.msra.mxu0 0
  %4469 = vmatprep.subr.bf16.mxu0 0
  %4470 = vmatpush2.bf16.msra.mxu0 0
  %4471 = vmatprep.subr.bf16.mxu0 0
  %4472 = vmatpush2.bf16.msra.mxu0 0
  %4473 = vmatprep.subr.bf16.mxu0 0
  %4474 = vmatpush2.bf16.msra.mxu0 0
  %4475 = vmatprep.subr.bf16.mxu0 0
  %4476 = vmatpush2.bf16.msra.mxu0 0
  %4477 = vmatprep.subr.bf16.mxu0 0
  %4478 = vmatpush2.bf16.msra.mxu0 %v4445
  %4479 = vmatprep.mubr.bf16.mxu0 %v3584
  %4480 = vmatmul.mubr.bf16.gmra.mxu0 %v3508
  %v4481 = vpop.f32.mrf.mxu0
  %v4482 = vadd.f32 0.0, %v4481
  %v4483 = vpop.f32.mrf.mxu0
  %v4484 = vpop.f32.mrf.mxu0
  %v4485 = vadd.f32 0.0, %v4484
  %v4486 = vpop.f32.mrf.mxu0
  %4487 = vmatprep.mubr.bf16.mxu0 %v3587
  %4488 = vmatmul.mubr.bf16.gmra.mxu0 %v3510
  %v4489 = vpop.f32.mrf.mxu0
  %v4490 = vadd.f32 0.0, %v4489
  %v4491 = vpop.f32.mrf.mxu0
  %v4492 = vpop.f32.mrf.mxu0
  %v4493 = vadd.f32 0.0, %v4492
  %v4494 = vpop.f32.mrf.mxu0
  %4495 = vmatprep.mubr.bf16.mxu0 %v3590
  %4496 = vmatmul.mubr.bf16.gmra.mxu0 %v3512
  %v4497 = vpop.f32.mrf.mxu0
  %v4498 = vadd.f32 0.0, %v4497
  %v4499 = vpop.f32.mrf.mxu0
  %v4500 = vpop.f32.mrf.mxu0
  %v4501 = vadd.f32 0.0, %v4500
  %v4502 = vpop.f32.mrf.mxu0
  %4503 = vmatprep.mubr.bf16.mxu0 %v3593
  %4504 = vmatmul.mubr.bf16.gmra.mxu0 %v3514
  %v4505 = vpop.f32.mrf.mxu0
  %v4506 = vadd.f32 0.0, %v4505
  %v4507 = vpop.f32.mrf.mxu0
  %v4508 = vpop.f32.mrf.mxu0
  %v4509 = vadd.f32 0.0, %v4508
  %v4510 = vpop.f32.mrf.mxu0
  %4511 = vmatprep.mubr.bf16.mxu0 %v3596
  %4512 = vmatmul.mubr.bf16.gmra.mxu0 %v3516
  %v4513 = vpop.f32.mrf.mxu0
  %v4514 = vadd.f32 0.0, %v4513
  %v4515 = vpop.f32.mrf.mxu0
  %v4516 = vpop.f32.mrf.mxu0
  %v4517 = vadd.f32 0.0, %v4516
  %v4518 = vpop.f32.mrf.mxu0
  %4519 = vmatprep.mubr.bf16.mxu0 %v3599
  %4520 = vmatmul.mubr.bf16.gmra.mxu0 %v3518
  %v4521 = vpop.f32.mrf.mxu0
  %v4522 = vpop.f32.mrf.mxu0
  %v4523 = vpop.f32.mrf.mxu0
  %v4524 = vpop.f32.mrf.mxu0
  %4525 = vmatprep.mubr.bf16.mxu0 %v3602
  %4526 = vmatmul.mubr.bf16.gmra.mxu0 %v3520
  %v4527 = vpop.f32.mrf.mxu0
  %v4528 = vpop.f32.mrf.mxu0
  %v4529 = vpop.f32.mrf.mxu0
  %v4530 = vpop.f32.mrf.mxu0
  %4531 = vdwg.mxu0
  %s4532 = scalar_lea.vmem %s5, 72
  %v4533 = vld [vmem:[%s4532] sm:$0xf]
  %v4534 = vld [vmem:[%s4532 + $0x4] sm:$0xf]
  %v4535 = vld [vmem:[%s4532 + $0x8] sm:$0xf]
  %v4536 = vld [vmem:[%s4532 + $0xc] sm:$0xf]
  %v4537 = vld [vmem:[%s4532 + $0x10] sm:$0xf]
  %v4538 = vld [vmem:[%s4532 + $0x14] sm:$0xf]
  %v4539 = vld [vmem:[%s4532 + $0x18] sm:$0xf]
  %v4540 = vld [vmem:[%s4532 + $0x1c] sm:$0xf]
  %v4541 = vld [vmem:[%s4532 + $0x20] sm:$0xf]
  %v4542 = vld [vmem:[%s4532 + $0x24] sm:$0xf]
  %v4543 = vld [vmem:[%s4532 + $0x28] sm:$0xf]
  %v4544 = vld [vmem:[%s4532 + $0x2c] sm:$0xf]
  %v4545 = vld [vmem:[%s4532 + $0x30] sm:$0xf]
  %v4546 = vld [vmem:[%s4532 + $0x34] sm:$0xf]
  %v4547 = vld [vmem:[%s4532 + $0x38] sm:$0xf]
  %v4548 = vld [vmem:[%s4532 + $0x3c] sm:$0xf]
  %v4549 = vld [vmem:[%s4532 + $0x40] sm:$0xf]
  %v4550 = vld [vmem:[%s4532 + $0x44] sm:$0x3]
  %v4569 = vunpack.c.l.b16 %v4533
  %v4570 = vunpack.c.l.b16 %v4534
  %v4571 = vunpack.c.l.b16 %v4535
  %v4572 = vunpack.c.l.b16 %v4536
  %v4573 = vunpack.c.l.b16 %v4537
  %v4574 = vunpack.c.l.b16 %v4538
  %v4575 = vunpack.c.l.b16 %v4539
  %v4576 = vunpack.c.l.b16 %v4540
  %v4577 = vunpack.c.l.b16 %v4541
  %v4578 = vunpack.c.l.b16 %v4542
  %v4579 = vunpack.c.l.b16 %v4543
  %v4580 = vunpack.c.l.b16 %v4544
  %v4581 = vunpack.c.l.b16 %v4545
  %v4582 = vunpack.c.l.b16 %v4546
  %v4583 = vunpack.c.l.b16 %v4547
  %v4584 = vunpack.c.l.b16 %v4548
  %v4585 = vunpack.c.l.b16 %v4549
  %v4586 = vunpack.c.l.b16 %v4550
  %v4587 = vpack.c.b16 %v4570, %v4569
  %v4588 = vpack.c.b16 %v4572, %v4571
  %v4589 = vpack.c.b16 %v4574, %v4573
  %v4590 = vpack.c.b16 %v4576, %v4575
  %v4591 = vpack.c.b16 %v4578, %v4577
  %v4592 = vpack.c.b16 %v4580, %v4579
  %v4593 = vpack.c.b16 %v4582, %v4581
  %v4594 = vpack.c.b16 %v4584, %v4583
  %v4595 = vpack.c.b16 %v4586, %v4585
  %v4605 = vsel %vm3604, %v4595, 0
  %4607 = vmatprep.subr.bf16.mxu0 0
  %4608 = vmatpush1.bf16.msra.mxu0 %v4594
  %4609 = vmatprep.subr.bf16.mxu0 0
  %4610 = vmatpush1.bf16.msra.mxu0 %v4593
  %4611 = vmatprep.subr.bf16.mxu0 0
  %4612 = vmatpush1.bf16.msra.mxu0 %v4592
  %4613 = vmatprep.subr.bf16.mxu0 0
  %4614 = vmatpush1.bf16.msra.mxu0 %v4591
  %4615 = vmatprep.subr.bf16.mxu0 0
  %4616 = vmatpush1.bf16.msra.mxu0 %v4590
  %4617 = vmatprep.subr.bf16.mxu0 0
  %4618 = vmatpush1.bf16.msra.mxu0 %v4589
  %4619 = vmatprep.subr.bf16.mxu0 0
  %4620 = vmatpush1.bf16.msra.mxu0 %v4588
  %4621 = vmatprep.subr.bf16.mxu0 0
  %4622 = vmatpush1.bf16.msra.mxu0 %v4587
  %4623 = vmatprep.subr.bf16.mxu0 0
  %4624 = vmatpush2.bf16.msra.mxu0 0
  %4625 = vmatprep.subr.bf16.mxu0 0
  %4626 = vmatpush2.bf16.msra.mxu0 0
  %4627 = vmatprep.subr.bf16.mxu0 0
  %4628 = vmatpush2.bf16.msra.mxu0 0
  %4629 = vmatprep.subr.bf16.mxu0 0
  %4630 = vmatpush2.bf16.msra.mxu0 0
  %4631 = vmatprep.subr.bf16.mxu0 0
  %4632 = vmatpush2.bf16.msra.mxu0 0
  %4633 = vmatprep.subr.bf16.mxu0 0
  %4634 = vmatpush2.bf16.msra.mxu0 0
  %4635 = vmatprep.subr.bf16.mxu0 0
  %4636 = vmatpush2.bf16.msra.mxu0 0
  %4637 = vmatprep.subr.bf16.mxu0 0
  %4638 = vmatpush2.bf16.msra.mxu0 %v4605
  %4639 = vmatprep.mubr.bf16.mxu0 %v3584
  %4640 = vmatmul.mubr.bf16.gmra.mxu0 %v3508
  %v4641 = vpop.f32.mrf.mxu0
  %v4642 = vpop.f32.mrf.mxu0
  %v4643 = vpop.f32.mrf.mxu0
  %v4644 = vadd.f32 0.0, %v4643
  %v4645 = vpop.f32.mrf.mxu0
  %4646 = vmatprep.mubr.bf16.mxu0 %v3587
  %4647 = vmatmul.mubr.bf16.gmra.mxu0 %v3510
  %v4648 = vpop.f32.mrf.mxu0
  %v4649 = vadd.f32 0.0, %v4648
  %v4650 = vpop.f32.mrf.mxu0
  %v4651 = vpop.f32.mrf.mxu0
  %v4652 = vadd.f32 0.0, %v4651
  %v4653 = vpop.f32.mrf.mxu0
  %4654 = vmatprep.mubr.bf16.mxu0 %v3590
  %4655 = vmatmul.mubr.bf16.gmra.mxu0 %v3512
  %v4656 = vpop.f32.mrf.mxu0
  %v4657 = vadd.f32 0.0, %v4656
  %v4658 = vpop.f32.mrf.mxu0
  %v4659 = vpop.f32.mrf.mxu0
  %v4660 = vadd.f32 0.0, %v4659
  %v4661 = vpop.f32.mrf.mxu0
  %4662 = vmatprep.mubr.bf16.mxu0 %v3593
  %4663 = vmatmul.mubr.bf16.gmra.mxu0 %v3514
  %v4664 = vpop.f32.mrf.mxu0
  %v4665 = vadd.f32 0.0, %v4664
  %v4666 = vpop.f32.mrf.mxu0
  %v4667 = vpop.f32.mrf.mxu0
  %v4668 = vadd.f32 0.0, %v4667
  %v4669 = vpop.f32.mrf.mxu0
  %4670 = vmatprep.mubr.bf16.mxu0 %v3596
  %4671 = vmatmul.mubr.bf16.gmra.mxu0 %v3516
  %v4672 = vpop.f32.mrf.mxu0
  %v4673 = vadd.f32 0.0, %v4672
  %v4674 = vpop.f32.mrf.mxu0
  %v4675 = vpop.f32.mrf.mxu0
  %v4676 = vadd.f32 0.0, %v4675
  %v4677 = vpop.f32.mrf.mxu0
  %4678 = vmatprep.mubr.bf16.mxu0 %v3599
  %4679 = vmatmul.mubr.bf16.gmra.mxu0 %v3518
  %v4680 = vpop.f32.mrf.mxu0
  %v4681 = vadd.f32 0.0, %v4680
  %v4682 = vpop.f32.mrf.mxu0
  %v4683 = vpop.f32.mrf.mxu0
  %v4684 = vpop.f32.mrf.mxu0
  %4685 = vmatprep.mubr.bf16.mxu0 %v3602
  %4686 = vmatmul.mubr.bf16.gmra.mxu0 %v3520
  %v4687 = vpop.f32.mrf.mxu0
  %v4688 = vpop.f32.mrf.mxu0
  %v4689 = vpop.f32.mrf.mxu0
  %v4690 = vpop.f32.mrf.mxu0
  %4691 = vdwg.mxu0
  %v4692 = vadd.f32 %v4482, %v4644
  %v4693 = vadd.f32 %v4485, %v4649
  %v4694 = vadd.f32 %v4490, %v4652
  %v4695 = vadd.f32 %v4493, %v4657
  %v4696 = vadd.f32 %v4498, %v4660
  %v4697 = vadd.f32 %v4501, %v4665
  %v4698 = vadd.f32 %v4506, %v4668
  %v4699 = vadd.f32 %v4509, %v4673
  %v4700 = vadd.f32 %v4514, %v4676
  %v4701 = vadd.f32 %v4517, %v4681
  %s4702 = scalar_lea.vmem %s5, 144
  %v4703 = vld [vmem:[%s4702] sm:$0xf]
  %v4704 = vld [vmem:[%s4702 + $0x4] sm:$0xf]
  %v4705 = vld [vmem:[%s4702 + $0x8] sm:$0xf]
  %v4706 = vld [vmem:[%s4702 + $0xc] sm:$0xf]
  %v4707 = vld [vmem:[%s4702 + $0x10] sm:$0xf]
  %v4708 = vld [vmem:[%s4702 + $0x14] sm:$0xf]
  %v4709 = vld [vmem:[%s4702 + $0x18] sm:$0xf]
  %v4710 = vld [vmem:[%s4702 + $0x1c] sm:$0xf]
  %v4711 = vld [vmem:[%s4702 + $0x20] sm:$0xf]
  %v4712 = vld [vmem:[%s4702 + $0x24] sm:$0xf]
  %v4713 = vld [vmem:[%s4702 + $0x28] sm:$0xf]
  %v4714 = vld [vmem:[%s4702 + $0x2c] sm:$0xf]
  %v4715 = vld [vmem:[%s4702 + $0x30] sm:$0xf]
  %v4716 = vld [vmem:[%s4702 + $0x34] sm:$0xf]
  %v4717 = vld [vmem:[%s4702 + $0x38] sm:$0xf]
  %v4718 = vld [vmem:[%s4702 + $0x3c] sm:$0xf]
  %v4719 = vld [vmem:[%s4702 + $0x40] sm:$0xf]
  %v4720 = vld [vmem:[%s4702 + $0x44] sm:$0x3]
  %v4739 = vunpack.c.l.b16 %v4703
  %v4740 = vunpack.c.l.b16 %v4704
  %v4741 = vunpack.c.l.b16 %v4705
  %v4742 = vunpack.c.l.b16 %v4706
  %v4743 = vunpack.c.l.b16 %v4707
  %v4744 = vunpack.c.l.b16 %v4708
  %v4745 = vunpack.c.l.b16 %v4709
  %v4746 = vunpack.c.l.b16 %v4710
  %v4747 = vunpack.c.l.b16 %v4711
  %v4748 = vunpack.c.l.b16 %v4712
  %v4749 = vunpack.c.l.b16 %v4713
  %v4750 = vunpack.c.l.b16 %v4714
  %v4751 = vunpack.c.l.b16 %v4715
  %v4752 = vunpack.c.l.b16 %v4716
  %v4753 = vunpack.c.l.b16 %v4717
  %v4754 = vunpack.c.l.b16 %v4718
  %v4755 = vunpack.c.l.b16 %v4719
  %v4756 = vunpack.c.l.b16 %v4720
  %v4757 = vpack.c.b16 %v4740, %v4739
  %v4758 = vpack.c.b16 %v4742, %v4741
  %v4759 = vpack.c.b16 %v4744, %v4743
  %v4760 = vpack.c.b16 %v4746, %v4745
  %v4761 = vpack.c.b16 %v4748, %v4747
  %v4762 = vpack.c.b16 %v4750, %v4749
  %v4763 = vpack.c.b16 %v4752, %v4751
  %v4764 = vpack.c.b16 %v4754, %v4753
  %v4765 = vpack.c.b16 %v4756, %v4755
  %v4775 = vsel %vm3604, %v4765, 0
  %4777 = vmatprep.subr.bf16.mxu0 0
  %4778 = vmatpush1.bf16.msra.mxu0 %v4764
  %4779 = vmatprep.subr.bf16.mxu0 0
  %4780 = vmatpush1.bf16.msra.mxu0 %v4763
  %4781 = vmatprep.subr.bf16.mxu0 0
  %4782 = vmatpush1.bf16.msra.mxu0 %v4762
  %4783 = vmatprep.subr.bf16.mxu0 0
  %4784 = vmatpush1.bf16.msra.mxu0 %v4761
  %4785 = vmatprep.subr.bf16.mxu0 0
  %4786 = vmatpush1.bf16.msra.mxu0 %v4760
  %4787 = vmatprep.subr.bf16.mxu0 0
  %4788 = vmatpush1.bf16.msra.mxu0 %v4759
  %4789 = vmatprep.subr.bf16.mxu0 0
  %4790 = vmatpush1.bf16.msra.mxu0 %v4758
  %4791 = vmatprep.subr.bf16.mxu0 0
  %4792 = vmatpush1.bf16.msra.mxu0 %v4757
  %4793 = vmatprep.subr.bf16.mxu0 0
  %4794 = vmatpush2.bf16.msra.mxu0 0
  %4795 = vmatprep.subr.bf16.mxu0 0
  %4796 = vmatpush2.bf16.msra.mxu0 0
  %4797 = vmatprep.subr.bf16.mxu0 0
  %4798 = vmatpush2.bf16.msra.mxu0 0
  %4799 = vmatprep.subr.bf16.mxu0 0
  %4800 = vmatpush2.bf16.msra.mxu0 0
  %4801 = vmatprep.subr.bf16.mxu0 0
  %4802 = vmatpush2.bf16.msra.mxu0 0
  %4803 = vmatprep.subr.bf16.mxu0 0
  %4804 = vmatpush2.bf16.msra.mxu0 0
  %4805 = vmatprep.subr.bf16.mxu0 0
  %4806 = vmatpush2.bf16.msra.mxu0 0
  %4807 = vmatprep.subr.bf16.mxu0 0
  %4808 = vmatpush2.bf16.msra.mxu0 %v4775
  %4809 = vmatprep.mubr.bf16.mxu0 %v3584
  %4810 = vmatmul.mubr.bf16.gmra.mxu0 %v3508
  %v4811 = vpop.f32.mrf.mxu0
  %v4812 = vpop.f32.mrf.mxu0
  %v4813 = vpop.f32.mrf.mxu0
  %v4814 = vpop.f32.mrf.mxu0
  %4815 = vmatprep.mubr.bf16.mxu0 %v3587
  %4816 = vmatmul.mubr.bf16.gmra.mxu0 %v3510
  %v4817 = vpop.f32.mrf.mxu0
  %v4818 = vadd.f32 0.0, %v4817
  %v4819 = vpop.f32.mrf.mxu0
  %v4820 = vpop.f32.mrf.mxu0
  %v4821 = vadd.f32 0.0, %v4820
  %v4822 = vpop.f32.mrf.mxu0
  %4823 = vmatprep.mubr.bf16.mxu0 %v3590
  %4824 = vmatmul.mubr.bf16.gmra.mxu0 %v3512
  %v4825 = vpop.f32.mrf.mxu0
  %v4826 = vadd.f32 0.0, %v4825
  %v4827 = vpop.f32.mrf.mxu0
  %v4828 = vpop.f32.mrf.mxu0
  %v4829 = vadd.f32 0.0, %v4828
  %v4830 = vpop.f32.mrf.mxu0
  %4831 = vmatprep.mubr.bf16.mxu0 %v3593
  %4832 = vmatmul.mubr.bf16.gmra.mxu0 %v3514
  %v4833 = vpop.f32.mrf.mxu0
  %v4834 = vadd.f32 0.0, %v4833
  %v4835 = vpop.f32.mrf.mxu0
  %v4836 = vpop.f32.mrf.mxu0
  %v4837 = vadd.f32 0.0, %v4836
  %v4838 = vpop.f32.mrf.mxu0
  %4839 = vmatprep.mubr.bf16.mxu0 %v3596
  %4840 = vmatmul.mubr.bf16.gmra.mxu0 %v3516
  %v4841 = vpop.f32.mrf.mxu0
  %v4842 = vadd.f32 0.0, %v4841
  %v4843 = vpop.f32.mrf.mxu0
  %v4844 = vpop.f32.mrf.mxu0
  %v4845 = vadd.f32 0.0, %v4844
  %v4846 = vpop.f32.mrf.mxu0
  %4847 = vmatprep.mubr.bf16.mxu0 %v3599
  %4848 = vmatmul.mubr.bf16.gmra.mxu0 %v3518
  %v4849 = vpop.f32.mrf.mxu0
  %v4850 = vadd.f32 0.0, %v4849
  %v4851 = vpop.f32.mrf.mxu0
  %v4852 = vpop.f32.mrf.mxu0
  %v4853 = vadd.f32 0.0, %v4852
  %v4854 = vpop.f32.mrf.mxu0
  %4855 = vmatprep.mubr.bf16.mxu0 %v3602
  %4856 = vmatmul.mubr.bf16.gmra.mxu0 %v3520
  %v4857 = vpop.f32.mrf.mxu0
  %v4858 = vpop.f32.mrf.mxu0
  %v4859 = vpop.f32.mrf.mxu0
  %v4860 = vpop.f32.mrf.mxu0
  %4861 = vdwg.mxu0
  %v4862 = vadd.f32 %v4692, %v4818
  %v4863 = vadd.f32 %v4693, %v4821
  %v4864 = vadd.f32 %v4694, %v4826
  %v4865 = vadd.f32 %v4695, %v4829
  %v4866 = vadd.f32 %v4696, %v4834
  %v4867 = vadd.f32 %v4697, %v4837
  %v4868 = vadd.f32 %v4698, %v4842
  %v4869 = vadd.f32 %v4699, %v4845
  %v4870 = vadd.f32 %v4700, %v4850
  %v4871 = vadd.f32 %v4701, %v4853
  %s4872 = scalar_lea.vmem %s5, 216
  %v4873 = vld [vmem:[%s4872] sm:$0xf]
  %v4874 = vld [vmem:[%s4872 + $0x4] sm:$0xf]
  %v4875 = vld [vmem:[%s4872 + $0x8] sm:$0xf]
  %v4876 = vld [vmem:[%s4872 + $0xc] sm:$0xf]
  %v4877 = vld [vmem:[%s4872 + $0x10] sm:$0xf]
  %v4878 = vld [vmem:[%s4872 + $0x14] sm:$0xf]
  %v4879 = vld [vmem:[%s4872 + $0x18] sm:$0xf]
  %v4880 = vld [vmem:[%s4872 + $0x1c] sm:$0xf]
  %v4881 = vld [vmem:[%s4872 + $0x20] sm:$0xf]
  %v4882 = vld [vmem:[%s4872 + $0x24] sm:$0xf]
  %v4883 = vld [vmem:[%s4872 + $0x28] sm:$0xf]
  %v4884 = vld [vmem:[%s4872 + $0x2c] sm:$0xf]
  %v4885 = vld [vmem:[%s4872 + $0x30] sm:$0xf]
  %v4886 = vld [vmem:[%s4872 + $0x34] sm:$0xf]
  %v4887 = vld [vmem:[%s4872 + $0x38] sm:$0xf]
  %v4888 = vld [vmem:[%s4872 + $0x3c] sm:$0xf]
  %v4889 = vld [vmem:[%s4872 + $0x40] sm:$0xf]
  %v4890 = vld [vmem:[%s4872 + $0x44] sm:$0x3]
  %v4909 = vunpack.c.l.b16 %v4873
  %v4910 = vunpack.c.l.b16 %v4874
  %v4911 = vunpack.c.l.b16 %v4875
  %v4912 = vunpack.c.l.b16 %v4876
  %v4913 = vunpack.c.l.b16 %v4877
  %v4914 = vunpack.c.l.b16 %v4878
  %v4915 = vunpack.c.l.b16 %v4879
  %v4916 = vunpack.c.l.b16 %v4880
  %v4917 = vunpack.c.l.b16 %v4881
  %v4918 = vunpack.c.l.b16 %v4882
  %v4919 = vunpack.c.l.b16 %v4883
  %v4920 = vunpack.c.l.b16 %v4884
  %v4921 = vunpack.c.l.b16 %v4885
  %v4922 = vunpack.c.l.b16 %v4886
  %v4923 = vunpack.c.l.b16 %v4887
  %v4924 = vunpack.c.l.b16 %v4888
  %v4925 = vunpack.c.l.b16 %v4889
  %v4926 = vunpack.c.l.b16 %v4890
  %v4927 = vpack.c.b16 %v4910, %v4909
  %v4928 = vpack.c.b16 %v4912, %v4911
  %v4929 = vpack.c.b16 %v4914, %v4913
  %v4930 = vpack.c.b16 %v4916, %v4915
  %v4931 = vpack.c.b16 %v4918, %v4917
  %v4932 = vpack.c.b16 %v4920, %v4919
  %v4933 = vpack.c.b16 %v4922, %v4921
  %v4934 = vpack.c.b16 %v4924, %v4923
  %v4935 = vpack.c.b16 %v4926, %v4925
  %v4945 = vsel %vm3604, %v4935, 0
  %4947 = vmatprep.subr.bf16.mxu0 0
  %4948 = vmatpush1.bf16.msra.mxu0 %v4934
  %4949 = vmatprep.subr.bf16.mxu0 0
  %4950 = vmatpush1.bf16.msra.mxu0 %v4933
  %4951 = vmatprep.subr.bf16.mxu0 0
  %4952 = vmatpush1.bf16.msra.mxu0 %v4932
  %4953 = vmatprep.subr.bf16.mxu0 0
  %4954 = vmatpush1.bf16.msra.mxu0 %v4931
  %4955 = vmatprep.subr.bf16.mxu0 0
  %4956 = vmatpush1.bf16.msra.mxu0 %v4930
  %4957 = vmatprep.subr.bf16.mxu0 0
  %4958 = vmatpush1.bf16.msra.mxu0 %v4929
  %4959 = vmatprep.subr.bf16.mxu0 0
  %4960 = vmatpush1.bf16.msra.mxu0 %v4928
  %4961 = vmatprep.subr.bf16.mxu0 0
  %4962 = vmatpush1.bf16.msra.mxu0 %v4927
  %4963 = vmatprep.subr.bf16.mxu0 0
  %4964 = vmatpush2.bf16.msra.mxu0 0
  %4965 = vmatprep.subr.bf16.mxu0 0
  %4966 = vmatpush2.bf16.msra.mxu0 0
  %4967 = vmatprep.subr.bf16.mxu0 0
  %4968 = vmatpush2.bf16.msra.mxu0 0
  %4969 = vmatprep.subr.bf16.mxu0 0
  %4970 = vmatpush2.bf16.msra.mxu0 0
  %4971 = vmatprep.subr.bf16.mxu0 0
  %4972 = vmatpush2.bf16.msra.mxu0 0
  %4973 = vmatprep.subr.bf16.mxu0 0
  %4974 = vmatpush2.bf16.msra.mxu0 0
  %4975 = vmatprep.subr.bf16.mxu0 0
  %4976 = vmatpush2.bf16.msra.mxu0 0
  %4977 = vmatprep.subr.bf16.mxu0 0
  %4978 = vmatpush2.bf16.msra.mxu0 %v4945
  %4979 = vmatprep.mubr.bf16.mxu0 %v3584
  %4980 = vmatmul.mubr.bf16.gmra.mxu0 %v3508
  %v4981 = vpop.f32.mrf.mxu0
  %v4982 = vpop.f32.mrf.mxu0
  %v4983 = vpop.f32.mrf.mxu0
  %v4984 = vpop.f32.mrf.mxu0
  %4985 = vmatprep.mubr.bf16.mxu0 %v3587
  %4986 = vmatmul.mubr.bf16.gmra.mxu0 %v3510
  %v4987 = vpop.f32.mrf.mxu0
  %v4988 = vpop.f32.mrf.mxu0
  %v4989 = vpop.f32.mrf.mxu0
  %v4990 = vadd.f32 0.0, %v4989
  %v4991 = vpop.f32.mrf.mxu0
  %4992 = vmatprep.mubr.bf16.mxu0 %v3590
  %4993 = vmatmul.mubr.bf16.gmra.mxu0 %v3512
  %v4994 = vpop.f32.mrf.mxu0
  %v4995 = vadd.f32 0.0, %v4994
  %v4996 = vpop.f32.mrf.mxu0
  %v4997 = vpop.f32.mrf.mxu0
  %v4998 = vadd.f32 0.0, %v4997
  %v4999 = vpop.f32.mrf.mxu0
  %5000 = vmatprep.mubr.bf16.mxu0 %v3593
  %5001 = vmatmul.mubr.bf16.gmra.mxu0 %v3514
  %v5002 = vpop.f32.mrf.mxu0
  %v5003 = vadd.f32 0.0, %v5002
  %v5004 = vpop.f32.mrf.mxu0
  %v5005 = vpop.f32.mrf.mxu0
  %v5006 = vadd.f32 0.0, %v5005
  %v5007 = vpop.f32.mrf.mxu0
  %5008 = vmatprep.mubr.bf16.mxu0 %v3596
  %5009 = vmatmul.mubr.bf16.gmra.mxu0 %v3516
  %v5010 = vpop.f32.mrf.mxu0
  %v5011 = vadd.f32 0.0, %v5010
  %v5012 = vpop.f32.mrf.mxu0
  %v5013 = vpop.f32.mrf.mxu0
  %v5014 = vadd.f32 0.0, %v5013
  %v5015 = vpop.f32.mrf.mxu0
  %5016 = vmatprep.mubr.bf16.mxu0 %v3599
  %5017 = vmatmul.mubr.bf16.gmra.mxu0 %v3518
  %v5018 = vpop.f32.mrf.mxu0
  %v5019 = vadd.f32 0.0, %v5018
  %v5020 = vpop.f32.mrf.mxu0
  %v5021 = vpop.f32.mrf.mxu0
  %v5022 = vadd.f32 0.0, %v5021
  %v5023 = vpop.f32.mrf.mxu0
  %5024 = vmatprep.mubr.bf16.mxu0 %v3602
  %5025 = vmatmul.mubr.bf16.gmra.mxu0 %v3520
  %v5026 = vpop.f32.mrf.mxu0
  %v5027 = vadd.f32 0.0, %v5026
  %v5028 = vpop.f32.mrf.mxu0
  %v5029 = vpop.f32.mrf.mxu0
  %v5030 = vpop.f32.mrf.mxu0
  %5031 = vdwg.mxu0
  %v5032 = vadd.f32 %v4862, %v4990
  %v5033 = vadd.f32 %v4863, %v4995
  %v5034 = vadd.f32 %v4864, %v4998
  %v5035 = vadd.f32 %v4865, %v5003
  %v5036 = vadd.f32 %v4866, %v5006
  %v5037 = vadd.f32 %v4867, %v5011
  %v5038 = vadd.f32 %v4868, %v5014
  %v5039 = vadd.f32 %v4869, %v5019
  %v5040 = vadd.f32 %v4870, %v5022
  %v5041 = vadd.f32 %v4871, %v5027
  %s5042 = scalar_lea.vmem %s5, 288
  %v5043 = vld [vmem:[%s5042] sm:$0xf]
  %v5044 = vld [vmem:[%s5042 + $0x4] sm:$0xf]
  %v5045 = vld [vmem:[%s5042 + $0x8] sm:$0xf]
  %v5046 = vld [vmem:[%s5042 + $0xc] sm:$0xf]
  %v5047 = vld [vmem:[%s5042 + $0x10] sm:$0xf]
  %v5048 = vld [vmem:[%s5042 + $0x14] sm:$0xf]
  %v5049 = vld [vmem:[%s5042 + $0x18] sm:$0xf]
  %v5050 = vld [vmem:[%s5042 + $0x1c] sm:$0xf]
  %v5051 = vld [vmem:[%s5042 + $0x20] sm:$0xf]
  %v5052 = vld [vmem:[%s5042 + $0x24] sm:$0xf]
  %v5053 = vld [vmem:[%s5042 + $0x28] sm:$0xf]
  %v5054 = vld [vmem:[%s5042 + $0x2c] sm:$0xf]
  %v5055 = vld [vmem:[%s5042 + $0x30] sm:$0xf]
  %v5056 = vld [vmem:[%s5042 + $0x34] sm:$0xf]
  %v5057 = vld [vmem:[%s5042 + $0x38] sm:$0xf]
  %v5058 = vld [vmem:[%s5042 + $0x3c] sm:$0xf]
  %v5059 = vld [vmem:[%s5042 + $0x40] sm:$0xf]
  %v5060 = vld [vmem:[%s5042 + $0x44] sm:$0x3]
  %v5079 = vunpack.c.l.b16 %v5043
  %v5080 = vunpack.c.l.b16 %v5044
  %v5081 = vunpack.c.l.b16 %v5045
  %v5082 = vunpack.c.l.b16 %v5046
  %v5083 = vunpack.c.l.b16 %v5047
  %v5084 = vunpack.c.l.b16 %v5048
  %v5085 = vunpack.c.l.b16 %v5049
  %v5086 = vunpack.c.l.b16 %v5050
  %v5087 = vunpack.c.l.b16 %v5051
  %v5088 = vunpack.c.l.b16 %v5052
  %v5089 = vunpack.c.l.b16 %v5053
  %v5090 = vunpack.c.l.b16 %v5054
  %v5091 = vunpack.c.l.b16 %v5055
  %v5092 = vunpack.c.l.b16 %v5056
  %v5093 = vunpack.c.l.b16 %v5057
  %v5094 = vunpack.c.l.b16 %v5058
  %v5095 = vunpack.c.l.b16 %v5059
  %v5096 = vunpack.c.l.b16 %v5060
  %v5097 = vpack.c.b16 %v5080, %v5079
  %v5098 = vpack.c.b16 %v5082, %v5081
  %v5099 = vpack.c.b16 %v5084, %v5083
  %v5100 = vpack.c.b16 %v5086, %v5085
  %v5101 = vpack.c.b16 %v5088, %v5087
  %v5102 = vpack.c.b16 %v5090, %v5089
  %v5103 = vpack.c.b16 %v5092, %v5091
  %v5104 = vpack.c.b16 %v5094, %v5093
  %v5105 = vpack.c.b16 %v5096, %v5095
  %v5115 = vsel %vm3604, %v5105, 0
  %5117 = vmatprep.subr.bf16.mxu0 0
  %5118 = vmatpush1.bf16.msra.mxu0 %v5104
  %5119 = vmatprep.subr.bf16.mxu0 0
  %5120 = vmatpush1.bf16.msra.mxu0 %v5103
  %5121 = vmatprep.subr.bf16.mxu0 0
  %5122 = vmatpush1.bf16.msra.mxu0 %v5102
  %5123 = vmatprep.subr.bf16.mxu0 0
  %5124 = vmatpush1.bf16.msra.mxu0 %v5101
  %5125 = vmatprep.subr.bf16.mxu0 0
  %5126 = vmatpush1.bf16.msra.mxu0 %v5100
  %5127 = vmatprep.subr.bf16.mxu0 0
  %5128 = vmatpush1.bf16.msra.mxu0 %v5099
  %5129 = vmatprep.subr.bf16.mxu0 0
  %5130 = vmatpush1.bf16.msra.mxu0 %v5098
  %5131 = vmatprep.subr.bf16.mxu0 0
  %5132 = vmatpush1.bf16.msra.mxu0 %v5097
  %5133 = vmatprep.subr.bf16.mxu0 0
  %5134 = vmatpush2.bf16.msra.mxu0 0
  %5135 = vmatprep.subr.bf16.mxu0 0
  %5136 = vmatpush2.bf16.msra.mxu0 0
  %5137 = vmatprep.subr.bf16.mxu0 0
  %5138 = vmatpush2.bf16.msra.mxu0 0
  %5139 = vmatprep.subr.bf16.mxu0 0
  %5140 = vmatpush2.bf16.msra.mxu0 0
  %5141 = vmatprep.subr.bf16.mxu0 0
  %5142 = vmatpush2.bf16.msra.mxu0 0
  %5143 = vmatprep.subr.bf16.mxu0 0
  %5144 = vmatpush2.bf16.msra.mxu0 0
  %5145 = vmatprep.subr.bf16.mxu0 0
  %5146 = vmatpush2.bf16.msra.mxu0 0
  %5147 = vmatprep.subr.bf16.mxu0 0
  %5148 = vmatpush2.bf16.msra.mxu0 %v5115
  %5149 = vmatprep.mubr.bf16.mxu0 %v3584
  %5150 = vmatmul.mubr.bf16.gmra.mxu0 %v3508
  %v5151 = vpop.f32.mrf.mxu0
  %v5152 = vpop.f32.mrf.mxu0
  %v5153 = vpop.f32.mrf.mxu0
  %v5154 = vpop.f32.mrf.mxu0
  %5155 = vmatprep.mubr.bf16.mxu0 %v3587
  %5156 = vmatmul.mubr.bf16.gmra.mxu0 %v3510
  %v5157 = vpop.f32.mrf.mxu0
  %v5158 = vpop.f32.mrf.mxu0
  %v5159 = vpop.f32.mrf.mxu0
  %v5160 = vpop.f32.mrf.mxu0
  %5161 = vmatprep.mubr.bf16.mxu0 %v3590
  %5162 = vmatmul.mubr.bf16.gmra.mxu0 %v3512
  %v5163 = vpop.f32.mrf.mxu0
  %v5164 = vadd.f32 0.0, %v5163
  %v5165 = vpop.f32.mrf.mxu0
  %v5166 = vpop.f32.mrf.mxu0
  %v5167 = vadd.f32 0.0, %v5166
  %v5168 = vpop.f32.mrf.mxu0
  %5169 = vmatprep.mubr.bf16.mxu0 %v3593
  %5170 = vmatmul.mubr.bf16.gmra.mxu0 %v3514
  %v5171 = vpop.f32.mrf.mxu0
  %v5172 = vadd.f32 0.0, %v5171
  %v5173 = vpop.f32.mrf.mxu0
  %v5174 = vpop.f32.mrf.mxu0
  %v5175 = vadd.f32 0.0, %v5174
  %v5176 = vpop.f32.mrf.mxu0
  %5177 = vmatprep.mubr.bf16.mxu0 %v3596
  %5178 = vmatmul.mubr.bf16.gmra.mxu0 %v3516
  %v5179 = vpop.f32.mrf.mxu0
  %v5180 = vadd.f32 0.0, %v5179
  %v5181 = vpop.f32.mrf.mxu0
  %v5182 = vpop.f32.mrf.mxu0
  %v5183 = vadd.f32 0.0, %v5182
  %v5184 = vpop.f32.mrf.mxu0
  %5185 = vmatprep.mubr.bf16.mxu0 %v3599
  %5186 = vmatmul.mubr.bf16.gmra.mxu0 %v3518
  %v5187 = vpop.f32.mrf.mxu0
  %v5188 = vadd.f32 0.0, %v5187
  %v5189 = vpop.f32.mrf.mxu0
  %v5190 = vpop.f32.mrf.mxu0
  %v5191 = vadd.f32 0.0, %v5190
  %v5192 = vpop.f32.mrf.mxu0
  %5193 = vmatprep.mubr.bf16.mxu0 %v3602
  %5194 = vmatmul.mubr.bf16.gmra.mxu0 %v3520
  %v5195 = vpop.f32.mrf.mxu0
  %v5196 = vadd.f32 0.0, %v5195
  %v5197 = vpop.f32.mrf.mxu0
  %v5198 = vpop.f32.mrf.mxu0
  %v5199 = vadd.f32 0.0, %v5198
  %v5200 = vpop.f32.mrf.mxu0
  %5201 = vdwg.mxu0
  %v5202 = vadd.f32 %v5032, %v5164
  %v5203 = vadd.f32 %v5033, %v5167
  %v5204 = vadd.f32 %v5034, %v5172
  %v5205 = vadd.f32 %v5035, %v5175
  %v5206 = vadd.f32 %v5036, %v5180
  %v5207 = vadd.f32 %v5037, %v5183
  %v5208 = vadd.f32 %v5038, %v5188
  %v5209 = vadd.f32 %v5039, %v5191
  %v5210 = vadd.f32 %v5040, %v5196
  %v5211 = vadd.f32 %v5041, %v5199
  %v5212 = vmax.f32 %v4363, %v5202
  %v5213 = vmax.f32 %v4364, %v5203
  %v5214 = vmax.f32 %v4365, %v5204
  %v5215 = vmax.f32 %v4366, %v5205
  %v5216 = vmax.f32 %v4367, %v5206
  %v5217 = vmax.f32 %v4368, %v5207
  %v5218 = vmax.f32 %v4369, %v5208
  %v5219 = vmax.f32 %v4370, %v5209
  %v5220 = vmax.f32 %v4371, %v5210
  %v5221 = vmax.f32 %v4372, %v5211
  %v5222 = vld [vmem:[%s6] sm:$0x1]
  %v5224 = vlaneseq
  %v5225 = vshrl.u32 %v5224, 7
  %v5226 = vsub.s32 0, %v5225
  %v5227 = vrot.slane %v5222, %v5226
  %v5229 = vadd.f32 %v5212, %v5227
  %v5230 = vadd.f32 %v5213, %v5227
  %v5231 = vadd.f32 %v5214, %v5227
  %v5232 = vadd.f32 %v5215, %v5227
  %v5233 = vadd.f32 %v5216, %v5227
  %v5234 = vadd.f32 %v5217, %v5227
  %v5235 = vadd.f32 %v5218, %v5227
  %v5236 = vadd.f32 %v5219, %v5227
  %v5237 = vadd.f32 %v5220, %v5227
  %v5238 = vadd.f32 %v5221, %v5227
  %v5239 = vmax.f32 %v5229, %v5230
  %v5240 = vmax.f32 %v5231, %v5232
  %v5241 = vmax.f32 %v5233, %v5234
  %v5242 = vmax.f32 %v5235, %v5236
  %v5243 = vmax.f32 %v5237, %v5238
  %v5244 = vmax.f32 %v5239, 0.0
  %v5245 = vmax.f32 %v5240, 0.0
  %v5246 = vmax.f32 %v5241, 0.0
  %v5247 = vmax.f32 %v5242, 0.0
  %v5248 = vmax.f32 %v5243, 0.0
  %v5249 = vpack.c.bf16 %v5244, %v5244
  %v5250 = vpack.c.bf16 %v5245, %v5245
  %v5251 = vpack.c.bf16 %v5246, %v5246
  %v5252 = vpack.c.bf16 %v5247, %v5247
  %v5253 = vpack.c.bf16 %v5248, %v5248
  %v5254 = vld [vmem:[%s8] sm:$0x1]
  %v5255 = vld [vmem:[%s7] sm:$0xf]
  %v5256 = vld [vmem:[%s7 + $0x4] sm:$0xf]
  %v5257 = vld [vmem:[%s7 + $0x8] sm:$0xf]
  %v5258 = vld [vmem:[%s7 + $0xc] sm:$0xf]
  %v5259 = vld [vmem:[%s7 + $0x10] sm:$0xf]
  %v5260 = vld [vmem:[%s7 + $0x14] sm:$0xf]
  %v5261 = vld [vmem:[%s7 + $0x18] sm:$0xf]
  %v5262 = vld [vmem:[%s7 + $0x1c] sm:$0xf]
  %v5263 = vld [vmem:[%s7 + $0x20] sm:$0xf]
  %v5264 = vld [vmem:[%s7 + $0x24] sm:$0xf]
  %v5265 = vld [vmem:[%s7 + $0x28] sm:$0xf]
  %v5266 = vld [vmem:[%s7 + $0x2c] sm:$0xf]
  %v5267 = vld [vmem:[%s7 + $0x30] sm:$0x3]
  %v5281 = vunpack.c.l.b16 %v5255
  %v5282 = vunpack.c.l.b16 %v5256
  %v5283 = vunpack.c.l.b16 %v5257
  %v5284 = vunpack.c.l.b16 %v5258
  %v5285 = vunpack.c.l.b16 %v5259
  %v5286 = vunpack.c.l.b16 %v5260
  %v5287 = vunpack.c.l.b16 %v5261
  %v5288 = vunpack.c.l.b16 %v5262
  %v5289 = vunpack.c.l.b16 %v5263
  %v5290 = vunpack.c.l.b16 %v5264
  %v5291 = vunpack.c.l.b16 %v5265
  %v5292 = vunpack.c.l.b16 %v5266
  %v5293 = vunpack.c.l.b16 %v5267
  %v5294 = vpack.c.b16 %v5282, %v5281
  %v5295 = vpack.c.b16 %v5284, %v5283
  %v5296 = vpack.c.b16 %v5286, %v5285
  %v5297 = vpack.c.b16 %v5288, %v5287
  %v5298 = vpack.c.b16 %v5290, %v5289
  %v5299 = vpack.c.b16 %v5292, %v5291
  %v5300 = vpack.c.b16 %v5293, %v5293
  %vm5307 = vcmask 818176
  %v5309 = vsel %vm5307, %v5249, 0
  %vm5311 = vcmask 1041408
  %v5313 = vsel %vm5311, %v5300, 0
  %5315 = vmatprep.subr.bf16.mxu0 0
  %5316 = vmatpush1.bf16.msra.mxu0 0
  %5317 = vmatprep.subr.bf16.mxu0 0
  %5318 = vmatpush1.bf16.msra.mxu0 %v5313
  %5319 = vmatprep.subr.bf16.mxu0 0
  %5320 = vmatpush1.bf16.msra.mxu0 %v5299
  %5321 = vmatprep.subr.bf16.mxu0 0
  %5322 = vmatpush1.bf16.msra.mxu0 %v5298
  %5323 = vmatprep.subr.bf16.mxu0 0
  %5324 = vmatpush1.bf16.msra.mxu0 %v5297
  %5325 = vmatprep.subr.bf16.mxu0 0
  %5326 = vmatpush1.bf16.msra.mxu0 %v5296
  %5327 = vmatprep.subr.bf16.mxu0 0
  %5328 = vmatpush1.bf16.msra.mxu0 %v5295
  %5329 = vmatprep.subr.bf16.mxu0 0
  %5330 = vmatpush1.bf16.msra.mxu0 %v5294
  %5331 = vmatprep.subr.bf16.mxu0 0
  %5332 = vmatpush2.bf16.msra.mxu0 0
  %5333 = vmatprep.subr.bf16.mxu0 0
  %5334 = vmatpush2.bf16.msra.mxu0 0
  %5335 = vmatprep.subr.bf16.mxu0 0
  %5336 = vmatpush2.bf16.msra.mxu0 0
  %5337 = vmatprep.subr.bf16.mxu0 0
  %5338 = vmatpush2.bf16.msra.mxu0 0
  %5339 = vmatprep.subr.bf16.mxu0 0
  %5340 = vmatpush2.bf16.msra.mxu0 0
  %5341 = vmatprep.subr.bf16.mxu0 0
  %5342 = vmatpush2.bf16.msra.mxu0 0
  %5343 = vmatprep.subr.bf16.mxu0 0
  %5344 = vmatpush2.bf16.msra.mxu0 0
  %5345 = vmatprep.subr.bf16.mxu0 0
  %5346 = vmatpush2.bf16.msra.mxu0 0
  %5347 = vmatprep.mubr.bf16.mxu0 0
  %5348 = vmatmul.mubr.bf16.gmra.mxu0 %v5309
  %v5349 = vpop.f32.mrf.mxu0
  %v5350 = vadd.f32 0.0, %v5349
  %v5351 = vpop.f32.mrf.mxu0
  %v5352 = vpop.f32.mrf.mxu0
  %v5353 = vpop.f32.mrf.mxu0
  %5354 = vdwg.mxu0
  %v5356 = vlaneseq
  %v5357 = vshrl.u32 %v5356, 7
  %v5358 = vsub.s32 0, %v5357
  %v5359 = vrot.slane %v5254, %v5358
  %v5361 = vadd.f32 %v5359, %v5350
  %s5362 = scalar_lea.vmem %s7, 52
  %v5363 = vld [vmem:[%s5362] sm:$0xf]
  %v5364 = vld [vmem:[%s5362 + $0x4] sm:$0xf]
  %v5365 = vld [vmem:[%s5362 + $0x8] sm:$0xf]
  %v5366 = vld [vmem:[%s5362 + $0xc] sm:$0xf]
  %v5367 = vld [vmem:[%s5362 + $0x10] sm:$0xf]
  %v5368 = vld [vmem:[%s5362 + $0x14] sm:$0xf]
  %v5369 = vld [vmem:[%s5362 + $0x18] sm:$0xf]
  %v5370 = vld [vmem:[%s5362 + $0x1c] sm:$0xf]
  %v5371 = vld [vmem:[%s5362 + $0x20] sm:$0xf]
  %v5372 = vld [vmem:[%s5362 + $0x24] sm:$0xf]
  %v5373 = vld [vmem:[%s5362 + $0x28] sm:$0xf]
  %v5374 = vld [vmem:[%s5362 + $0x2c] sm:$0xf]
  %v5375 = vld [vmem:[%s5362 + $0x30] sm:$0x3]
  %v5389 = vunpack.c.l.b16 %v5363
  %v5390 = vunpack.c.l.b16 %v5364
  %v5391 = vunpack.c.l.b16 %v5365
  %v5392 = vunpack.c.l.b16 %v5366
  %v5393 = vunpack.c.l.b16 %v5367
  %v5394 = vunpack.c.l.b16 %v5368
  %v5395 = vunpack.c.l.b16 %v5369
  %v5396 = vunpack.c.l.b16 %v5370
  %v5397 = vunpack.c.l.b16 %v5371
  %v5398 = vunpack.c.l.b16 %v5372
  %v5399 = vunpack.c.l.b16 %v5373
  %v5400 = vunpack.c.l.b16 %v5374
  %v5401 = vunpack.c.l.b16 %v5375
  %v5402 = vpack.c.b16 %v5390, %v5389
  %v5403 = vpack.c.b16 %v5392, %v5391
  %v5404 = vpack.c.b16 %v5394, %v5393
  %v5405 = vpack.c.b16 %v5396, %v5395
  %v5406 = vpack.c.b16 %v5398, %v5397
  %v5407 = vpack.c.b16 %v5400, %v5399
  %v5408 = vpack.c.b16 %v5401, %v5401
  %v5416 = vsel %vm5307, %v5250, 0
  %v5419 = vsel %vm5311, %v5408, 0
  %5421 = vmatprep.subr.bf16.mxu0 0
  %5422 = vmatpush1.bf16.msra.mxu0 0
  %5423 = vmatprep.subr.bf16.mxu0 0
  %5424 = vmatpush1.bf16.msra.mxu0 %v5419
  %5425 = vmatprep.subr.bf16.mxu0 0
  %5426 = vmatpush1.bf16.msra.mxu0 %v5407
  %5427 = vmatprep.subr.bf16.mxu0 0
  %5428 = vmatpush1.bf16.msra.mxu0 %v5406
  %5429 = vmatprep.subr.bf16.mxu0 0
  %5430 = vmatpush1.bf16.msra.mxu0 %v5405
  %5431 = vmatprep.subr.bf16.mxu0 0
  %5432 = vmatpush1.bf16.msra.mxu0 %v5404
  %5433 = vmatprep.subr.bf16.mxu0 0
  %5434 = vmatpush1.bf16.msra.mxu0 %v5403
  %5435 = vmatprep.subr.bf16.mxu0 0
  %5436 = vmatpush1.bf16.msra.mxu0 %v5402
  %5437 = vmatprep.subr.bf16.mxu0 0
  %5438 = vmatpush2.bf16.msra.mxu0 0
  %5439 = vmatprep.subr.bf16.mxu0 0
  %5440 = vmatpush2.bf16.msra.mxu0 0
  %5441 = vmatprep.subr.bf16.mxu0 0
  %5442 = vmatpush2.bf16.msra.mxu0 0
  %5443 = vmatprep.subr.bf16.mxu0 0
  %5444 = vmatpush2.bf16.msra.mxu0 0
  %5445 = vmatprep.subr.bf16.mxu0 0
  %5446 = vmatpush2.bf16.msra.mxu0 0
  %5447 = vmatprep.subr.bf16.mxu0 0
  %5448 = vmatpush2.bf16.msra.mxu0 0
  %5449 = vmatprep.subr.bf16.mxu0 0
  %5450 = vmatpush2.bf16.msra.mxu0 0
  %5451 = vmatprep.subr.bf16.mxu0 0
  %5452 = vmatpush2.bf16.msra.mxu0 0
  %5453 = vmatprep.mubr.bf16.mxu0 0
  %5454 = vmatmul.mubr.bf16.gmra.mxu0 %v5416
  %v5455 = vpop.f32.mrf.mxu0
  %v5456 = vadd.f32 0.0, %v5455
  %v5457 = vpop.f32.mrf.mxu0
  %v5458 = vpop.f32.mrf.mxu0
  %v5459 = vpop.f32.mrf.mxu0
  %5460 = vdwg.mxu0
  %v5461 = vadd.f32 %v5361, %v5456
  %s5462 = scalar_lea.vmem %s7, 104
  %v5463 = vld [vmem:[%s5462] sm:$0xf]
  %v5464 = vld [vmem:[%s5462 + $0x4] sm:$0xf]
  %v5465 = vld [vmem:[%s5462 + $0x8] sm:$0xf]
  %v5466 = vld [vmem:[%s5462 + $0xc] sm:$0xf]
  %v5467 = vld [vmem:[%s5462 + $0x10] sm:$0xf]
  %v5468 = vld [vmem:[%s5462 + $0x14] sm:$0xf]
  %v5469 = vld [vmem:[%s5462 + $0x18] sm:$0xf]
  %v5470 = vld [vmem:[%s5462 + $0x1c] sm:$0xf]
  %v5471 = vld [vmem:[%s5462 + $0x20] sm:$0xf]
  %v5472 = vld [vmem:[%s5462 + $0x24] sm:$0xf]
  %v5473 = vld [vmem:[%s5462 + $0x28] sm:$0xf]
  %v5474 = vld [vmem:[%s5462 + $0x2c] sm:$0xf]
  %v5475 = vld [vmem:[%s5462 + $0x30] sm:$0x3]
  %v5489 = vunpack.c.l.b16 %v5463
  %v5490 = vunpack.c.l.b16 %v5464
  %v5491 = vunpack.c.l.b16 %v5465
  %v5492 = vunpack.c.l.b16 %v5466
  %v5493 = vunpack.c.l.b16 %v5467
  %v5494 = vunpack.c.l.b16 %v5468
  %v5495 = vunpack.c.l.b16 %v5469
  %v5496 = vunpack.c.l.b16 %v5470
  %v5497 = vunpack.c.l.b16 %v5471
  %v5498 = vunpack.c.l.b16 %v5472
  %v5499 = vunpack.c.l.b16 %v5473
  %v5500 = vunpack.c.l.b16 %v5474
  %v5501 = vunpack.c.l.b16 %v5475
  %v5502 = vpack.c.b16 %v5490, %v5489
  %v5503 = vpack.c.b16 %v5492, %v5491
  %v5504 = vpack.c.b16 %v5494, %v5493
  %v5505 = vpack.c.b16 %v5496, %v5495
  %v5506 = vpack.c.b16 %v5498, %v5497
  %v5507 = vpack.c.b16 %v5500, %v5499
  %v5508 = vpack.c.b16 %v5501, %v5501
  %v5516 = vsel %vm5307, %v5251, 0
  %v5519 = vsel %vm5311, %v5508, 0
  %5521 = vmatprep.subr.bf16.mxu0 0
  %5522 = vmatpush1.bf16.msra.mxu0 0
  %5523 = vmatprep.subr.bf16.mxu0 0
  %5524 = vmatpush1.bf16.msra.mxu0 %v5519
  %5525 = vmatprep.subr.bf16.mxu0 0
  %5526 = vmatpush1.bf16.msra.mxu0 %v5507
  %5527 = vmatprep.subr.bf16.mxu0 0
  %5528 = vmatpush1.bf16.msra.mxu0 %v5506
  %5529 = vmatprep.subr.bf16.mxu0 0
  %5530 = vmatpush1.bf16.msra.mxu0 %v5505
  %5531 = vmatprep.subr.bf16.mxu0 0
  %5532 = vmatpush1.bf16.msra.mxu0 %v5504
  %5533 = vmatprep.subr.bf16.mxu0 0
  %5534 = vmatpush1.bf16.msra.mxu0 %v5503
  %5535 = vmatprep.subr.bf16.mxu0 0
  %5536 = vmatpush1.bf16.msra.mxu0 %v5502
  %5537 = vmatprep.subr.bf16.mxu0 0
  %5538 = vmatpush2.bf16.msra.mxu0 0
  %5539 = vmatprep.subr.bf16.mxu0 0
  %5540 = vmatpush2.bf16.msra.mxu0 0
  %5541 = vmatprep.subr.bf16.mxu0 0
  %5542 = vmatpush2.bf16.msra.mxu0 0
  %5543 = vmatprep.subr.bf16.mxu0 0
  %5544 = vmatpush2.bf16.msra.mxu0 0
  %5545 = vmatprep.subr.bf16.mxu0 0
  %5546 = vmatpush2.bf16.msra.mxu0 0
  %5547 = vmatprep.subr.bf16.mxu0 0
  %5548 = vmatpush2.bf16.msra.mxu0 0
  %5549 = vmatprep.subr.bf16.mxu0 0
  %5550 = vmatpush2.bf16.msra.mxu0 0
  %5551 = vmatprep.subr.bf16.mxu0 0
  %5552 = vmatpush2.bf16.msra.mxu0 0
  %5553 = vmatprep.mubr.bf16.mxu0 0
  %5554 = vmatmul.mubr.bf16.gmra.mxu0 %v5516
  %v5555 = vpop.f32.mrf.mxu0
  %v5556 = vadd.f32 0.0, %v5555
  %v5557 = vpop.f32.mrf.mxu0
  %v5558 = vpop.f32.mrf.mxu0
  %v5559 = vpop.f32.mrf.mxu0
  %5560 = vdwg.mxu0
  %v5561 = vadd.f32 %v5461, %v5556
  %s5562 = scalar_lea.vmem %s7, 156
  %v5563 = vld [vmem:[%s5562] sm:$0xf]
  %v5564 = vld [vmem:[%s5562 + $0x4] sm:$0xf]
  %v5565 = vld [vmem:[%s5562 + $0x8] sm:$0xf]
  %v5566 = vld [vmem:[%s5562 + $0xc] sm:$0xf]
  %v5567 = vld [vmem:[%s5562 + $0x10] sm:$0xf]
  %v5568 = vld [vmem:[%s5562 + $0x14] sm:$0xf]
  %v5569 = vld [vmem:[%s5562 + $0x18] sm:$0xf]
  %v5570 = vld [vmem:[%s5562 + $0x1c] sm:$0xf]
  %v5571 = vld [vmem:[%s5562 + $0x20] sm:$0xf]
  %v5572 = vld [vmem:[%s5562 + $0x24] sm:$0xf]
  %v5573 = vld [vmem:[%s5562 + $0x28] sm:$0xf]
  %v5574 = vld [vmem:[%s5562 + $0x2c] sm:$0xf]
  %v5575 = vld [vmem:[%s5562 + $0x30] sm:$0x3]
  %v5589 = vunpack.c.l.b16 %v5563
  %v5590 = vunpack.c.l.b16 %v5564
  %v5591 = vunpack.c.l.b16 %v5565
  %v5592 = vunpack.c.l.b16 %v5566
  %v5593 = vunpack.c.l.b16 %v5567
  %v5594 = vunpack.c.l.b16 %v5568
  %v5595 = vunpack.c.l.b16 %v5569
  %v5596 = vunpack.c.l.b16 %v5570
  %v5597 = vunpack.c.l.b16 %v5571
  %v5598 = vunpack.c.l.b16 %v5572
  %v5599 = vunpack.c.l.b16 %v5573
  %v5600 = vunpack.c.l.b16 %v5574
  %v5601 = vunpack.c.l.b16 %v5575
  %v5602 = vpack.c.b16 %v5590, %v5589
  %v5603 = vpack.c.b16 %v5592, %v5591
  %v5604 = vpack.c.b16 %v5594, %v5593
  %v5605 = vpack.c.b16 %v5596, %v5595
  %v5606 = vpack.c.b16 %v5598, %v5597
  %v5607 = vpack.c.b16 %v5600, %v5599
  %v5608 = vpack.c.b16 %v5601, %v5601
  %v5616 = vsel %vm5307, %v5252, 0
  %v5619 = vsel %vm5311, %v5608, 0
  %5621 = vmatprep.subr.bf16.mxu0 0
  %5622 = vmatpush1.bf16.msra.mxu0 0
  %5623 = vmatprep.subr.bf16.mxu0 0
  %5624 = vmatpush1.bf16.msra.mxu0 %v5619
  %5625 = vmatprep.subr.bf16.mxu0 0
  %5626 = vmatpush1.bf16.msra.mxu0 %v5607
  %5627 = vmatprep.subr.bf16.mxu0 0
  %5628 = vmatpush1.bf16.msra.mxu0 %v5606
  %5629 = vmatprep.subr.bf16.mxu0 0
  %5630 = vmatpush1.bf16.msra.mxu0 %v5605
  %5631 = vmatprep.subr.bf16.mxu0 0
  %5632 = vmatpush1.bf16.msra.mxu0 %v5604
  %5633 = vmatprep.subr.bf16.mxu0 0
  %5634 = vmatpush1.bf16.msra.mxu0 %v5603
  %5635 = vmatprep.subr.bf16.mxu0 0
  %5636 = vmatpush1.bf16.msra.mxu0 %v5602
  %5637 = vmatprep.subr.bf16.mxu0 0
  %5638 = vmatpush2.bf16.msra.mxu0 0
  %5639 = vmatprep.subr.bf16.mxu0 0
  %5640 = vmatpush2.bf16.msra.mxu0 0
  %5641 = vmatprep.subr.bf16.mxu0 0
  %5642 = vmatpush2.bf16.msra.mxu0 0
  %5643 = vmatprep.subr.bf16.mxu0 0
  %5644 = vmatpush2.bf16.msra.mxu0 0
  %5645 = vmatprep.subr.bf16.mxu0 0
  %5646 = vmatpush2.bf16.msra.mxu0 0
  %5647 = vmatprep.subr.bf16.mxu0 0
  %5648 = vmatpush2.bf16.msra.mxu0 0
  %5649 = vmatprep.subr.bf16.mxu0 0
  %5650 = vmatpush2.bf16.msra.mxu0 0
  %5651 = vmatprep.subr.bf16.mxu0 0
  %5652 = vmatpush2.bf16.msra.mxu0 0
  %5653 = vmatprep.mubr.bf16.mxu0 0
  %5654 = vmatmul.mubr.bf16.gmra.mxu0 %v5616
  %v5655 = vpop.f32.mrf.mxu0
  %v5656 = vadd.f32 0.0, %v5655
  %v5657 = vpop.f32.mrf.mxu0
  %v5658 = vpop.f32.mrf.mxu0
  %v5659 = vpop.f32.mrf.mxu0
  %5660 = vdwg.mxu0
  %v5661 = vadd.f32 %v5561, %v5656
  %s5662 = scalar_lea.vmem %s7, 208
  %v5663 = vld [vmem:[%s5662] sm:$0xf]
  %v5664 = vld [vmem:[%s5662 + $0x4] sm:$0xf]
  %v5665 = vld [vmem:[%s5662 + $0x8] sm:$0xf]
  %v5666 = vld [vmem:[%s5662 + $0xc] sm:$0xf]
  %v5667 = vld [vmem:[%s5662 + $0x10] sm:$0xf]
  %v5668 = vld [vmem:[%s5662 + $0x14] sm:$0xf]
  %v5669 = vld [vmem:[%s5662 + $0x18] sm:$0xf]
  %v5670 = vld [vmem:[%s5662 + $0x1c] sm:$0xf]
  %v5671 = vld [vmem:[%s5662 + $0x20] sm:$0xf]
  %v5672 = vld [vmem:[%s5662 + $0x24] sm:$0xf]
  %v5673 = vld [vmem:[%s5662 + $0x28] sm:$0xf]
  %v5674 = vld [vmem:[%s5662 + $0x2c] sm:$0xf]
  %v5675 = vld [vmem:[%s5662 + $0x30] sm:$0x3]
  %v5689 = vunpack.c.l.b16 %v5663
  %v5690 = vunpack.c.l.b16 %v5664
  %v5691 = vunpack.c.l.b16 %v5665
  %v5692 = vunpack.c.l.b16 %v5666
  %v5693 = vunpack.c.l.b16 %v5667
  %v5694 = vunpack.c.l.b16 %v5668
  %v5695 = vunpack.c.l.b16 %v5669
  %v5696 = vunpack.c.l.b16 %v5670
  %v5697 = vunpack.c.l.b16 %v5671
  %v5698 = vunpack.c.l.b16 %v5672
  %v5699 = vunpack.c.l.b16 %v5673
  %v5700 = vunpack.c.l.b16 %v5674
  %v5701 = vunpack.c.l.b16 %v5675
  %v5702 = vpack.c.b16 %v5690, %v5689
  %v5703 = vpack.c.b16 %v5692, %v5691
  %v5704 = vpack.c.b16 %v5694, %v5693
  %v5705 = vpack.c.b16 %v5696, %v5695
  %v5706 = vpack.c.b16 %v5698, %v5697
  %v5707 = vpack.c.b16 %v5700, %v5699
  %v5708 = vpack.c.b16 %v5701, %v5701
  %v5716 = vsel %vm5307, %v5253, 0
  %v5719 = vsel %vm5311, %v5708, 0
  %5721 = vmatprep.subr.bf16.mxu0 0
  %5722 = vmatpush1.bf16.msra.mxu0 0
  %5723 = vmatprep.subr.bf16.mxu0 0
  %5724 = vmatpush1.bf16.msra.mxu0 %v5719
  %5725 = vmatprep.subr.bf16.mxu0 0
  %5726 = vmatpush1.bf16.msra.mxu0 %v5707
  %5727 = vmatprep.subr.bf16.mxu0 0
  %5728 = vmatpush1.bf16.msra.mxu0 %v5706
  %5729 = vmatprep.subr.bf16.mxu0 0
  %5730 = vmatpush1.bf16.msra.mxu0 %v5705
  %5731 = vmatprep.subr.bf16.mxu0 0
  %5732 = vmatpush1.bf16.msra.mxu0 %v5704
  %5733 = vmatprep.subr.bf16.mxu0 0
  %5734 = vmatpush1.bf16.msra.mxu0 %v5703
  %5735 = vmatprep.subr.bf16.mxu0 0
  %5736 = vmatpush1.bf16.msra.mxu0 %v5702
  %5737 = vmatprep.subr.bf16.mxu0 0
  %5738 = vmatpush2.bf16.msra.mxu0 0
  %5739 = vmatprep.subr.bf16.mxu0 0
  %5740 = vmatpush2.bf16.msra.mxu0 0
  %5741 = vmatprep.subr.bf16.mxu0 0
  %5742 = vmatpush2.bf16.msra.mxu0 0
  %5743 = vmatprep.subr.bf16.mxu0 0
  %5744 = vmatpush2.bf16.msra.mxu0 0
  %5745 = vmatprep.subr.bf16.mxu0 0
  %5746 = vmatpush2.bf16.msra.mxu0 0
  %5747 = vmatprep.subr.bf16.mxu0 0
  %5748 = vmatpush2.bf16.msra.mxu0 0
  %5749 = vmatprep.subr.bf16.mxu0 0
  %5750 = vmatpush2.bf16.msra.mxu0 0
  %5751 = vmatprep.subr.bf16.mxu0 0
  %5752 = vmatpush2.bf16.msra.mxu0 0
  %5753 = vmatprep.mubr.bf16.mxu0 0
  %5754 = vmatmul.mubr.bf16.gmra.mxu0 %v5716
  %v5755 = vpop.f32.mrf.mxu0
  %v5756 = vadd.f32 0.0, %v5755
  %v5757 = vpop.f32.mrf.mxu0
  %v5758 = vpop.f32.mrf.mxu0
  %v5759 = vpop.f32.mrf.mxu0
  %5760 = vdwg.mxu0
  %v5761 = vadd.f32 %v5661, %v5756
  %v5762 = vmax.f32 %v5761, 0.0
  %v5763 = vpack.c.bf16 %v5762, %v5762
  %v5764 = vld [vmem:[%s9] sm:$0xf]
  %v5765 = vld [vmem:[%s9 + $0x4] sm:$0xf]
  %v5766 = vld [vmem:[%s9 + $0x8] sm:$0xf]
  %v5767 = vld [vmem:[%s9 + $0xc] sm:$0xf]
  %v5768 = vld [vmem:[%s9 + $0x10] sm:$0xf]
  %v5769 = vld [vmem:[%s9 + $0x14] sm:$0xf]
  %v5770 = vld [vmem:[%s9 + $0x18] sm:$0x1]
  %v5771 = vld [vmem:[%s10] sm:$0x1]
  %v5773 = vlaneseq
  %v5774 = vshrl.u32 %v5773, 7
  %v5775 = vsub.s32 0, %v5774
  %v5776 = vrot.slane %v5771, %v5775
  %v5785 = vunpack.c.l.b16 %v5764
  %v5786 = vunpack.c.l.b16 %v5765
  %v5787 = vunpack.c.l.b16 %v5766
  %v5788 = vunpack.c.l.b16 %v5767
  %v5789 = vunpack.c.l.b16 %v5768
  %v5790 = vunpack.c.l.b16 %v5769
  %v5791 = vunpack.c.l.b16 %v5770
  %v5792 = vpack.c.b16 %v5786, %v5785
  %v5793 = vpack.c.b16 %v5788, %v5787
  %v5794 = vpack.c.b16 %v5790, %v5789
  %v5795 = vpack.c.b16 %v5791, %v5791
  %vm5799 = vcmask 408576
  %v5801 = vsel %vm5799, %v5763, 0
  %vm5803 = vcmask 1040384
  %v5805 = vsel %vm5803, %v5795, 0
  %5807 = vmatprep.subr.bf16.mxu0 0
  %5808 = vmatpush1.bf16.msra.mxu0 0
  %5809 = vmatprep.subr.bf16.mxu0 0
  %5810 = vmatpush1.bf16.msra.mxu0 0
  %5811 = vmatprep.subr.bf16.mxu0 0
  %5812 = vmatpush1.bf16.msra.mxu0 0
  %5813 = vmatprep.subr.bf16.mxu0 0
  %5814 = vmatpush1.bf16.msra.mxu0 0
  %5815 = vmatprep.subr.bf16.mxu0 0
  %5816 = vmatpush1.bf16.msra.mxu0 %v5805
  %5817 = vmatprep.subr.bf16.mxu0 0
  %5818 = vmatpush1.bf16.msra.mxu0 %v5794
  %5819 = vmatprep.subr.bf16.mxu0 0
  %5820 = vmatpush1.bf16.msra.mxu0 %v5793
  %5821 = vmatprep.subr.bf16.mxu0 0
  %5822 = vmatpush1.bf16.msra.mxu0 %v5792
  %5823 = vmatprep.subr.bf16.mxu0 0
  %5824 = vmatpush2.bf16.msra.mxu0 0
  %5825 = vmatprep.subr.bf16.mxu0 0
  %5826 = vmatpush2.bf16.msra.mxu0 0
  %5827 = vmatprep.subr.bf16.mxu0 0
  %5828 = vmatpush2.bf16.msra.mxu0 0
  %5829 = vmatprep.subr.bf16.mxu0 0
  %5830 = vmatpush2.bf16.msra.mxu0 0
  %5831 = vmatprep.subr.bf16.mxu0 0
  %5832 = vmatpush2.bf16.msra.mxu0 0
  %5833 = vmatprep.subr.bf16.mxu0 0
  %5834 = vmatpush2.bf16.msra.mxu0 0
  %5835 = vmatprep.subr.bf16.mxu0 0
  %5836 = vmatpush2.bf16.msra.mxu0 0
  %5837 = vmatprep.subr.bf16.mxu0 0
  %5838 = vmatpush2.bf16.msra.mxu0 0
  %5839 = vmatprep.mubr.bf16.mxu0 0
  %5840 = vmatmul.mubr.bf16.gmra.mxu0 %v5801
  %v5841 = vpop.f32.mrf.mxu0
  %v5842 = vadd.f32 %v5776, %v5841
  %v5843 = vpop.f32.mrf.mxu0
  %v5844 = vpop.f32.mrf.mxu0
  %v5845 = vpop.f32.mrf.mxu0
  %5846 = vdwg.mxu0
  %vm5847 = vcmask 351232
  %v5848 = vsel %vm5847, %v5842, -inf
  %5849 = vmax.xlane.f32.xlu0 %v5848
  %v5850 = vpop.xlane.xlu0 %5849
  %v5851 = vsub.f32 %v5842, %v5850
  %v5852 = vmul.f32 %v5851, 1.442695
  %v5853 = vpow.pop %v5852
  %v5854 = vsel %vm5847, %v5853, 0.0
  %5855 = vadd.xlane.f32.xlu0 %v5854
  %v5856 = vpop.xlane.xlu0 %5855
  %v5857 = vlog2.pop %v5856
  %v5858 = vmul.f32 %v5857, 0.6931472
  %v5859 = vsub.f32 %v5851, %v5858
  %5860 = vst.msk [vmem:[%s11] sm:$0xff] %vm5847, %v5859
  // Predicated region
  $region46: #{net_forward.1} parent=0 // pred_check
    _
  $region47: #{net_forward.1} parent=0 // pred_check_branch
    %5862 = sbr.rel (0) target = $region49
  $region48: #{net_forward.1} parent=0 // pred_region
    _
  $region49: #{net_forward.1} parent=0 // pred_fallthru
    _
  // Predicated region
  $region50: #{net_forward.1} parent=0 // pred_check
    _
  $region51: #{net_forward.1} parent=0 // pred_check_branch
    %5864 = sbr.rel (0) target = $region53
  $region52: #{net_forward.1} parent=0 // pred_region
    _
  $region53: #{net_forward.1} parent=0 // pred_fallthru
    _

</llo_original>
